<compile_context>
chip_gen: v7x
topology: tpu7x:2x2x1
jax: 0.10.0
libtpu: 0.0.40
codegen_flags: <defaults>
</compile_context>

<pallas_src>
import functools

import jax
import jax.numpy as jnp
from jax import lax
from jax.experimental import pallas as pl
from jax.experimental.pallas import tpu as pltpu

# ----------------------------- config (small) --------------------------------
VOCAB = 64
VOCABP = 128    # lane-dense padded vocab for lm_head / cross-entropy
D = 32          # hidden size
H = 4           # attention heads
DH = 8          # head dim  (H * DH == D)
FFN = 64        # MLP intermediate size
LAYERS = 2
NUM_MEM = 4     # number of compressed ("memory") tokens
RMS_EPS = 1e-5
NEG_INF = -1e9


# --------------------------- in-kernel building blocks ------------------------
def _rmsnorm(x, w_row):
    # x: (S, D) f32 ; w_row: (1, D) f32
    var = jnp.mean(x * x, axis=-1, keepdims=True)
    return x * lax.rsqrt(var + RMS_EPS) * w_row


def _rope(t, cosf, sinf, rotm):
    # t: (S, D) f32 ; cosf/sinf: (S, D) f32 ; rotm: (D, D) bf16 permutation(+sign)
    rot = jnp.dot(t.astype(jnp.bfloat16), rotm, preferred_element_type=jnp.float32)
    return t * cosf + rot * sinf


def _head_block_mask(sk):
    """(H*sk, D) 0/1 mask: row block h is nonzero only on head h's DH lanes."""
    cid = lax.broadcasted_iota(jnp.int32, (sk, D), 1)
    blocks = [jnp.where((cid >= h * DH) & (cid < (h + 1) * DH), 1.0, 0.0)
              for h in range(H)]
    return jnp.concatenate(blocks, axis=0)


def _attention(q, keys, vals, bias_tiled):
    """Block-diagonal multi-head attention on lane-folded heads.

    q: (Sq, D) f32; keys/vals: (Sk, D) f32; bias_tiled: (Sq, H*Sk) f32.
    One 32-wide score matmul + one context matmul + one denominator matmul
    instead of H separate 8-wide per-head MXU ops.
    """
    sk = keys.shape[0]
    scale = 1.0 / (DH ** 0.5)
    head_mask = _head_block_mask(sk)                              # (H*Sk, D)
    k_rows = (jnp.concatenate([keys] * H, axis=0) * head_mask).astype(jnp.bfloat16)
    v_rows = (jnp.concatenate([vals] * H, axis=0) * head_mask).astype(jnp.bfloat16)
    dn_nt = (((1,), (1,)), ((), ()))                              # contract last dims
    s = lax.dot_general(q.astype(jnp.bfloat16), k_rows, dn_nt,
                        preferred_element_type=jnp.float32) * scale
    s = s + bias_tiled                                            # (Sq, H*Sk)
    # global row max is the SAME constant for every head block of that row, so
    # subtracting it keeps the per-head softmax exact while bounding exp().
    m = jnp.max(s, axis=-1, keepdims=True)
    p = jnp.exp(s - m).astype(jnp.bfloat16)
    ctx = jnp.dot(p, v_rows, preferred_element_type=jnp.float32)            # (Sq, D)
    den = jnp.dot(p, head_mask.astype(jnp.bfloat16),
                  preferred_element_type=jnp.float32)                       # per-head denom, broadcast over DH lanes
    return ctx * pl.reciprocal(den, approx=True)


def _decoder_layer(h, l, ln1_ref, ln2_ref, wqkv_ref, wo_ref, wgu_ref, wdn_ref,
                   cosf, sinf, rotm, bias_tiled, past_k, past_v):
    """One fused Phi-style decoder layer on a 2-D (S, D) slab (one batch row).

    Returns (new_h, rope_k, v) so pass 1 can hand its KV to pass 2 in-regs.
    """
    # ------------------------------ attention --------------------------------
    x = _rmsnorm(h, ln1_ref[l])
    qkv = jnp.dot(x.astype(jnp.bfloat16), wqkv_ref[l],
                  preferred_element_type=jnp.float32)             # (S, 3*D)
    q = _rope(qkv[:, 0:D], cosf, sinf, rotm)                      # (S, D)
    k = _rope(qkv[:, D:2 * D], cosf, sinf, rotm)                  # (S, D)
    v = qkv[:, 2 * D:3 * D]                                       # (S, D)

    if past_k is not None:
        keys = jnp.concatenate([past_k, k], axis=0)               # (L+S, D)
        vals = jnp.concatenate([past_v, v], axis=0)
    else:
        keys, vals = k, v

    ctx = _attention(q, keys, vals, bias_tiled)                   # (S, D)
    h = h + jnp.dot(ctx.astype(jnp.bfloat16), wo_ref[l],
                    preferred_element_type=jnp.float32)

    # --------------------------- gated-SiLU MLP -------------------------------
    x2 = _rmsnorm(h, ln2_ref[l])
    gu = jnp.dot(x2.astype(jnp.bfloat16), wgu_ref[l],
                 preferred_element_type=jnp.float32)              # (S, 2*FFN)
    gate = gu[:, :FFN]
    up = gu[:, FFN:]
    sig = 1.0 / (1.0 + jnp.exp(-gate))                            # exact sigmoid
    act = gate * sig * up
    h = h + jnp.dot(act.astype(jnp.bfloat16), wdn_ref[l],
                    preferred_element_type=jnp.float32)
    return h, k, v


# -------------------------------- fused kernel --------------------------------
def _fused_kernel(h0m_ref, mmask_ref, h0q_ref, qmask_ref, lbl_ref,
                  cosm_ref, sinm_ref, cosq_ref, sinq_ref, rotm_ref,
                  ln1_ref, ln2_ref, wqkv_ref, wo_ref, wgu_ref, wdn_ref,
                  fln_ref, lmh_ref, logits_ref, stats_ref,
                  *, start_idx, end_idx):
    L = h0m_ref.shape[1]
    S = h0q_ref.shape[1]
    rotm = rotm_ref[...]
    cosm, sinm = cosm_ref[...], sinm_ref[...]
    cosq, sinq = cosq_ref[...], sinq_ref[...]

    # ---- pass 1 bias (memory_save): causal AND key padding, built in-kernel ----
    qpos = lax.broadcasted_iota(jnp.int32, (L, L), 0)
    kpos = lax.broadcasted_iota(jnp.int32, (L, L), 1)
    allow1 = (kpos <= qpos) & (mmask_ref[0] > 0.0)                # (L, L)
    bias1 = jnp.where(allow1, 0.0, NEG_INF)
    bias1_t = jnp.concatenate([bias1] * H, axis=1)                # (L, H*L) per-head

    # ---- pass 1: memory_save forward; per-layer KV stays in VMEM/vregs ----
    h = h0m_ref[0]                                                # (L, D)
    kv = []
    for l in range(LAYERS):
        h, k_l, v_l = _decoder_layer(h, l, ln1_ref, ln2_ref, wqkv_ref, wo_ref,
                                     wgu_ref, wdn_ref, cosm, sinm, rotm,
                                     bias1_t, None, None)
        kv.append((k_l, v_l))

    # ---- pass 2 bias: KV-slice window on the cache rows + causal/padded QA ----
    colL = lax.broadcasted_iota(jnp.int32, (S, L), 1)
    bias_pre = jnp.where((colL >= start_idx) & (colL < end_idx), 0.0, NEG_INF)
    rowS = lax.broadcasted_iota(jnp.int32, (S, S), 0)
    colS = lax.broadcasted_iota(jnp.int32, (S, S), 1)
    allow2 = (colS <= rowS) & (qmask_ref[0] > 0.0)
    bias_new = jnp.where(allow2, 0.0, NEG_INF)
    bias2 = jnp.concatenate([bias_pre, bias_new], axis=1)         # (S, L+S)
    bias2_t = jnp.concatenate([bias2] * H, axis=1)                # (S, H*(L+S))

    # ---- pass 2: QA forward with the (window-masked) KV prefix ----
    hq = h0q_ref[0]                                               # (S, D)
    for l in range(LAYERS):
        hq, _, _ = _decoder_layer(hq, l, ln1_ref, ln2_ref, wqkv_ref, wo_ref,
                                  wgu_ref, wdn_ref, cosq, sinq, rotm,
                                  bias2_t, kv[l][0], kv[l][1])

    # ---- lm_head (lane-dense 128) + fused shifted cross-entropy ----
    hN = _rmsnorm(hq, fln_ref[...])
    logits = jnp.dot(hN.astype(jnp.bfloat16), lmh_ref[...],
                     preferred_element_type=jnp.float32)          # (S, VOCABP)
    logits_ref[0] = logits

    vocab_ids = lax.broadcasted_iota(jnp.int32, (S, VOCABP), 1)
    ce_logits = jnp.where(vocab_ids < VOCAB, logits, NEG_INF)     # mask pad lanes
    lbl = lbl_ref[0]                                              # (S, 1) int32, pre-shifted
    m = jnp.max(ce_logits, axis=-1, keepdims=True)
    lse = jnp.log(jnp.sum(jnp.exp(ce_logits - m), axis=-1, keepdims=True)) + m
    tgt = jnp.sum(jnp.where(vocab_ids == lbl, ce_logits, 0.0),
                  axis=-1, keepdims=True)
    valid = (lbl != -100).astype(jnp.float32)
    loss_sum = jnp.sum((lse - tgt) * valid)
    cnt = jnp.sum(valid)
    lane = lax.broadcasted_iota(jnp.int32, (1, 128), 1)
    stats_ref[0] = jnp.where(lane == 0, loss_sum,
                             jnp.where(lane == 1, cnt, 0.0))      # packed scalars


# ------------------------------ pallas wrapper --------------------------------
def lm_fused(w, h0_mem, mem_mask, h0_qa, qa_mask, labels_sh,
             cos1, sin1, cos2, sin2, start_idx, end_idx):
    B, L, _ = h0_mem.shape
    S = h0_qa.shape[1]
    kernel = functools.partial(_fused_kernel, start_idx=start_idx, end_idx=end_idx)
    rep2 = lambda b: (0, 0)
    rep3 = lambda b: (0, 0, 0)
    batched = lambda b: (b, 0, 0)
    return pl.pallas_call(
        kernel,
        out_shape=(jax.ShapeDtypeStruct((B, S, VOCABP), jnp.float32),
                   jax.ShapeDtypeStruct((B, 1, 128), jnp.float32)),
        grid=(B,),
        in_specs=[
            pl.BlockSpec((1, L, D), batched),            # memory embeddings
            pl.BlockSpec((1, 1, L), batched),            # memory key mask
            pl.BlockSpec((1, S, D), batched),            # QA embeddings
            pl.BlockSpec((1, 1, S), batched),            # QA key mask
            pl.BlockSpec((1, S, 1), batched),            # shifted labels
            pl.BlockSpec((L, D), rep2),                  # cos (pass 1)
            pl.BlockSpec((L, D), rep2),                  # sin (pass 1)
            pl.BlockSpec((S, D), rep2),                  # cos (pass 2)
            pl.BlockSpec((S, D), rep2),                  # sin (pass 2)
            pl.BlockSpec((D, D), rep2),                  # rotate_half matrix
            pl.BlockSpec((LAYERS, 1, D), rep3),          # ln1
            pl.BlockSpec((LAYERS, 1, D), rep3),          # ln2
            pl.BlockSpec((LAYERS, D, 3 * D), rep3),      # wqkv
            pl.BlockSpec((LAYERS, D, D), rep3),          # wo
            pl.BlockSpec((LAYERS, D, 2 * FFN), rep3),    # w_gate_up
            pl.BlockSpec((LAYERS, FFN, D), rep3),        # w_down
            pl.BlockSpec((1, D), rep2),                  # final_ln
            pl.BlockSpec((D, VOCABP), rep2),             # lm_head (lane padded)
        ],
        out_specs=(pl.BlockSpec((1, S, VOCABP), batched),
                   pl.BlockSpec((1, 1, 128), batched)),
        compiler_params=pltpu.CompilerParams(
            dimension_semantics=("parallel",)),
    )(h0_mem, mem_mask, h0_qa, qa_mask, labels_sh,
      cos1, sin1, cos2, sin2, w['rotm'],
      w['ln1'], w['ln2'], w['wqkv'], w['wo'], w['wgu'], w['wdn'],
      w['fln'], w['lmh'])


# ------------------------------ host-side glue ---------------------------------
def rope_cos_sin_full(positions, base=10000.0):
    inv_freq = 1.0 / (base ** (jnp.arange(0, DH, 2, dtype=jnp.float32) / DH))
    angles = positions[:, None].astype(jnp.float32) * inv_freq[None, :]
    emb = jnp.concatenate([angles, angles], axis=-1)       # (S, DH)
    cos = jnp.tile(jnp.cos(emb), (1, H))                   # (S, D): per-head tiled
    sin = jnp.tile(jnp.sin(emb), (1, H))
    return cos, sin


def build_rot_matrix():
    """(D, D) matrix R so that x @ R == per-head rotate_half(x) on (S, H*DH)."""
    r = jnp.zeros((D, D), jnp.float32)
    half = DH // 2
    for hh in range(H):
        base = hh * DH
        for j in range(half):
            r = r.at[base + half + j, base + j].set(-1.0)
            r = r.at[base + j, base + half + j].set(1.0)
    return r


def pack_weights(params):
    """Stack per-layer weights, cast MXU operands to bf16, pad lm_head to 128."""
    ls = params['layers']
    bf = jnp.bfloat16
    lmh = jnp.zeros((D, VOCABP), jnp.float32).at[:, :VOCAB].set(params['lm_head'])
    return {
        'ln1': jnp.stack([lp['ln1'] for lp in ls])[:, None, :],        # (L,1,D) f32
        'ln2': jnp.stack([lp['ln2'] for lp in ls])[:, None, :],        # (L,1,D) f32
        'wqkv': jnp.stack([lp['wqkv'] for lp in ls]).astype(bf),       # (L,D,3D)
        'wo': jnp.stack([lp['wo'] for lp in ls]).astype(bf),           # (L,D,D)
        'wgu': jnp.stack([lp['w_gate_up'] for lp in ls]).astype(bf),   # (L,D,2F)
        'wdn': jnp.stack([lp['w_down'] for lp in ls]).astype(bf),      # (L,F,D)
        'fln': params['final_ln'][None, :],                            # (1,D) f32
        'lmh': lmh.astype(bf),                                         # (D,128)
        'rotm': build_rot_matrix().astype(bf),                         # (D,D)
    }


def phi_compressor_forward(params, memory_save, qa, labels, num_mem=NUM_MEM):
    w = pack_weights(params)

    # ---- embeddings + masks (embedding gather is host-side XLA glue) ----
    mem_ids = memory_save['input_ids']
    B, L = mem_ids.shape
    h0_mem = params['embed'][mem_ids]                                  # (B, L, D)
    mem_mask = memory_save['attention_mask'].astype(jnp.float32)[:, None, :]

    qa_ids = qa['input_ids']
    S = qa_ids.shape[1]
    h0_qa = params['embed'][qa_ids]                                    # (B, S, D)
    # prepending ones(num_mem) to the QA mask == cache rows always visible,
    # which the kernel enforces directly on the KV-window bias.
    qa_mask = qa['attention_mask'].astype(jnp.float32)[:, None, :]

    cos1, sin1 = rope_cos_sin_full(jnp.arange(L))
    cos2, sin2 = rope_cos_sin_full(num_mem + jnp.arange(S))

    start_idx = L - num_mem - 2
    end_idx = L - 2

    # HF CausalLM shift done here (labels[:,1:] padded with -100) so the kernel
    # CE covers all S rows with a mask instead of a non-8-aligned row slice.
    labels_sh = jnp.concatenate(
        [labels[:, 1:], jnp.full((B, 1), -100, labels.dtype)], axis=1
    ).astype(jnp.int32)[:, :, None]                                    # (B, S, 1)

    logits_p, stats = lm_fused(w, h0_mem, mem_mask, h0_qa, qa_mask, labels_sh,
                               cos1, sin1, cos2, sin2, start_idx, end_idx)
    # stats lane 0 = per-row loss sum, lane 1 = valid-token count
    loss = jnp.sum(stats[:, 0, 0]) / jnp.maximum(jnp.sum(stats[:, 0, 1]), 1.0)
    logits = logits_p[:, :, :VOCAB]
    return loss, logits


# ------------------------------ params init ----------------------------------
def init_params(key):
    n_keys = 2 + LAYERS * 4
    keys = jax.random.split(key, n_keys)

    def w(k, shape, scale=0.02):
        return jax.random.normal(k, shape, dtype=jnp.float32) * scale

    params = {
        'embed': w(keys[0], (VOCAB, D)),
        'lm_head': w(keys[1], (D, VOCAB)),
        'final_ln': jnp.ones((D,), jnp.float32),
        'layers': [],
    }
    kidx = 2
    for _ in range(LAYERS):
        params['layers'].append({
            'ln1': jnp.ones((D,), jnp.float32),
            'ln2': jnp.ones((D,), jnp.float32),
            'wqkv': w(keys[kidx + 0], (D, 3 * H * DH)),
            'wo': w(keys[kidx + 1], (D, D)),
            'w_gate_up': w(keys[kidx + 2], (D, 2 * FFN)),
            'w_down': w(keys[kidx + 3], (FFN, D)),
        })
        kidx += 4
    return params


# ---------------------------------- main --------------------------------------
if __name__ == "__main__":
    key = jax.random.PRNGKey(0)
    pkey, k1, k2, k3 = jax.random.split(key, 4)
    params = init_params(pkey)

    B = 2
    L_MEM = 10      # memory_save sequence length (>= num_mem + 2)
    S_QA = 8        # QA sequence length

    memory_save = {
        'input_ids': jax.random.randint(k1, (B, L_MEM), 0, VOCAB, dtype=jnp.int32),
        'attention_mask': jnp.ones((B, L_MEM), jnp.float32),
    }
    qa = {
        'input_ids': jax.random.randint(k2, (B, S_QA), 0, VOCAB, dtype=jnp.int32),
        'attention_mask': jnp.ones((B, S_QA), jnp.float32),
    }
    labels = jax.random.randint(k3, (B, S_QA), 0, VOCAB, dtype=jnp.int32)
    labels = labels.at[:, :3].set(-100)   # question tokens ignored by the loss

    # TODO(synk): the real Phi-3.5-mini weights / tokenizer / LoRA and the
    # sampling-based generate() path have no in-script equivalent; a small
    # synthetic Phi-style decoder stands in for the HF model.
    fwd = jax.jit(phi_compressor_forward)
    loss, logits = fwd(params, memory_save, qa, labels)
    jax.block_until_ready((loss, logits))
    assert logits.shape == (B, S_QA, VOCAB)
    assert loss.shape == ()
    print("KERNEL_OK")
</pallas_src>

<mosaic_0001>
module attributes {stable_mosaic.version = 11 : i64} {
  func.func @_fused_kernel(%arg0: i32, %arg1: memref<1x10x32xf32, #tpu.memory_space<vmem>>, %arg2: memref<1x1x10xf32, #tpu.memory_space<vmem>>, %arg3: memref<1x8x32xf32, #tpu.memory_space<vmem>>, %arg4: memref<1x1x8xf32, #tpu.memory_space<vmem>>, %arg5: memref<1x8x1xi32, #tpu.memory_space<vmem>>, %arg6: memref<10x32xf32, #tpu.memory_space<vmem>>, %arg7: memref<10x32xf32, #tpu.memory_space<vmem>>, %arg8: memref<8x32xf32, #tpu.memory_space<vmem>>, %arg9: memref<8x32xf32, #tpu.memory_space<vmem>>, %arg10: memref<32x32xbf16, #tpu.memory_space<vmem>>, %arg11: memref<2x1x32xf32, #tpu.memory_space<vmem>>, %arg12: memref<2x1x32xf32, #tpu.memory_space<vmem>>, %arg13: memref<2x32x96xbf16, #tpu.memory_space<vmem>>, %arg14: memref<2x32x32xbf16, #tpu.memory_space<vmem>>, %arg15: memref<2x32x128xbf16, #tpu.memory_space<vmem>>, %arg16: memref<2x64x32xbf16, #tpu.memory_space<vmem>>, %arg17: memref<1x32xf32, #tpu.memory_space<vmem>>, %arg18: memref<32x128xbf16, #tpu.memory_space<vmem>>, %arg19: memref<1x8x128xf32, #tpu.memory_space<vmem>>, %arg20: memref<1x1x128xf32, #tpu.memory_space<vmem>>) attributes {dimension_semantics = [#tpu.dimension_semantics<parallel>], iteration_bounds = array<i64: 2>, scalar_prefetch = 0 : i64, scratch_operands = 0 : i64, tpu.core_type = #tpu.core_type<tc>, window_params = [{transform_indices = @transform_0, window_bounds = array<i64: 1, 10, 32>}, {transform_indices = @transform_1, window_bounds = array<i64: 1, 1, 10>}, {transform_indices = @transform_2, window_bounds = array<i64: 1, 8, 32>}, {transform_indices = @transform_3, window_bounds = array<i64: 1, 1, 8>}, {transform_indices = @transform_4, window_bounds = array<i64: 1, 8, 1>}, {pipeline_mode = #tpu.pipeline_mode<synchronous>, transform_indices = @transform_5, window_bounds = array<i64: 10, 32>}, {pipeline_mode = #tpu.pipeline_mode<synchronous>, transform_indices = @transform_6, window_bounds = array<i64: 10, 32>}, {pipeline_mode = #tpu.pipeline_mode<synchronous>, transform_indices = @transform_7, window_bounds = array<i64: 8, 32>}, {pipeline_mode = #tpu.pipeline_mode<synchronous>, transform_indices = @transform_8, window_bounds = array<i64: 8, 32>}, {pipeline_mode = #tpu.pipeline_mode<synchronous>, transform_indices = @transform_9, window_bounds = array<i64: 32, 32>}, {pipeline_mode = #tpu.pipeline_mode<synchronous>, transform_indices = @transform_10, window_bounds = array<i64: 2, 1, 32>}, {pipeline_mode = #tpu.pipeline_mode<synchronous>, transform_indices = @transform_11, window_bounds = array<i64: 2, 1, 32>}, {pipeline_mode = #tpu.pipeline_mode<synchronous>, transform_indices = @transform_12, window_bounds = array<i64: 2, 32, 96>}, {pipeline_mode = #tpu.pipeline_mode<synchronous>, transform_indices = @transform_13, window_bounds = array<i64: 2, 32, 32>}, {pipeline_mode = #tpu.pipeline_mode<synchronous>, transform_indices = @transform_14, window_bounds = array<i64: 2, 32, 128>}, {pipeline_mode = #tpu.pipeline_mode<synchronous>, transform_indices = @transform_15, window_bounds = array<i64: 2, 64, 32>}, {pipeline_mode = #tpu.pipeline_mode<synchronous>, transform_indices = @transform_16, window_bounds = array<i64: 1, 32>}, {pipeline_mode = #tpu.pipeline_mode<synchronous>, transform_indices = @transform_17, window_bounds = array<i64: 32, 128>}, {transform_indices = @transform_18, window_bounds = array<i64: 1, 8, 128>}, {transform_indices = @transform_19, window_bounds = array<i64: 1, 1, 128>}]} {
    %c0 = arith.constant 0 : index
    %c0_0 = arith.constant 0 : index
    %0 = vector.load %arg10[%c0, %c0_0] : memref<32x32xbf16, #tpu.memory_space<vmem>>, vector<32x32xbf16>
    %c0_1 = arith.constant 0 : index
    %c0_2 = arith.constant 0 : index
    %1 = vector.load %arg6[%c0_1, %c0_2] : memref<10x32xf32, #tpu.memory_space<vmem>>, vector<10x32xf32>
    %c0_3 = arith.constant 0 : index
    %c0_4 = arith.constant 0 : index
    %2 = vector.load %arg7[%c0_3, %c0_4] : memref<10x32xf32, #tpu.memory_space<vmem>>, vector<10x32xf32>
    %c0_5 = arith.constant 0 : index
    %c0_6 = arith.constant 0 : index
    %3 = vector.load %arg8[%c0_5, %c0_6] : memref<8x32xf32, #tpu.memory_space<vmem>>, vector<8x32xf32>
    %c0_7 = arith.constant 0 : index
    %c0_8 = arith.constant 0 : index
    %4 = vector.load %arg9[%c0_7, %c0_8] : memref<8x32xf32, #tpu.memory_space<vmem>>, vector<8x32xf32>
    %5 = tpu.iota {dimensions = array<i32: 0>} : vector<10x10xi32>
    %6 = tpu.iota {dimensions = array<i32: 1>} : vector<10x10xi32>
    %7 = arith.cmpi sle, %6, %5 : vector<10x10xi32>
    %c0_9 = arith.constant 0 : index
    %c0_10 = arith.constant 0 : index
    %c0_11 = arith.constant 0 : index
    %8 = vector.load %arg2[%c0_9, %c0_10, %c0_11] : memref<1x1x10xf32, #tpu.memory_space<vmem>>, vector<1x1x10xf32>
    %9 = vector.shape_cast %8 : vector<1x1x10xf32> to vector<1x10xf32>
    %cst = arith.constant 0.000000e+00 : f32
    %10 = vector.broadcast %cst : f32 to vector<1x10xf32>
    %11 = arith.cmpf ogt, %9, %10 : vector<1x10xf32>
    %12 = vector.broadcast %11 : vector<1x10xi1> to vector<10x10xi1>
    %13 = arith.andi %7, %12 : vector<10x10xi1>
    %cst_12 = arith.constant 0.000000e+00 : f32
    %cst_13 = arith.constant -1.000000e+09 : f32
    %14 = vector.broadcast %cst_12 : f32 to vector<10x10xf32>
    %15 = vector.broadcast %cst_13 : f32 to vector<10x10xf32>
    %16 = arith.select %13, %14, %15 : vector<10x10xi1>, vector<10x10xf32>
    %17 = tpu.concatenate %16, %16, %16, %16 in 1 : vector<10x10xf32>, vector<10x10xf32>, vector<10x10xf32>, vector<10x10xf32> -> vector<10x40xf32>
    %c0_14 = arith.constant 0 : index
    %c0_15 = arith.constant 0 : index
    %c0_16 = arith.constant 0 : index
    %18 = vector.load %arg1[%c0_14, %c0_15, %c0_16] : memref<1x10x32xf32, #tpu.memory_space<vmem>>, vector<1x10x32xf32>
    %19 = vector.shape_cast %18 : vector<1x10x32xf32> to vector<10x32xf32>
    %c0_17 = arith.constant 0 : index
    %c0_18 = arith.constant 0 : index
    %c0_19 = arith.constant 0 : index
    %20 = vector.load %arg11[%c0_17, %c0_18, %c0_19] : memref<2x1x32xf32, #tpu.memory_space<vmem>>, vector<1x1x32xf32>
    %21 = vector.shape_cast %20 : vector<1x1x32xf32> to vector<1x32xf32>
    %22 = arith.mulf %19, %19 : vector<10x32xf32>
    %cst_20 = arith.constant dense<0.000000e+00> : vector<10xf32>
    %23 = vector.multi_reduction <add>, %22, %cst_20 [1] : vector<10x32xf32> to vector<10xf32>
    %24 = vector.shape_cast %23 : vector<10xf32> to vector<10x1xf32>
    %cst_21 = arith.constant 3.200000e+01 : f32
    %25 = vector.broadcast %cst_21 : f32 to vector<10x1xf32>
    %26 = arith.divf %24, %25 : vector<10x1xf32>
    %cst_22 = arith.constant 9.99999974E-6 : f32
    %27 = vector.broadcast %cst_22 : f32 to vector<10x1xf32>
    %28 = arith.addf %26, %27 : vector<10x1xf32>
    %29 = math.rsqrt %28 : vector<10x1xf32>
    %30 = vector.broadcast %29 : vector<10x1xf32> to vector<10x32xf32>
    %31 = arith.mulf %19, %30 : vector<10x32xf32>
    %32 = vector.broadcast %21 : vector<1x32xf32> to vector<10x32xf32>
    %33 = arith.mulf %31, %32 : vector<10x32xf32>
    %34 = arith.truncf %33 : vector<10x32xf32> to vector<10x32xbf16>
    %c0_23 = arith.constant 0 : index
    %c0_24 = arith.constant 0 : index
    %c0_25 = arith.constant 0 : index
    %35 = vector.load %arg13[%c0_23, %c0_24, %c0_25] : memref<2x32x96xbf16, #tpu.memory_space<vmem>>, vector<1x32x96xbf16>
    %36 = vector.shape_cast %35 : vector<1x32x96xbf16> to vector<32x96xbf16>
    %cst_26 = arith.constant dense<0.000000e+00> : vector<10x96xf32>
    %37 = tpu.matmul %34, %36, %cst_26 {dimension_numbers = #tpu.dot_dimension_numbers<[1], [0], [0], [1], [0, 0, 1, 1], [], []>} : vector<10x32xbf16>, vector<32x96xbf16>, vector<10x96xf32> -> vector<10x96xf32>
    %38 = vector.extract_strided_slice %37 {offsets = [0, 0], sizes = [10, 32], strides = [1, 1]} : vector<10x96xf32> to vector<10x32xf32>
    %39 = arith.truncf %38 : vector<10x32xf32> to vector<10x32xbf16>
    %cst_27 = arith.constant dense<0.000000e+00> : vector<10x32xf32>
    %40 = tpu.matmul %39, %0, %cst_27 {dimension_numbers = #tpu.dot_dimension_numbers<[1], [0], [0], [1], [0, 0, 1, 1], [], []>} : vector<10x32xbf16>, vector<32x32xbf16>, vector<10x32xf32> -> vector<10x32xf32>
    %41 = arith.mulf %38, %1 : vector<10x32xf32>
    %42 = arith.mulf %40, %2 : vector<10x32xf32>
    %43 = arith.addf %41, %42 : vector<10x32xf32>
    %44 = vector.extract_strided_slice %37 {offsets = [0, 32], sizes = [10, 32], strides = [1, 1]} : vector<10x96xf32> to vector<10x32xf32>
    %45 = arith.truncf %44 : vector<10x32xf32> to vector<10x32xbf16>
    %cst_28 = arith.constant dense<0.000000e+00> : vector<10x32xf32>
    %46 = tpu.matmul %45, %0, %cst_28 {dimension_numbers = #tpu.dot_dimension_numbers<[1], [0], [0], [1], [0, 0, 1, 1], [], []>} : vector<10x32xbf16>, vector<32x32xbf16>, vector<10x32xf32> -> vector<10x32xf32>
    %47 = arith.mulf %44, %1 : vector<10x32xf32>
    %48 = arith.mulf %46, %2 : vector<10x32xf32>
    %49 = arith.addf %47, %48 : vector<10x32xf32>
    %50 = vector.extract_strided_slice %37 {offsets = [0, 64], sizes = [10, 32], strides = [1, 1]} : vector<10x96xf32> to vector<10x32xf32>
    %51 = tpu.iota {dimensions = array<i32: 1>} : vector<10x32xi32>
    %c0_i32 = arith.constant 0 : i32
    %52 = vector.broadcast %c0_i32 : i32 to vector<10x32xi32>
    %53 = arith.cmpi sge, %51, %52 : vector<10x32xi32>
    %c8_i32 = arith.constant 8 : i32
    %54 = vector.broadcast %c8_i32 : i32 to vector<10x32xi32>
    %55 = arith.cmpi slt, %51, %54 : vector<10x32xi32>
    %56 = arith.andi %53, %55 : vector<10x32xi1>
    %cst_29 = arith.constant 1.000000e+00 : f32
    %cst_30 = arith.constant 0.000000e+00 : f32
    %57 = vector.broadcast %cst_29 : f32 to vector<10x32xf32>
    %58 = vector.broadcast %cst_30 : f32 to vector<10x32xf32>
    %59 = arith.select %56, %57, %58 : vector<10x32xi1>, vector<10x32xf32>
    %c8_i32_31 = arith.constant 8 : i32
    %60 = vector.broadcast %c8_i32_31 : i32 to vector<10x32xi32>
    %61 = arith.cmpi sge, %51, %60 : vector<10x32xi32>
    %c16_i32 = arith.constant 16 : i32
    %62 = vector.broadcast %c16_i32 : i32 to vector<10x32xi32>
    %63 = arith.cmpi slt, %51, %62 : vector<10x32xi32>
    %64 = arith.andi %61, %63 : vector<10x32xi1>
    %cst_32 = arith.constant 1.000000e+00 : f32
    %cst_33 = arith.constant 0.000000e+00 : f32
    %65 = vector.broadcast %cst_32 : f32 to vector<10x32xf32>
    %66 = vector.broadcast %cst_33 : f32 to vector<10x32xf32>
    %67 = arith.select %64, %65, %66 : vector<10x32xi1>, vector<10x32xf32>
    %c16_i32_34 = arith.constant 16 : i32
    %68 = vector.broadcast %c16_i32_34 : i32 to vector<10x32xi32>
    %69 = arith.cmpi sge, %51, %68 : vector<10x32xi32>
    %c24_i32 = arith.constant 24 : i32
    %70 = vector.broadcast %c24_i32 : i32 to vector<10x32xi32>
    %71 = arith.cmpi slt, %51, %70 : vector<10x32xi32>
    %72 = arith.andi %69, %71 : vector<10x32xi1>
    %cst_35 = arith.constant 1.000000e+00 : f32
    %cst_36 = arith.constant 0.000000e+00 : f32
    %73 = vector.broadcast %cst_35 : f32 to vector<10x32xf32>
    %74 = vector.broadcast %cst_36 : f32 to vector<10x32xf32>
    %75 = arith.select %72, %73, %74 : vector<10x32xi1>, vector<10x32xf32>
    %c24_i32_37 = arith.constant 24 : i32
    %76 = vector.broadcast %c24_i32_37 : i32 to vector<10x32xi32>
    %77 = arith.cmpi sge, %51, %76 : vector<10x32xi32>
    %c32_i32 = arith.constant 32 : i32
    %78 = vector.broadcast %c32_i32 : i32 to vector<10x32xi32>
    %79 = arith.cmpi slt, %51, %78 : vector<10x32xi32>
    %80 = arith.andi %77, %79 : vector<10x32xi1>
    %cst_38 = arith.constant 1.000000e+00 : f32
    %cst_39 = arith.constant 0.000000e+00 : f32
    %81 = vector.broadcast %cst_38 : f32 to vector<10x32xf32>
    %82 = vector.broadcast %cst_39 : f32 to vector<10x32xf32>
    %83 = arith.select %80, %81, %82 : vector<10x32xi1>, vector<10x32xf32>
    %84 = tpu.concatenate %59, %67, %75, %83 in 0 : vector<10x32xf32>, vector<10x32xf32>, vector<10x32xf32>, vector<10x32xf32> -> vector<40x32xf32>
    %85 = tpu.concatenate %49, %49, %49, %49 in 0 : vector<10x32xf32>, vector<10x32xf32>, vector<10x32xf32>, vector<10x32xf32> -> vector<40x32xf32>
    %86 = arith.mulf %85, %84 : vector<40x32xf32>
    %87 = arith.truncf %86 : vector<40x32xf32> to vector<40x32xbf16>
    %88 = tpu.concatenate %50, %50, %50, %50 in 0 : vector<10x32xf32>, vector<10x32xf32>, vector<10x32xf32>, vector<10x32xf32> -> vector<40x32xf32>
    %89 = arith.mulf %88, %84 : vector<40x32xf32>
    %90 = arith.truncf %89 : vector<40x32xf32> to vector<40x32xbf16>
    %91 = arith.truncf %43 : vector<10x32xf32> to vector<10x32xbf16>
    %cst_40 = arith.constant dense<0.000000e+00> : vector<10x40xf32>
    %92 = tpu.matmul %91, %87, %cst_40 {dimension_numbers = #tpu.dot_dimension_numbers<[1], [1], [0], [0], [0, 0, 1, 0], [], []>} : vector<10x32xbf16>, vector<40x32xbf16>, vector<10x40xf32> -> vector<10x40xf32>
    %cst_41 = arith.constant 0.353553385 : f32
    %93 = vector.broadcast %cst_41 : f32 to vector<10x40xf32>
    %94 = arith.mulf %92, %93 : vector<10x40xf32>
    %95 = arith.addf %94, %17 : vector<10x40xf32>
    %cst_42 = arith.constant dense<0xFF800000> : vector<10xf32>
    %96 = vector.multi_reduction <maximumf>, %95, %cst_42 [1] : vector<10x40xf32> to vector<10xf32>
    %97 = vector.shape_cast %96 : vector<10xf32> to vector<10x1xf32>
    %98 = vector.broadcast %97 : vector<10x1xf32> to vector<10x40xf32>
    %99 = arith.subf %95, %98 : vector<10x40xf32>
    %100 = math.exp %99 : vector<10x40xf32>
    %101 = arith.truncf %100 : vector<10x40xf32> to vector<10x40xbf16>
    %cst_43 = arith.constant dense<0.000000e+00> : vector<10x32xf32>
    %102 = tpu.matmul %101, %90, %cst_43 {dimension_numbers = #tpu.dot_dimension_numbers<[1], [0], [0], [1], [0, 0, 1, 1], [], []>} : vector<10x40xbf16>, vector<40x32xbf16>, vector<10x32xf32> -> vector<10x32xf32>
    %103 = arith.truncf %84 : vector<40x32xf32> to vector<40x32xbf16>
    %cst_44 = arith.constant dense<0.000000e+00> : vector<10x32xf32>
    %104 = tpu.matmul %101, %103, %cst_44 {dimension_numbers = #tpu.dot_dimension_numbers<[1], [0], [0], [1], [0, 0, 1, 1], [], []>} : vector<10x40xbf16>, vector<40x32xbf16>, vector<10x32xf32> -> vector<10x32xf32>
    %105 = tpu.reciprocal %104 {approx = true} : vector<10x32xf32> -> vector<10x32xf32>
    %106 = arith.mulf %102, %105 : vector<10x32xf32>
    %107 = arith.truncf %106 : vector<10x32xf32> to vector<10x32xbf16>
    %c0_45 = arith.constant 0 : index
    %c0_46 = arith.constant 0 : index
    %c0_47 = arith.constant 0 : index
    %108 = vector.load %arg14[%c0_45, %c0_46, %c0_47] : memref<2x32x32xbf16, #tpu.memory_space<vmem>>, vector<1x32x32xbf16>
    %109 = vector.shape_cast %108 : vector<1x32x32xbf16> to vector<32x32xbf16>
    %cst_48 = arith.constant dense<0.000000e+00> : vector<10x32xf32>
    %110 = tpu.matmul %107, %109, %cst_48 {dimension_numbers = #tpu.dot_dimension_numbers<[1], [0], [0], [1], [0, 0, 1, 1], [], []>} : vector<10x32xbf16>, vector<32x32xbf16>, vector<10x32xf32> -> vector<10x32xf32>
    %111 = arith.addf %19, %110 : vector<10x32xf32>
    %c0_49 = arith.constant 0 : index
    %c0_50 = arith.constant 0 : index
    %c0_51 = arith.constant 0 : index
    %112 = vector.load %arg12[%c0_49, %c0_50, %c0_51] : memref<2x1x32xf32, #tpu.memory_space<vmem>>, vector<1x1x32xf32>
    %113 = vector.shape_cast %112 : vector<1x1x32xf32> to vector<1x32xf32>
    %114 = arith.mulf %111, %111 : vector<10x32xf32>
    %cst_52 = arith.constant dense<0.000000e+00> : vector<10xf32>
    %115 = vector.multi_reduction <add>, %114, %cst_52 [1] : vector<10x32xf32> to vector<10xf32>
    %116 = vector.shape_cast %115 : vector<10xf32> to vector<10x1xf32>
    %cst_53 = arith.constant 3.200000e+01 : f32
    %117 = vector.broadcast %cst_53 : f32 to vector<10x1xf32>
    %118 = arith.divf %116, %117 : vector<10x1xf32>
    %cst_54 = arith.constant 9.99999974E-6 : f32
    %119 = vector.broadcast %cst_54 : f32 to vector<10x1xf32>
    %120 = arith.addf %118, %119 : vector<10x1xf32>
    %121 = math.rsqrt %120 : vector<10x1xf32>
    %122 = vector.broadcast %121 : vector<10x1xf32> to vector<10x32xf32>
    %123 = arith.mulf %111, %122 : vector<10x32xf32>
    %124 = vector.broadcast %113 : vector<1x32xf32> to vector<10x32xf32>
    %125 = arith.mulf %123, %124 : vector<10x32xf32>
    %126 = arith.truncf %125 : vector<10x32xf32> to vector<10x32xbf16>
    %c0_55 = arith.constant 0 : index
    %c0_56 = arith.constant 0 : index
    %c0_57 = arith.constant 0 : index
    %127 = vector.load %arg15[%c0_55, %c0_56, %c0_57] : memref<2x32x128xbf16, #tpu.memory_space<vmem>>, vector<1x32x128xbf16>
    %128 = vector.shape_cast %127 : vector<1x32x128xbf16> to vector<32x128xbf16>
    %cst_58 = arith.constant dense<0.000000e+00> : vector<10x128xf32>
    %129 = tpu.matmul %126, %128, %cst_58 {dimension_numbers = #tpu.dot_dimension_numbers<[1], [0], [0], [1], [0, 0, 1, 1], [], []>} : vector<10x32xbf16>, vector<32x128xbf16>, vector<10x128xf32> -> vector<10x128xf32>
    %130 = vector.extract_strided_slice %129 {offsets = [0, 0], sizes = [10, 64], strides = [1, 1]} : vector<10x128xf32> to vector<10x64xf32>
    %131 = vector.extract_strided_slice %129 {offsets = [0, 64], sizes = [10, 64], strides = [1, 1]} : vector<10x128xf32> to vector<10x64xf32>
    %cst_59 = arith.constant 0.000000e+00 : f32
    %132 = vector.broadcast %cst_59 : f32 to vector<10x64xf32>
    %133 = arith.subf %132, %130 : vector<10x64xf32>
    %134 = math.exp %133 : vector<10x64xf32>
    %cst_60 = arith.constant 1.000000e+00 : f32
    %135 = vector.broadcast %cst_60 : f32 to vector<10x64xf32>
    %136 = arith.addf %135, %134 : vector<10x64xf32>
    %cst_61 = arith.constant 1.000000e+00 : f32
    %137 = vector.broadcast %cst_61 : f32 to vector<10x64xf32>
    %138 = arith.divf %137, %136 : vector<10x64xf32>
    %139 = arith.mulf %130, %138 : vector<10x64xf32>
    %140 = arith.mulf %139, %131 : vector<10x64xf32>
    %141 = arith.truncf %140 : vector<10x64xf32> to vector<10x64xbf16>
    %c0_62 = arith.constant 0 : index
    %c0_63 = arith.constant 0 : index
    %c0_64 = arith.constant 0 : index
    %142 = vector.load %arg16[%c0_62, %c0_63, %c0_64] : memref<2x64x32xbf16, #tpu.memory_space<vmem>>, vector<1x64x32xbf16>
    %143 = vector.shape_cast %142 : vector<1x64x32xbf16> to vector<64x32xbf16>
    %cst_65 = arith.constant dense<0.000000e+00> : vector<10x32xf32>
    %144 = tpu.matmul %141, %143, %cst_65 {dimension_numbers = #tpu.dot_dimension_numbers<[1], [0], [0], [1], [0, 0, 1, 1], [], []>} : vector<10x64xbf16>, vector<64x32xbf16>, vector<10x32xf32> -> vector<10x32xf32>
    %145 = arith.addf %111, %144 : vector<10x32xf32>
    %c1 = arith.constant 1 : index
    %c0_66 = arith.constant 0 : index
    %c0_67 = arith.constant 0 : index
    %146 = vector.load %arg11[%c1, %c0_66, %c0_67] : memref<2x1x32xf32, #tpu.memory_space<vmem>>, vector<1x1x32xf32>
    %147 = vector.shape_cast %146 : vector<1x1x32xf32> to vector<1x32xf32>
    %148 = arith.mulf %145, %145 : vector<10x32xf32>
    %cst_68 = arith.constant dense<0.000000e+00> : vector<10xf32>
    %149 = vector.multi_reduction <add>, %148, %cst_68 [1] : vector<10x32xf32> to vector<10xf32>
    %150 = vector.shape_cast %149 : vector<10xf32> to vector<10x1xf32>
    %cst_69 = arith.constant 3.200000e+01 : f32
    %151 = vector.broadcast %cst_69 : f32 to vector<10x1xf32>
    %152 = arith.divf %150, %151 : vector<10x1xf32>
    %cst_70 = arith.constant 9.99999974E-6 : f32
    %153 = vector.broadcast %cst_70 : f32 to vector<10x1xf32>
    %154 = arith.addf %152, %153 : vector<10x1xf32>
    %155 = math.rsqrt %154 : vector<10x1xf32>
    %156 = vector.broadcast %155 : vector<10x1xf32> to vector<10x32xf32>
    %157 = arith.mulf %145, %156 : vector<10x32xf32>
    %158 = vector.broadcast %147 : vector<1x32xf32> to vector<10x32xf32>
    %159 = arith.mulf %157, %158 : vector<10x32xf32>
    %160 = arith.truncf %159 : vector<10x32xf32> to vector<10x32xbf16>
    %c1_71 = arith.constant 1 : index
    %c0_72 = arith.constant 0 : index
    %c0_73 = arith.constant 0 : index
    %161 = vector.load %arg13[%c1_71, %c0_72, %c0_73] : memref<2x32x96xbf16, #tpu.memory_space<vmem>>, vector<1x32x96xbf16>
    %162 = vector.shape_cast %161 : vector<1x32x96xbf16> to vector<32x96xbf16>
    %cst_74 = arith.constant dense<0.000000e+00> : vector<10x96xf32>
    %163 = tpu.matmul %160, %162, %cst_74 {dimension_numbers = #tpu.dot_dimension_numbers<[1], [0], [0], [1], [0, 0, 1, 1], [], []>} : vector<10x32xbf16>, vector<32x96xbf16>, vector<10x96xf32> -> vector<10x96xf32>
    %164 = vector.extract_strided_slice %163 {offsets = [0, 32], sizes = [10, 32], strides = [1, 1]} : vector<10x96xf32> to vector<10x32xf32>
    %165 = arith.truncf %164 : vector<10x32xf32> to vector<10x32xbf16>
    %cst_75 = arith.constant dense<0.000000e+00> : vector<10x32xf32>
    %166 = tpu.matmul %165, %0, %cst_75 {dimension_numbers = #tpu.dot_dimension_numbers<[1], [0], [0], [1], [0, 0, 1, 1], [], []>} : vector<10x32xbf16>, vector<32x32xbf16>, vector<10x32xf32> -> vector<10x32xf32>
    %167 = arith.mulf %164, %1 : vector<10x32xf32>
    %168 = arith.mulf %166, %2 : vector<10x32xf32>
    %169 = arith.addf %167, %168 : vector<10x32xf32>
    %170 = vector.extract_strided_slice %163 {offsets = [0, 64], sizes = [10, 32], strides = [1, 1]} : vector<10x96xf32> to vector<10x32xf32>
    %171 = tpu.iota {dimensions = array<i32: 1>} : vector<8x10xi32>
    %c4_i32 = arith.constant 4 : i32
    %172 = vector.broadcast %c4_i32 : i32 to vector<8x10xi32>
    %173 = arith.cmpi sge, %171, %172 : vector<8x10xi32>
    %c8_i32_76 = arith.constant 8 : i32
    %174 = vector.broadcast %c8_i32_76 : i32 to vector<8x10xi32>
    %175 = arith.cmpi slt, %171, %174 : vector<8x10xi32>
    %176 = arith.andi %173, %175 : vector<8x10xi1>
    %cst_77 = arith.constant 0.000000e+00 : f32
    %cst_78 = arith.constant -1.000000e+09 : f32
    %177 = vector.broadcast %cst_77 : f32 to vector<8x10xf32>
    %178 = vector.broadcast %cst_78 : f32 to vector<8x10xf32>
    %179 = arith.select %176, %177, %178 : vector<8x10xi1>, vector<8x10xf32>
    %180 = tpu.iota {dimensions = array<i32: 0>} : vector<8x8xi32>
    %181 = tpu.iota {dimensions = array<i32: 1>} : vector<8x8xi32>
    %182 = arith.cmpi sle, %181, %180 : vector<8x8xi32>
    %c0_79 = arith.constant 0 : index
    %c0_80 = arith.constant 0 : index
    %c0_81 = arith.constant 0 : index
    %183 = vector.load %arg4[%c0_79, %c0_80, %c0_81] : memref<1x1x8xf32, #tpu.memory_space<vmem>>, vector<1x1x8xf32>
    %184 = vector.shape_cast %183 : vector<1x1x8xf32> to vector<1x8xf32>
    %cst_82 = arith.constant 0.000000e+00 : f32
    %185 = vector.broadcast %cst_82 : f32 to vector<1x8xf32>
    %186 = arith.cmpf ogt, %184, %185 : vector<1x8xf32>
    %187 = vector.broadcast %186 : vector<1x8xi1> to vector<8x8xi1>
    %188 = arith.andi %182, %187 : vector<8x8xi1>
    %cst_83 = arith.constant 0.000000e+00 : f32
    %cst_84 = arith.constant -1.000000e+09 : f32
    %189 = vector.broadcast %cst_83 : f32 to vector<8x8xf32>
    %190 = vector.broadcast %cst_84 : f32 to vector<8x8xf32>
    %191 = arith.select %188, %189, %190 : vector<8x8xi1>, vector<8x8xf32>
    %192 = tpu.concatenate %179, %191 in 1 : vector<8x10xf32>, vector<8x8xf32> -> vector<8x18xf32>
    %193 = tpu.concatenate %192, %192, %192, %192 in 1 : vector<8x18xf32>, vector<8x18xf32>, vector<8x18xf32>, vector<8x18xf32> -> vector<8x72xf32>
    %c0_85 = arith.constant 0 : index
    %c0_86 = arith.constant 0 : index
    %c0_87 = arith.constant 0 : index
    %194 = vector.load %arg3[%c0_85, %c0_86, %c0_87] : memref<1x8x32xf32, #tpu.memory_space<vmem>>, vector<1x8x32xf32>
    %195 = vector.shape_cast %194 : vector<1x8x32xf32> to vector<8x32xf32>
    %c0_88 = arith.constant 0 : index
    %c0_89 = arith.constant 0 : index
    %c0_90 = arith.constant 0 : index
    %196 = vector.load %arg11[%c0_88, %c0_89, %c0_90] : memref<2x1x32xf32, #tpu.memory_space<vmem>>, vector<1x1x32xf32>
    %197 = vector.shape_cast %196 : vector<1x1x32xf32> to vector<1x32xf32>
    %198 = arith.mulf %195, %195 : vector<8x32xf32>
    %cst_91 = arith.constant dense<0.000000e+00> : vector<8xf32>
    %199 = vector.multi_reduction <add>, %198, %cst_91 [1] : vector<8x32xf32> to vector<8xf32>
    %200 = vector.shape_cast %199 : vector<8xf32> to vector<8x1xf32>
    %cst_92 = arith.constant 3.200000e+01 : f32
    %201 = vector.broadcast %cst_92 : f32 to vector<8x1xf32>
    %202 = arith.divf %200, %201 : vector<8x1xf32>
    %cst_93 = arith.constant 9.99999974E-6 : f32
    %203 = vector.broadcast %cst_93 : f32 to vector<8x1xf32>
    %204 = arith.addf %202, %203 : vector<8x1xf32>
    %205 = math.rsqrt %204 : vector<8x1xf32>
    %206 = vector.broadcast %205 : vector<8x1xf32> to vector<8x32xf32>
    %207 = arith.mulf %195, %206 : vector<8x32xf32>
    %208 = vector.broadcast %197 : vector<1x32xf32> to vector<8x32xf32>
    %209 = arith.mulf %207, %208 : vector<8x32xf32>
    %210 = arith.truncf %209 : vector<8x32xf32> to vector<8x32xbf16>
    %c0_94 = arith.constant 0 : index
    %c0_95 = arith.constant 0 : index
    %c0_96 = arith.constant 0 : index
    %211 = vector.load %arg13[%c0_94, %c0_95, %c0_96] : memref<2x32x96xbf16, #tpu.memory_space<vmem>>, vector<1x32x96xbf16>
    %212 = vector.shape_cast %211 : vector<1x32x96xbf16> to vector<32x96xbf16>
    %cst_97 = arith.constant dense<0.000000e+00> : vector<8x96xf32>
    %213 = tpu.matmul %210, %212, %cst_97 {dimension_numbers = #tpu.dot_dimension_numbers<[1], [0], [0], [1], [0, 0, 1, 1], [], []>} : vector<8x32xbf16>, vector<32x96xbf16>, vector<8x96xf32> -> vector<8x96xf32>
    %214 = vector.extract_strided_slice %213 {offsets = [0, 0], sizes = [8, 32], strides = [1, 1]} : vector<8x96xf32> to vector<8x32xf32>
    %215 = arith.truncf %214 : vector<8x32xf32> to vector<8x32xbf16>
    %cst_98 = arith.constant dense<0.000000e+00> : vector<8x32xf32>
    %216 = tpu.matmul %215, %0, %cst_98 {dimension_numbers = #tpu.dot_dimension_numbers<[1], [0], [0], [1], [0, 0, 1, 1], [], []>} : vector<8x32xbf16>, vector<32x32xbf16>, vector<8x32xf32> -> vector<8x32xf32>
    %217 = arith.mulf %214, %3 : vector<8x32xf32>
    %218 = arith.mulf %216, %4 : vector<8x32xf32>
    %219 = arith.addf %217, %218 : vector<8x32xf32>
    %220 = vector.extract_strided_slice %213 {offsets = [0, 32], sizes = [8, 32], strides = [1, 1]} : vector<8x96xf32> to vector<8x32xf32>
    %221 = arith.truncf %220 : vector<8x32xf32> to vector<8x32xbf16>
    %cst_99 = arith.constant dense<0.000000e+00> : vector<8x32xf32>
    %222 = tpu.matmul %221, %0, %cst_99 {dimension_numbers = #tpu.dot_dimension_numbers<[1], [0], [0], [1], [0, 0, 1, 1], [], []>} : vector<8x32xbf16>, vector<32x32xbf16>, vector<8x32xf32> -> vector<8x32xf32>
    %223 = arith.mulf %220, %3 : vector<8x32xf32>
    %224 = arith.mulf %222, %4 : vector<8x32xf32>
    %225 = arith.addf %223, %224 : vector<8x32xf32>
    %226 = vector.extract_strided_slice %213 {offsets = [0, 64], sizes = [8, 32], strides = [1, 1]} : vector<8x96xf32> to vector<8x32xf32>
    %227 = tpu.concatenate %49, %225 in 0 : vector<10x32xf32>, vector<8x32xf32> -> vector<18x32xf32>
    %228 = tpu.concatenate %50, %226 in 0 : vector<10x32xf32>, vector<8x32xf32> -> vector<18x32xf32>
    %229 = tpu.iota {dimensions = array<i32: 1>} : vector<18x32xi32>
    %c0_i32_100 = arith.constant 0 : i32
    %230 = vector.broadcast %c0_i32_100 : i32 to vector<18x32xi32>
    %231 = arith.cmpi sge, %229, %230 : vector<18x32xi32>
    %c8_i32_101 = arith.constant 8 : i32
    %232 = vector.broadcast %c8_i32_101 : i32 to vector<18x32xi32>
    %233 = arith.cmpi slt, %229, %232 : vector<18x32xi32>
    %234 = arith.andi %231, %233 : vector<18x32xi1>
    %cst_102 = arith.constant 1.000000e+00 : f32
    %cst_103 = arith.constant 0.000000e+00 : f32
    %235 = vector.broadcast %cst_102 : f32 to vector<18x32xf32>
    %236 = vector.broadcast %cst_103 : f32 to vector<18x32xf32>
    %237 = arith.select %234, %235, %236 : vector<18x32xi1>, vector<18x32xf32>
    %c8_i32_104 = arith.constant 8 : i32
    %238 = vector.broadcast %c8_i32_104 : i32 to vector<18x32xi32>
    %239 = arith.cmpi sge, %229, %238 : vector<18x32xi32>
    %c16_i32_105 = arith.constant 16 : i32
    %240 = vector.broadcast %c16_i32_105 : i32 to vector<18x32xi32>
    %241 = arith.cmpi slt, %229, %240 : vector<18x32xi32>
    %242 = arith.andi %239, %241 : vector<18x32xi1>
    %cst_106 = arith.constant 1.000000e+00 : f32
    %cst_107 = arith.constant 0.000000e+00 : f32
    %243 = vector.broadcast %cst_106 : f32 to vector<18x32xf32>
    %244 = vector.broadcast %cst_107 : f32 to vector<18x32xf32>
    %245 = arith.select %242, %243, %244 : vector<18x32xi1>, vector<18x32xf32>
    %c16_i32_108 = arith.constant 16 : i32
    %246 = vector.broadcast %c16_i32_108 : i32 to vector<18x32xi32>
    %247 = arith.cmpi sge, %229, %246 : vector<18x32xi32>
    %c24_i32_109 = arith.constant 24 : i32
    %248 = vector.broadcast %c24_i32_109 : i32 to vector<18x32xi32>
    %249 = arith.cmpi slt, %229, %248 : vector<18x32xi32>
    %250 = arith.andi %247, %249 : vector<18x32xi1>
    %cst_110 = arith.constant 1.000000e+00 : f32
    %cst_111 = arith.constant 0.000000e+00 : f32
    %251 = vector.broadcast %cst_110 : f32 to vector<18x32xf32>
    %252 = vector.broadcast %cst_111 : f32 to vector<18x32xf32>
    %253 = arith.select %250, %251, %252 : vector<18x32xi1>, vector<18x32xf32>
    %c24_i32_112 = arith.constant 24 : i32
    %254 = vector.broadcast %c24_i32_112 : i32 to vector<18x32xi32>
    %255 = arith.cmpi sge, %229, %254 : vector<18x32xi32>
    %c32_i32_113 = arith.constant 32 : i32
    %256 = vector.broadcast %c32_i32_113 : i32 to vector<18x32xi32>
    %257 = arith.cmpi slt, %229, %256 : vector<18x32xi32>
    %258 = arith.andi %255, %257 : vector<18x32xi1>
    %cst_114 = arith.constant 1.000000e+00 : f32
    %cst_115 = arith.constant 0.000000e+00 : f32
    %259 = vector.broadcast %cst_114 : f32 to vector<18x32xf32>
    %260 = vector.broadcast %cst_115 : f32 to vector<18x32xf32>
    %261 = arith.select %258, %259, %260 : vector<18x32xi1>, vector<18x32xf32>
    %262 = tpu.concatenate %237, %245, %253, %261 in 0 : vector<18x32xf32>, vector<18x32xf32>, vector<18x32xf32>, vector<18x32xf32> -> vector<72x32xf32>
    %263 = tpu.concatenate %227, %227, %227, %227 in 0 : vector<18x32xf32>, vector<18x32xf32>, vector<18x32xf32>, vector<18x32xf32> -> vector<72x32xf32>
    %264 = arith.mulf %263, %262 : vector<72x32xf32>
    %265 = arith.truncf %264 : vector<72x32xf32> to vector<72x32xbf16>
    %266 = tpu.concatenate %228, %228, %228, %228 in 0 : vector<18x32xf32>, vector<18x32xf32>, vector<18x32xf32>, vector<18x32xf32> -> vector<72x32xf32>
    %267 = arith.mulf %266, %262 : vector<72x32xf32>
    %268 = arith.truncf %267 : vector<72x32xf32> to vector<72x32xbf16>
    %269 = arith.truncf %219 : vector<8x32xf32> to vector<8x32xbf16>
    %cst_116 = arith.constant dense<0.000000e+00> : vector<8x72xf32>
    %270 = tpu.matmul %269, %265, %cst_116 {dimension_numbers = #tpu.dot_dimension_numbers<[1], [1], [0], [0], [0, 0, 1, 0], [], []>} : vector<8x32xbf16>, vector<72x32xbf16>, vector<8x72xf32> -> vector<8x72xf32>
    %cst_117 = arith.constant 0.353553385 : f32
    %271 = vector.broadcast %cst_117 : f32 to vector<8x72xf32>
    %272 = arith.mulf %270, %271 : vector<8x72xf32>
    %273 = arith.addf %272, %193 : vector<8x72xf32>
    %cst_118 = arith.constant dense<0xFF800000> : vector<8xf32>
    %274 = vector.multi_reduction <maximumf>, %273, %cst_118 [1] : vector<8x72xf32> to vector<8xf32>
    %275 = vector.shape_cast %274 : vector<8xf32> to vector<8x1xf32>
    %276 = vector.broadcast %275 : vector<8x1xf32> to vector<8x72xf32>
    %277 = arith.subf %273, %276 : vector<8x72xf32>
    %278 = math.exp %277 : vector<8x72xf32>
    %279 = arith.truncf %278 : vector<8x72xf32> to vector<8x72xbf16>
    %cst_119 = arith.constant dense<0.000000e+00> : vector<8x32xf32>
    %280 = tpu.matmul %279, %268, %cst_119 {dimension_numbers = #tpu.dot_dimension_numbers<[1], [0], [0], [1], [0, 0, 1, 1], [], []>} : vector<8x72xbf16>, vector<72x32xbf16>, vector<8x32xf32> -> vector<8x32xf32>
    %281 = arith.truncf %262 : vector<72x32xf32> to vector<72x32xbf16>
    %cst_120 = arith.constant dense<0.000000e+00> : vector<8x32xf32>
    %282 = tpu.matmul %279, %281, %cst_120 {dimension_numbers = #tpu.dot_dimension_numbers<[1], [0], [0], [1], [0, 0, 1, 1], [], []>} : vector<8x72xbf16>, vector<72x32xbf16>, vector<8x32xf32> -> vector<8x32xf32>
    %283 = tpu.reciprocal %282 {approx = true} : vector<8x32xf32> -> vector<8x32xf32>
    %284 = arith.mulf %280, %283 : vector<8x32xf32>
    %285 = arith.truncf %284 : vector<8x32xf32> to vector<8x32xbf16>
    %c0_121 = arith.constant 0 : index
    %c0_122 = arith.constant 0 : index
    %c0_123 = arith.constant 0 : index
    %286 = vector.load %arg14[%c0_121, %c0_122, %c0_123] : memref<2x32x32xbf16, #tpu.memory_space<vmem>>, vector<1x32x32xbf16>
    %287 = vector.shape_cast %286 : vector<1x32x32xbf16> to vector<32x32xbf16>
    %cst_124 = arith.constant dense<0.000000e+00> : vector<8x32xf32>
    %288 = tpu.matmul %285, %287, %cst_124 {dimension_numbers = #tpu.dot_dimension_numbers<[1], [0], [0], [1], [0, 0, 1, 1], [], []>} : vector<8x32xbf16>, vector<32x32xbf16>, vector<8x32xf32> -> vector<8x32xf32>
    %289 = arith.addf %195, %288 : vector<8x32xf32>
    %c0_125 = arith.constant 0 : index
    %c0_126 = arith.constant 0 : index
    %c0_127 = arith.constant 0 : index
    %290 = vector.load %arg12[%c0_125, %c0_126, %c0_127] : memref<2x1x32xf32, #tpu.memory_space<vmem>>, vector<1x1x32xf32>
    %291 = vector.shape_cast %290 : vector<1x1x32xf32> to vector<1x32xf32>
    %292 = arith.mulf %289, %289 : vector<8x32xf32>
    %cst_128 = arith.constant dense<0.000000e+00> : vector<8xf32>
    %293 = vector.multi_reduction <add>, %292, %cst_128 [1] : vector<8x32xf32> to vector<8xf32>
    %294 = vector.shape_cast %293 : vector<8xf32> to vector<8x1xf32>
    %cst_129 = arith.constant 3.200000e+01 : f32
    %295 = vector.broadcast %cst_129 : f32 to vector<8x1xf32>
    %296 = arith.divf %294, %295 : vector<8x1xf32>
    %cst_130 = arith.constant 9.99999974E-6 : f32
    %297 = vector.broadcast %cst_130 : f32 to vector<8x1xf32>
    %298 = arith.addf %296, %297 : vector<8x1xf32>
    %299 = math.rsqrt %298 : vector<8x1xf32>
    %300 = vector.broadcast %299 : vector<8x1xf32> to vector<8x32xf32>
    %301 = arith.mulf %289, %300 : vector<8x32xf32>
    %302 = vector.broadcast %291 : vector<1x32xf32> to vector<8x32xf32>
    %303 = arith.mulf %301, %302 : vector<8x32xf32>
    %304 = arith.truncf %303 : vector<8x32xf32> to vector<8x32xbf16>
    %c0_131 = arith.constant 0 : index
    %c0_132 = arith.constant 0 : index
    %c0_133 = arith.constant 0 : index
    %305 = vector.load %arg15[%c0_131, %c0_132, %c0_133] : memref<2x32x128xbf16, #tpu.memory_space<vmem>>, vector<1x32x128xbf16>
    %306 = vector.shape_cast %305 : vector<1x32x128xbf16> to vector<32x128xbf16>
    %cst_134 = arith.constant dense<0.000000e+00> : vector<8x128xf32>
    %307 = tpu.matmul %304, %306, %cst_134 {dimension_numbers = #tpu.dot_dimension_numbers<[1], [0], [0], [1], [0, 0, 1, 1], [], []>} : vector<8x32xbf16>, vector<32x128xbf16>, vector<8x128xf32> -> vector<8x128xf32>
    %308 = vector.extract_strided_slice %307 {offsets = [0, 0], sizes = [8, 64], strides = [1, 1]} : vector<8x128xf32> to vector<8x64xf32>
    %309 = vector.extract_strided_slice %307 {offsets = [0, 64], sizes = [8, 64], strides = [1, 1]} : vector<8x128xf32> to vector<8x64xf32>
    %cst_135 = arith.constant 0.000000e+00 : f32
    %310 = vector.broadcast %cst_135 : f32 to vector<8x64xf32>
    %311 = arith.subf %310, %308 : vector<8x64xf32>
    %312 = math.exp %311 : vector<8x64xf32>
    %cst_136 = arith.constant 1.000000e+00 : f32
    %313 = vector.broadcast %cst_136 : f32 to vector<8x64xf32>
    %314 = arith.addf %313, %312 : vector<8x64xf32>
    %cst_137 = arith.constant 1.000000e+00 : f32
    %315 = vector.broadcast %cst_137 : f32 to vector<8x64xf32>
    %316 = arith.divf %315, %314 : vector<8x64xf32>
    %317 = arith.mulf %308, %316 : vector<8x64xf32>
    %318 = arith.mulf %317, %309 : vector<8x64xf32>
    %319 = arith.truncf %318 : vector<8x64xf32> to vector<8x64xbf16>
    %c0_138 = arith.constant 0 : index
    %c0_139 = arith.constant 0 : index
    %c0_140 = arith.constant 0 : index
    %320 = vector.load %arg16[%c0_138, %c0_139, %c0_140] : memref<2x64x32xbf16, #tpu.memory_space<vmem>>, vector<1x64x32xbf16>
    %321 = vector.shape_cast %320 : vector<1x64x32xbf16> to vector<64x32xbf16>
    %cst_141 = arith.constant dense<0.000000e+00> : vector<8x32xf32>
    %322 = tpu.matmul %319, %321, %cst_141 {dimension_numbers = #tpu.dot_dimension_numbers<[1], [0], [0], [1], [0, 0, 1, 1], [], []>} : vector<8x64xbf16>, vector<64x32xbf16>, vector<8x32xf32> -> vector<8x32xf32>
    %323 = arith.addf %289, %322 : vector<8x32xf32>
    %c1_142 = arith.constant 1 : index
    %c0_143 = arith.constant 0 : index
    %c0_144 = arith.constant 0 : index
    %324 = vector.load %arg11[%c1_142, %c0_143, %c0_144] : memref<2x1x32xf32, #tpu.memory_space<vmem>>, vector<1x1x32xf32>
    %325 = vector.shape_cast %324 : vector<1x1x32xf32> to vector<1x32xf32>
    %326 = arith.mulf %323, %323 : vector<8x32xf32>
    %cst_145 = arith.constant dense<0.000000e+00> : vector<8xf32>
    %327 = vector.multi_reduction <add>, %326, %cst_145 [1] : vector<8x32xf32> to vector<8xf32>
    %328 = vector.shape_cast %327 : vector<8xf32> to vector<8x1xf32>
    %cst_146 = arith.constant 3.200000e+01 : f32
    %329 = vector.broadcast %cst_146 : f32 to vector<8x1xf32>
    %330 = arith.divf %328, %329 : vector<8x1xf32>
    %cst_147 = arith.constant 9.99999974E-6 : f32
    %331 = vector.broadcast %cst_147 : f32 to vector<8x1xf32>
    %332 = arith.addf %330, %331 : vector<8x1xf32>
    %333 = math.rsqrt %332 : vector<8x1xf32>
    %334 = vector.broadcast %333 : vector<8x1xf32> to vector<8x32xf32>
    %335 = arith.mulf %323, %334 : vector<8x32xf32>
    %336 = vector.broadcast %325 : vector<1x32xf32> to vector<8x32xf32>
    %337 = arith.mulf %335, %336 : vector<8x32xf32>
    %338 = arith.truncf %337 : vector<8x32xf32> to vector<8x32xbf16>
    %c1_148 = arith.constant 1 : index
    %c0_149 = arith.constant 0 : index
    %c0_150 = arith.constant 0 : index
    %339 = vector.load %arg13[%c1_148, %c0_149, %c0_150] : memref<2x32x96xbf16, #tpu.memory_space<vmem>>, vector<1x32x96xbf16>
    %340 = vector.shape_cast %339 : vector<1x32x96xbf16> to vector<32x96xbf16>
    %cst_151 = arith.constant dense<0.000000e+00> : vector<8x96xf32>
    %341 = tpu.matmul %338, %340, %cst_151 {dimension_numbers = #tpu.dot_dimension_numbers<[1], [0], [0], [1], [0, 0, 1, 1], [], []>} : vector<8x32xbf16>, vector<32x96xbf16>, vector<8x96xf32> -> vector<8x96xf32>
    %342 = vector.extract_strided_slice %341 {offsets = [0, 0], sizes = [8, 32], strides = [1, 1]} : vector<8x96xf32> to vector<8x32xf32>
    %343 = arith.truncf %342 : vector<8x32xf32> to vector<8x32xbf16>
    %cst_152 = arith.constant dense<0.000000e+00> : vector<8x32xf32>
    %344 = tpu.matmul %343, %0, %cst_152 {dimension_numbers = #tpu.dot_dimension_numbers<[1], [0], [0], [1], [0, 0, 1, 1], [], []>} : vector<8x32xbf16>, vector<32x32xbf16>, vector<8x32xf32> -> vector<8x32xf32>
    %345 = arith.mulf %342, %3 : vector<8x32xf32>
    %346 = arith.mulf %344, %4 : vector<8x32xf32>
    %347 = arith.addf %345, %346 : vector<8x32xf32>
    %348 = vector.extract_strided_slice %341 {offsets = [0, 32], sizes = [8, 32], strides = [1, 1]} : vector<8x96xf32> to vector<8x32xf32>
    %349 = arith.truncf %348 : vector<8x32xf32> to vector<8x32xbf16>
    %cst_153 = arith.constant dense<0.000000e+00> : vector<8x32xf32>
    %350 = tpu.matmul %349, %0, %cst_153 {dimension_numbers = #tpu.dot_dimension_numbers<[1], [0], [0], [1], [0, 0, 1, 1], [], []>} : vector<8x32xbf16>, vector<32x32xbf16>, vector<8x32xf32> -> vector<8x32xf32>
    %351 = arith.mulf %348, %3 : vector<8x32xf32>
    %352 = arith.mulf %350, %4 : vector<8x32xf32>
    %353 = arith.addf %351, %352 : vector<8x32xf32>
    %354 = vector.extract_strided_slice %341 {offsets = [0, 64], sizes = [8, 32], strides = [1, 1]} : vector<8x96xf32> to vector<8x32xf32>
    %355 = tpu.concatenate %169, %353 in 0 : vector<10x32xf32>, vector<8x32xf32> -> vector<18x32xf32>
    %356 = tpu.concatenate %170, %354 in 0 : vector<10x32xf32>, vector<8x32xf32> -> vector<18x32xf32>
    %357 = tpu.iota {dimensions = array<i32: 1>} : vector<18x32xi32>
    %c0_i32_154 = arith.constant 0 : i32
    %358 = vector.broadcast %c0_i32_154 : i32 to vector<18x32xi32>
    %359 = arith.cmpi sge, %357, %358 : vector<18x32xi32>
    %c8_i32_155 = arith.constant 8 : i32
    %360 = vector.broadcast %c8_i32_155 : i32 to vector<18x32xi32>
    %361 = arith.cmpi slt, %357, %360 : vector<18x32xi32>
    %362 = arith.andi %359, %361 : vector<18x32xi1>
    %cst_156 = arith.constant 1.000000e+00 : f32
    %cst_157 = arith.constant 0.000000e+00 : f32
    %363 = vector.broadcast %cst_156 : f32 to vector<18x32xf32>
    %364 = vector.broadcast %cst_157 : f32 to vector<18x32xf32>
    %365 = arith.select %362, %363, %364 : vector<18x32xi1>, vector<18x32xf32>
    %c8_i32_158 = arith.constant 8 : i32
    %366 = vector.broadcast %c8_i32_158 : i32 to vector<18x32xi32>
    %367 = arith.cmpi sge, %357, %366 : vector<18x32xi32>
    %c16_i32_159 = arith.constant 16 : i32
    %368 = vector.broadcast %c16_i32_159 : i32 to vector<18x32xi32>
    %369 = arith.cmpi slt, %357, %368 : vector<18x32xi32>
    %370 = arith.andi %367, %369 : vector<18x32xi1>
    %cst_160 = arith.constant 1.000000e+00 : f32
    %cst_161 = arith.constant 0.000000e+00 : f32
    %371 = vector.broadcast %cst_160 : f32 to vector<18x32xf32>
    %372 = vector.broadcast %cst_161 : f32 to vector<18x32xf32>
    %373 = arith.select %370, %371, %372 : vector<18x32xi1>, vector<18x32xf32>
    %c16_i32_162 = arith.constant 16 : i32
    %374 = vector.broadcast %c16_i32_162 : i32 to vector<18x32xi32>
    %375 = arith.cmpi sge, %357, %374 : vector<18x32xi32>
    %c24_i32_163 = arith.constant 24 : i32
    %376 = vector.broadcast %c24_i32_163 : i32 to vector<18x32xi32>
    %377 = arith.cmpi slt, %357, %376 : vector<18x32xi32>
    %378 = arith.andi %375, %377 : vector<18x32xi1>
    %cst_164 = arith.constant 1.000000e+00 : f32
    %cst_165 = arith.constant 0.000000e+00 : f32
    %379 = vector.broadcast %cst_164 : f32 to vector<18x32xf32>
    %380 = vector.broadcast %cst_165 : f32 to vector<18x32xf32>
    %381 = arith.select %378, %379, %380 : vector<18x32xi1>, vector<18x32xf32>
    %c24_i32_166 = arith.constant 24 : i32
    %382 = vector.broadcast %c24_i32_166 : i32 to vector<18x32xi32>
    %383 = arith.cmpi sge, %357, %382 : vector<18x32xi32>
    %c32_i32_167 = arith.constant 32 : i32
    %384 = vector.broadcast %c32_i32_167 : i32 to vector<18x32xi32>
    %385 = arith.cmpi slt, %357, %384 : vector<18x32xi32>
    %386 = arith.andi %383, %385 : vector<18x32xi1>
    %cst_168 = arith.constant 1.000000e+00 : f32
    %cst_169 = arith.constant 0.000000e+00 : f32
    %387 = vector.broadcast %cst_168 : f32 to vector<18x32xf32>
    %388 = vector.broadcast %cst_169 : f32 to vector<18x32xf32>
    %389 = arith.select %386, %387, %388 : vector<18x32xi1>, vector<18x32xf32>
    %390 = tpu.concatenate %365, %373, %381, %389 in 0 : vector<18x32xf32>, vector<18x32xf32>, vector<18x32xf32>, vector<18x32xf32> -> vector<72x32xf32>
    %391 = tpu.concatenate %355, %355, %355, %355 in 0 : vector<18x32xf32>, vector<18x32xf32>, vector<18x32xf32>, vector<18x32xf32> -> vector<72x32xf32>
    %392 = arith.mulf %391, %390 : vector<72x32xf32>
    %393 = arith.truncf %392 : vector<72x32xf32> to vector<72x32xbf16>
    %394 = tpu.concatenate %356, %356, %356, %356 in 0 : vector<18x32xf32>, vector<18x32xf32>, vector<18x32xf32>, vector<18x32xf32> -> vector<72x32xf32>
    %395 = arith.mulf %394, %390 : vector<72x32xf32>
    %396 = arith.truncf %395 : vector<72x32xf32> to vector<72x32xbf16>
    %397 = arith.truncf %347 : vector<8x32xf32> to vector<8x32xbf16>
    %cst_170 = arith.constant dense<0.000000e+00> : vector<8x72xf32>
    %398 = tpu.matmul %397, %393, %cst_170 {dimension_numbers = #tpu.dot_dimension_numbers<[1], [1], [0], [0], [0, 0, 1, 0], [], []>} : vector<8x32xbf16>, vector<72x32xbf16>, vector<8x72xf32> -> vector<8x72xf32>
    %cst_171 = arith.constant 0.353553385 : f32
    %399 = vector.broadcast %cst_171 : f32 to vector<8x72xf32>
    %400 = arith.mulf %398, %399 : vector<8x72xf32>
    %401 = arith.addf %400, %193 : vector<8x72xf32>
    %cst_172 = arith.constant dense<0xFF800000> : vector<8xf32>
    %402 = vector.multi_reduction <maximumf>, %401, %cst_172 [1] : vector<8x72xf32> to vector<8xf32>
    %403 = vector.shape_cast %402 : vector<8xf32> to vector<8x1xf32>
    %404 = vector.broadcast %403 : vector<8x1xf32> to vector<8x72xf32>
    %405 = arith.subf %401, %404 : vector<8x72xf32>
    %406 = math.exp %405 : vector<8x72xf32>
    %407 = arith.truncf %406 : vector<8x72xf32> to vector<8x72xbf16>
    %cst_173 = arith.constant dense<0.000000e+00> : vector<8x32xf32>
    %408 = tpu.matmul %407, %396, %cst_173 {dimension_numbers = #tpu.dot_dimension_numbers<[1], [0], [0], [1], [0, 0, 1, 1], [], []>} : vector<8x72xbf16>, vector<72x32xbf16>, vector<8x32xf32> -> vector<8x32xf32>
    %409 = arith.truncf %390 : vector<72x32xf32> to vector<72x32xbf16>
    %cst_174 = arith.constant dense<0.000000e+00> : vector<8x32xf32>
    %410 = tpu.matmul %407, %409, %cst_174 {dimension_numbers = #tpu.dot_dimension_numbers<[1], [0], [0], [1], [0, 0, 1, 1], [], []>} : vector<8x72xbf16>, vector<72x32xbf16>, vector<8x32xf32> -> vector<8x32xf32>
    %411 = tpu.reciprocal %410 {approx = true} : vector<8x32xf32> -> vector<8x32xf32>
    %412 = arith.mulf %408, %411 : vector<8x32xf32>
    %413 = arith.truncf %412 : vector<8x32xf32> to vector<8x32xbf16>
    %c1_175 = arith.constant 1 : index
    %c0_176 = arith.constant 0 : index
    %c0_177 = arith.constant 0 : index
    %414 = vector.load %arg14[%c1_175, %c0_176, %c0_177] : memref<2x32x32xbf16, #tpu.memory_space<vmem>>, vector<1x32x32xbf16>
    %415 = vector.shape_cast %414 : vector<1x32x32xbf16> to vector<32x32xbf16>
    %cst_178 = arith.constant dense<0.000000e+00> : vector<8x32xf32>
    %416 = tpu.matmul %413, %415, %cst_178 {dimension_numbers = #tpu.dot_dimension_numbers<[1], [0], [0], [1], [0, 0, 1, 1], [], []>} : vector<8x32xbf16>, vector<32x32xbf16>, vector<8x32xf32> -> vector<8x32xf32>
    %417 = arith.addf %323, %416 : vector<8x32xf32>
    %c1_179 = arith.constant 1 : index
    %c0_180 = arith.constant 0 : index
    %c0_181 = arith.constant 0 : index
    %418 = vector.load %arg12[%c1_179, %c0_180, %c0_181] : memref<2x1x32xf32, #tpu.memory_space<vmem>>, vector<1x1x32xf32>
    %419 = vector.shape_cast %418 : vector<1x1x32xf32> to vector<1x32xf32>
    %420 = arith.mulf %417, %417 : vector<8x32xf32>
    %cst_182 = arith.constant dense<0.000000e+00> : vector<8xf32>
    %421 = vector.multi_reduction <add>, %420, %cst_182 [1] : vector<8x32xf32> to vector<8xf32>
    %422 = vector.shape_cast %421 : vector<8xf32> to vector<8x1xf32>
    %cst_183 = arith.constant 3.200000e+01 : f32
    %423 = vector.broadcast %cst_183 : f32 to vector<8x1xf32>
    %424 = arith.divf %422, %423 : vector<8x1xf32>
    %cst_184 = arith.constant 9.99999974E-6 : f32
    %425 = vector.broadcast %cst_184 : f32 to vector<8x1xf32>
    %426 = arith.addf %424, %425 : vector<8x1xf32>
    %427 = math.rsqrt %426 : vector<8x1xf32>
    %428 = vector.broadcast %427 : vector<8x1xf32> to vector<8x32xf32>
    %429 = arith.mulf %417, %428 : vector<8x32xf32>
    %430 = vector.broadcast %419 : vector<1x32xf32> to vector<8x32xf32>
    %431 = arith.mulf %429, %430 : vector<8x32xf32>
    %432 = arith.truncf %431 : vector<8x32xf32> to vector<8x32xbf16>
    %c1_185 = arith.constant 1 : index
    %c0_186 = arith.constant 0 : index
    %c0_187 = arith.constant 0 : index
    %433 = vector.load %arg15[%c1_185, %c0_186, %c0_187] : memref<2x32x128xbf16, #tpu.memory_space<vmem>>, vector<1x32x128xbf16>
    %434 = vector.shape_cast %433 : vector<1x32x128xbf16> to vector<32x128xbf16>
    %cst_188 = arith.constant dense<0.000000e+00> : vector<8x128xf32>
    %435 = tpu.matmul %432, %434, %cst_188 {dimension_numbers = #tpu.dot_dimension_numbers<[1], [0], [0], [1], [0, 0, 1, 1], [], []>} : vector<8x32xbf16>, vector<32x128xbf16>, vector<8x128xf32> -> vector<8x128xf32>
    %436 = vector.extract_strided_slice %435 {offsets = [0, 0], sizes = [8, 64], strides = [1, 1]} : vector<8x128xf32> to vector<8x64xf32>
    %437 = vector.extract_strided_slice %435 {offsets = [0, 64], sizes = [8, 64], strides = [1, 1]} : vector<8x128xf32> to vector<8x64xf32>
    %cst_189 = arith.constant 0.000000e+00 : f32
    %438 = vector.broadcast %cst_189 : f32 to vector<8x64xf32>
    %439 = arith.subf %438, %436 : vector<8x64xf32>
    %440 = math.exp %439 : vector<8x64xf32>
    %cst_190 = arith.constant 1.000000e+00 : f32
    %441 = vector.broadcast %cst_190 : f32 to vector<8x64xf32>
    %442 = arith.addf %441, %440 : vector<8x64xf32>
    %cst_191 = arith.constant 1.000000e+00 : f32
    %443 = vector.broadcast %cst_191 : f32 to vector<8x64xf32>
    %444 = arith.divf %443, %442 : vector<8x64xf32>
    %445 = arith.mulf %436, %444 : vector<8x64xf32>
    %446 = arith.mulf %445, %437 : vector<8x64xf32>
    %447 = arith.truncf %446 : vector<8x64xf32> to vector<8x64xbf16>
    %c1_192 = arith.constant 1 : index
    %c0_193 = arith.constant 0 : index
    %c0_194 = arith.constant 0 : index
    %448 = vector.load %arg16[%c1_192, %c0_193, %c0_194] : memref<2x64x32xbf16, #tpu.memory_space<vmem>>, vector<1x64x32xbf16>
    %449 = vector.shape_cast %448 : vector<1x64x32xbf16> to vector<64x32xbf16>
    %cst_195 = arith.constant dense<0.000000e+00> : vector<8x32xf32>
    %450 = tpu.matmul %447, %449, %cst_195 {dimension_numbers = #tpu.dot_dimension_numbers<[1], [0], [0], [1], [0, 0, 1, 1], [], []>} : vector<8x64xbf16>, vector<64x32xbf16>, vector<8x32xf32> -> vector<8x32xf32>
    %451 = arith.addf %417, %450 : vector<8x32xf32>
    %c0_196 = arith.constant 0 : index
    %c0_197 = arith.constant 0 : index
    %452 = vector.load %arg17[%c0_196, %c0_197] : memref<1x32xf32, #tpu.memory_space<vmem>>, vector<1x32xf32>
    %453 = arith.mulf %451, %451 : vector<8x32xf32>
    %cst_198 = arith.constant dense<0.000000e+00> : vector<8xf32>
    %454 = vector.multi_reduction <add>, %453, %cst_198 [1] : vector<8x32xf32> to vector<8xf32>
    %455 = vector.shape_cast %454 : vector<8xf32> to vector<8x1xf32>
    %cst_199 = arith.constant 3.200000e+01 : f32
    %456 = vector.broadcast %cst_199 : f32 to vector<8x1xf32>
    %457 = arith.divf %455, %456 : vector<8x1xf32>
    %cst_200 = arith.constant 9.99999974E-6 : f32
    %458 = vector.broadcast %cst_200 : f32 to vector<8x1xf32>
    %459 = arith.addf %457, %458 : vector<8x1xf32>
    %460 = math.rsqrt %459 : vector<8x1xf32>
    %461 = vector.broadcast %460 : vector<8x1xf32> to vector<8x32xf32>
    %462 = arith.mulf %451, %461 : vector<8x32xf32>
    %463 = vector.broadcast %452 : vector<1x32xf32> to vector<8x32xf32>
    %464 = arith.mulf %462, %463 : vector<8x32xf32>
    %465 = arith.truncf %464 : vector<8x32xf32> to vector<8x32xbf16>
    %c0_201 = arith.constant 0 : index
    %c0_202 = arith.constant 0 : index
    %466 = vector.load %arg18[%c0_201, %c0_202] : memref<32x128xbf16, #tpu.memory_space<vmem>>, vector<32x128xbf16>
    %cst_203 = arith.constant dense<0.000000e+00> : vector<8x128xf32>
    %467 = tpu.matmul %465, %466, %cst_203 {dimension_numbers = #tpu.dot_dimension_numbers<[1], [0], [0], [1], [0, 0, 1, 1], [], []>} : vector<8x32xbf16>, vector<32x128xbf16>, vector<8x128xf32> -> vector<8x128xf32>
    %c0_204 = arith.constant 0 : index
    %c0_205 = arith.constant 0 : index
    %c0_206 = arith.constant 0 : index
    %468 = vector.load %arg19[%c0_204, %c0_205, %c0_206] : memref<1x8x128xf32, #tpu.memory_space<vmem>>, vector<1x8x128xf32>
    %469 = vector.shape_cast %468 : vector<1x8x128xf32> to vector<8x128xf32>
    %470 = vector.shape_cast %467 : vector<8x128xf32> to vector<1x8x128xf32>
    tpu.vector_store %arg19[%c0_204, %c0_205, %c0_206], %470 {strides = array<i32>} : memref<1x8x128xf32, #tpu.memory_space<vmem>>, vector<1x8x128xf32>,
    %471 = tpu.iota {dimensions = array<i32: 1>} : vector<8x128xi32>
    %c64_i32 = arith.constant 64 : i32
    %472 = vector.broadcast %c64_i32 : i32 to vector<8x128xi32>
    %473 = arith.cmpi slt, %471, %472 : vector<8x128xi32>
    %cst_207 = arith.constant -1.000000e+09 : f32
    %474 = vector.broadcast %cst_207 : f32 to vector<8x128xf32>
    %475 = arith.select %473, %467, %474 : vector<8x128xi1>, vector<8x128xf32>
    %c0_208 = arith.constant 0 : index
    %c0_209 = arith.constant 0 : index
    %c0_210 = arith.constant 0 : index
    %476 = vector.load %arg5[%c0_208, %c0_209, %c0_210] : memref<1x8x1xi32, #tpu.memory_space<vmem>>, vector<1x8x1xi32>
    %477 = vector.shape_cast %476 : vector<1x8x1xi32> to vector<8x1xi32>
    %cst_211 = arith.constant dense<0xFF800000> : vector<8xf32>
    %478 = vector.multi_reduction <maximumf>, %475, %cst_211 [1] : vector<8x128xf32> to vector<8xf32>
    %479 = vector.shape_cast %478 : vector<8xf32> to vector<8x1xf32>
    %480 = vector.broadcast %479 : vector<8x1xf32> to vector<8x128xf32>
    %481 = arith.subf %475, %480 : vector<8x128xf32>
    %482 = math.exp %481 : vector<8x128xf32>
    %cst_212 = arith.constant dense<0.000000e+00> : vector<8xf32>
    %483 = vector.multi_reduction <add>, %482, %cst_212 [1] : vector<8x128xf32> to vector<8xf32>
    %484 = vector.shape_cast %483 : vector<8xf32> to vector<8x1xf32>
    %485 = math.log %484 : vector<8x1xf32>
    %486 = arith.addf %485, %479 : vector<8x1xf32>
    %487 = vector.broadcast %477 : vector<8x1xi32> to vector<8x128xi32>
    %488 = arith.cmpi eq, %471, %487 : vector<8x128xi32>
    %cst_213 = arith.constant 0.000000e+00 : f32
    %489 = vector.broadcast %cst_213 : f32 to vector<8x128xf32>
    %490 = arith.select %488, %475, %489 : vector<8x128xi1>, vector<8x128xf32>
    %cst_214 = arith.constant dense<0.000000e+00> : vector<8xf32>
    %491 = vector.multi_reduction <add>, %490, %cst_214 [1] : vector<8x128xf32> to vector<8xf32>
    %492 = vector.shape_cast %491 : vector<8xf32> to vector<8x1xf32>
    %c-100_i32 = arith.constant -100 : i32
    %493 = vector.broadcast %c-100_i32 : i32 to vector<8x1xi32>
    %494 = arith.cmpi ne, %477, %493 : vector<8x1xi32>
    %495 = arith.extui %494 : vector<8x1xi1> to vector<8x1xi32>
    %496 = arith.sitofp %495 : vector<8x1xi32> to vector<8x1xf32>
    %497 = arith.subf %486, %492 : vector<8x1xf32>
    %498 = arith.mulf %497, %496 : vector<8x1xf32>
    %499 = vector.shape_cast %498 : vector<8x1xf32> to vector<1x8x1xf32>
    %cst_215 = arith.constant dense<0.000000e+00> : vector<1xf32>
    %500 = vector.multi_reduction <add>, %499, %cst_215 [1, 2] : vector<1x8x1xf32> to vector<1xf32>
    %501 = vector.shape_cast %500 : vector<1xf32> to vector<1x1x1xf32>
    %502 = vector.extract %501[0, 0, 0] : f32 from vector<1x1x1xf32>
    %503 = vector.shape_cast %496 : vector<8x1xf32> to vector<1x8x1xf32>
    %cst_216 = arith.constant dense<0.000000e+00> : vector<1xf32>
    %504 = vector.multi_reduction <add>, %503, %cst_216 [1, 2] : vector<1x8x1xf32> to vector<1xf32>
    %505 = vector.shape_cast %504 : vector<1xf32> to vector<1x1x1xf32>
    %506 = vector.extract %505[0, 0, 0] : f32 from vector<1x1x1xf32>
    %507 = tpu.iota {dimensions = array<i32: 1>} : vector<1x128xi32>
    %c0_i32_217 = arith.constant 0 : i32
    %508 = vector.broadcast %c0_i32_217 : i32 to vector<1x128xi32>
    %509 = arith.cmpi eq, %507, %508 : vector<1x128xi32>
    %c1_i32 = arith.constant 1 : i32
    %510 = vector.broadcast %c1_i32 : i32 to vector<1x128xi32>
    %511 = arith.cmpi eq, %507, %510 : vector<1x128xi32>
    %cst_218 = arith.constant 0.000000e+00 : f32
    %512 = vector.broadcast %506 : f32 to vector<1x128xf32>
    %513 = vector.broadcast %cst_218 : f32 to vector<1x128xf32>
    %514 = arith.select %511, %512, %513 : vector<1x128xi1>, vector<1x128xf32>
    %515 = vector.broadcast %502 : f32 to vector<1x128xf32>
    %516 = arith.select %509, %515, %514 : vector<1x128xi1>, vector<1x128xf32>
    %c0_219 = arith.constant 0 : index
    %c0_220 = arith.constant 0 : index
    %c0_221 = arith.constant 0 : index
    %517 = vector.load %arg20[%c0_219, %c0_220, %c0_221] : memref<1x1x128xf32, #tpu.memory_space<vmem>>, vector<1x1x128xf32>
    %518 = vector.shape_cast %517 : vector<1x1x128xf32> to vector<1x128xf32>
    %519 = vector.shape_cast %516 : vector<1x128xf32> to vector<1x1x128xf32>
    tpu.vector_store %arg20[%c0_219, %c0_220, %c0_221], %519 {strides = array<i32>} : memref<1x1x128xf32, #tpu.memory_space<vmem>>, vector<1x1x128xf32>,
    return
  }
  func.func @transform_0(%arg0: i32) -> (i32, i32, i32) {
    %c0_i32 = arith.constant 0 : i32
    %c0_i32_0 = arith.constant 0 : i32
    %c0_i32_1 = arith.constant 0 : i32
    return %arg0, %c0_i32, %c0_i32_0 : i32, i32, i32
  }
  func.func @transform_1(%arg0: i32) -> (i32, i32, i32) {
    %c0_i32 = arith.constant 0 : i32
    %c0_i32_0 = arith.constant 0 : i32
    %c0_i32_1 = arith.constant 0 : i32
    return %arg0, %c0_i32, %c0_i32_0 : i32, i32, i32
  }
  func.func @transform_2(%arg0: i32) -> (i32, i32, i32) {
    %c0_i32 = arith.constant 0 : i32
    %c0_i32_0 = arith.constant 0 : i32
    %c0_i32_1 = arith.constant 0 : i32
    return %arg0, %c0_i32, %c0_i32_0 : i32, i32, i32
  }
  func.func @transform_3(%arg0: i32) -> (i32, i32, i32) {
    %c0_i32 = arith.constant 0 : i32
    %c0_i32_0 = arith.constant 0 : i32
    %c0_i32_1 = arith.constant 0 : i32
    return %arg0, %c0_i32, %c0_i32_0 : i32, i32, i32
  }
  func.func @transform_4(%arg0: i32) -> (i32, i32, i32) {
    %c0_i32 = arith.constant 0 : i32
    %c0_i32_0 = arith.constant 0 : i32
    %c0_i32_1 = arith.constant 0 : i32
    return %arg0, %c0_i32, %c0_i32_0 : i32, i32, i32
  }
  func.func @transform_5(%arg0: i32) -> (i32, i32) {
    %c0_i32 = arith.constant 0 : i32
    %c0_i32_0 = arith.constant 0 : i32
    %c0_i32_1 = arith.constant 0 : i32
    return %c0_i32, %c0_i32_0 : i32, i32
  }
  func.func @transform_6(%arg0: i32) -> (i32, i32) {
    %c0_i32 = arith.constant 0 : i32
    %c0_i32_0 = arith.constant 0 : i32
    %c0_i32_1 = arith.constant 0 : i32
    return %c0_i32, %c0_i32_0 : i32, i32
  }
  func.func @transform_7(%arg0: i32) -> (i32, i32) {
    %c0_i32 = arith.constant 0 : i32
    %c0_i32_0 = arith.constant 0 : i32
    %c0_i32_1 = arith.constant 0 : i32
    return %c0_i32, %c0_i32_0 : i32, i32
  }
  func.func @transform_8(%arg0: i32) -> (i32, i32) {
    %c0_i32 = arith.constant 0 : i32
    %c0_i32_0 = arith.constant 0 : i32
    %c0_i32_1 = arith.constant 0 : i32
    return %c0_i32, %c0_i32_0 : i32, i32
  }
  func.func @transform_9(%arg0: i32) -> (i32, i32) {
    %c0_i32 = arith.constant 0 : i32
    %c0_i32_0 = arith.constant 0 : i32
    %c0_i32_1 = arith.constant 0 : i32
    return %c0_i32, %c0_i32_0 : i32, i32
  }
  func.func @transform_10(%arg0: i32) -> (i32, i32, i32) {
    %c0_i32 = arith.constant 0 : i32
    %c0_i32_0 = arith.constant 0 : i32
    %c0_i32_1 = arith.constant 0 : i32
    %c0_i32_2 = arith.constant 0 : i32
    return %c0_i32, %c0_i32_0, %c0_i32_1 : i32, i32, i32
  }
  func.func @transform_11(%arg0: i32) -> (i32, i32, i32) {
    %c0_i32 = arith.constant 0 : i32
    %c0_i32_0 = arith.constant 0 : i32
    %c0_i32_1 = arith.constant 0 : i32
    %c0_i32_2 = arith.constant 0 : i32
    return %c0_i32, %c0_i32_0, %c0_i32_1 : i32, i32, i32
  }
  func.func @transform_12(%arg0: i32) -> (i32, i32, i32) {
    %c0_i32 = arith.constant 0 : i32
    %c0_i32_0 = arith.constant 0 : i32
    %c0_i32_1 = arith.constant 0 : i32
    %c0_i32_2 = arith.constant 0 : i32
    return %c0_i32, %c0_i32_0, %c0_i32_1 : i32, i32, i32
  }
  func.func @transform_13(%arg0: i32) -> (i32, i32, i32) {
    %c0_i32 = arith.constant 0 : i32
    %c0_i32_0 = arith.constant 0 : i32
    %c0_i32_1 = arith.constant 0 : i32
    %c0_i32_2 = arith.constant 0 : i32
    return %c0_i32, %c0_i32_0, %c0_i32_1 : i32, i32, i32
  }
  func.func @transform_14(%arg0: i32) -> (i32, i32, i32) {
    %c0_i32 = arith.constant 0 : i32
    %c0_i32_0 = arith.constant 0 : i32
    %c0_i32_1 = arith.constant 0 : i32
    %c0_i32_2 = arith.constant 0 : i32
    return %c0_i32, %c0_i32_0, %c0_i32_1 : i32, i32, i32
  }
  func.func @transform_15(%arg0: i32) -> (i32, i32, i32) {
    %c0_i32 = arith.constant 0 : i32
    %c0_i32_0 = arith.constant 0 : i32
    %c0_i32_1 = arith.constant 0 : i32
    %c0_i32_2 = arith.constant 0 : i32
    return %c0_i32, %c0_i32_0, %c0_i32_1 : i32, i32, i32
  }
  func.func @transform_16(%arg0: i32) -> (i32, i32) {
    %c0_i32 = arith.constant 0 : i32
    %c0_i32_0 = arith.constant 0 : i32
    %c0_i32_1 = arith.constant 0 : i32
    return %c0_i32, %c0_i32_0 : i32, i32
  }
  func.func @transform_17(%arg0: i32) -> (i32, i32) {
    %c0_i32 = arith.constant 0 : i32
    %c0_i32_0 = arith.constant 0 : i32
    %c0_i32_1 = arith.constant 0 : i32
    return %c0_i32, %c0_i32_0 : i32, i32
  }
  func.func @transform_18(%arg0: i32) -> (i32, i32, i32) {
    %c0_i32 = arith.constant 0 : i32
    %c0_i32_0 = arith.constant 0 : i32
    %c0_i32_1 = arith.constant 0 : i32
    return %arg0, %c0_i32, %c0_i32_0 : i32, i32, i32
  }
  func.func @transform_19(%arg0: i32) -> (i32, i32, i32) {
    %c0_i32 = arith.constant 0 : i32
    %c0_i32_0 = arith.constant 0 : i32
    %c0_i32_1 = arith.constant 0 : i32
    return %arg0, %c0_i32, %c0_i32_0 : i32, i32, i32
  }
}

</mosaic_0001>

<llo_original>
// kernel: tile.24
$region0: #{tile.24}
  %s0 = inlined_call_operand.vmem [shape: f32[10,4,8], index: 0, kind: input, shape index: {}]
  %s1 = inlined_call_operand.vmem [shape: f32[10,32], index: 1, kind: output, shape index: {}]
  $region1: #{tile.24} parent=0
    #allocation0 [shape = 'u8[40960]{0}', space=vmem, size = 0xa000, scoped, tag = 'scoped mem for input reshape']
    %s3 = sshllo.u32 0, 4
    %s4 = smul.addr 4, 9
    %s5 = scalar_lea.vmem %s0, %s4
    %v6 = vld [vmem:[%s5] sm:%s3]
    %s7 = scalar_lea.vmem [#allocation0], 72
    %8 = vst [vmem:[%s7] sm:%s3] %v6
    %s9 = smul.addr 4, 8
    %s10 = scalar_lea.vmem %s0, %s9
    %v11 = vld [vmem:[%s10] sm:%s3]
    %s12 = scalar_lea.vmem [#allocation0], 64
    %13 = vst [vmem:[%s12] sm:%s3] %v11
    %s14 = smul.addr 4, 7
    %s15 = scalar_lea.vmem %s0, %s14
    %v16 = vld [vmem:[%s15] sm:%s3]
    %s17 = scalar_lea.vmem [#allocation0], 56
    %18 = vst [vmem:[%s17] sm:%s3] %v16
    %s19 = smul.addr 4, 6
    %s20 = scalar_lea.vmem %s0, %s19
    %v21 = vld [vmem:[%s20] sm:%s3]
    %s22 = scalar_lea.vmem [#allocation0], 48
    %23 = vst [vmem:[%s22] sm:%s3] %v21
    %s24 = smul.addr 4, 5
    %s25 = scalar_lea.vmem %s0, %s24
    %v26 = vld [vmem:[%s25] sm:%s3]
    %s27 = scalar_lea.vmem [#allocation0], 40
    %28 = vst [vmem:[%s27] sm:%s3] %v26
    %s29 = smul.addr 4, 4
    %s30 = scalar_lea.vmem %s0, %s29
    %v31 = vld [vmem:[%s30] sm:%s3]
    %s32 = scalar_lea.vmem [#allocation0], 32
    %33 = vst [vmem:[%s32] sm:%s3] %v31
    %s34 = smul.addr 4, 3
    %s35 = scalar_lea.vmem %s0, %s34
    %v36 = vld [vmem:[%s35] sm:%s3]
    %s37 = scalar_lea.vmem [#allocation0], 24
    %38 = vst [vmem:[%s37] sm:%s3] %v36
    %s39 = smul.addr 4, 2
    %s40 = scalar_lea.vmem %s0, %s39
    %v41 = vld [vmem:[%s40] sm:%s3]
    %s42 = scalar_lea.vmem [#allocation0], 16
    %43 = vst [vmem:[%s42] sm:%s3] %v41
    %s44 = scalar_lea.vmem %s0, 4
    %v45 = vld [vmem:[%s44] sm:%s3]
    %s46 = scalar_lea.vmem [#allocation0], 8
    %47 = vst [vmem:[%s46] sm:%s3] %v45
    %v48 = vld [vmem:[%s0] sm:%s3]
    %49 = vst [vmem:[#allocation0] sm:%s3] %v48
    %v50 = vld [vmem:[#allocation0] ss:$8 sm:$0xf]
    %v51 = vld [vmem:[#allocation0] ss:$8 sm:$0xf0]
    %vm52 = vcmask 1047556
    %v53 = vsel %vm52, %v51, %v50
    %vm54 = vcmask 64512
    %55 = vst.msk [vmem:[%s1] sm:$0xff] %vm54, %v53
    %s56 = scalar_lea.vmem [#allocation0], 64
    %s57 = smov 3
    %v58 = vld [vmem:[%s56] ss:$8 sm:%s57]
    %vm59 = vcmask 64512
    %s60 = scalar_lea.vmem %s1, 8
    %61 = vst.msk [vmem:[%s60] sm:$0x3] %vm59, %v58
    %s62 = scalar_lea.vmem [#allocation0], 3
    %v63 = vld [vmem:[%s62] ss:$8 sm:$0xf]
    %s64 = scalar_lea.vmem [#allocation0], 3
    %v65 = vld [vmem:[%s64] ss:$8 sm:$0xf0]
    %vm66 = vcmask 1047556
    %v67 = vsel %vm66, %v65, %v63
    %68 = vrot.lane.b32.xlu0 %v67, 24
    %v69 = vpop.permute.xlu0 %68
    %vm70 = vcmask 261312
    %71 = vst.msk [vmem:[%s1] sm:$0xff] %vm70, %v69
    %s72 = scalar_lea.vmem [#allocation0], 67
    %s73 = smov 3
    %v74 = vld [vmem:[%s72] ss:$8 sm:%s73]
    %75 = vrot.lane.b32.xlu0 %v74, 24
    %v76 = vpop.permute.xlu0 %75
    %vm77 = vcmask 261312
    %s78 = scalar_lea.vmem %s1, 8
    %79 = vst.msk [vmem:[%s78] sm:$0x3] %vm77, %v76
    %s80 = scalar_lea.vmem [#allocation0], 2
    %v81 = vld [vmem:[%s80] ss:$8 sm:$0xf]
    %s82 = scalar_lea.vmem [#allocation0], 2
    %v83 = vld [vmem:[%s82] ss:$8 sm:$0xf0]
    %vm84 = vcmask 1047556
    %v85 = vsel %vm84, %v83, %v81
    %86 = vrot.lane.b32.xlu0 %v85, 16
    %v87 = vpop.permute.xlu0 %86
    %vm88 = vcmask 195712
    %89 = vst.msk [vmem:[%s1] sm:$0xff] %vm88, %v87
    %s90 = scalar_lea.vmem [#allocation0], 66
    %s91 = smov 3
    %v92 = vld [vmem:[%s90] ss:$8 sm:%s91]
    %93 = vrot.lane.b32.xlu0 %v92, 16
    %v94 = vpop.permute.xlu0 %93
    %vm95 = vcmask 195712
    %s96 = scalar_lea.vmem %s1, 8
    %97 = vst.msk [vmem:[%s96] sm:$0x3] %vm95, %v94
    %s98 = scalar_lea.vmem [#allocation0], 1
    %v99 = vld [vmem:[%s98] ss:$8 sm:$0xf]
    %s100 = scalar_lea.vmem [#allocation0], 1
    %v101 = vld [vmem:[%s100] ss:$8 sm:$0xf0]
    %vm102 = vcmask 1047556
    %v103 = vsel %vm102, %v101, %v99
    %104 = vrot.lane.b32.xlu0 %v103, 8
    %v105 = vpop.permute.xlu0 %104
    %vm106 = vcmask 130112
    %107 = vst.msk [vmem:[%s1] sm:$0xff] %vm106, %v105
    %s108 = scalar_lea.vmem [#allocation0], 65
    %s109 = smov 3
    %v110 = vld [vmem:[%s108] ss:$8 sm:%s109]
    %111 = vrot.lane.b32.xlu0 %v110, 8
    %v112 = vpop.permute.xlu0 %111
    %vm113 = vcmask 130112
    %s114 = scalar_lea.vmem %s1, 8
    %115 = vst.msk [vmem:[%s114] sm:$0x3] %vm113, %v112

// kernel: tile.34
$region0: #{tile.34}
  %s0 = inlined_call_operand.vmem [shape: f32[8,4,8], index: 0, kind: input, shape index: {}]
  %s1 = inlined_call_operand.vmem [shape: f32[8,32], index: 1, kind: output, shape index: {}]
  $region1: #{tile.34} parent=0
    #allocation0 [shape = 'u8[32768]{0}', space=vmem, size = 0x8000, scoped, tag = 'scoped mem for input reshape']
    %s3 = sshllo.u32 0, 4
    %s4 = smul.addr 4, 7
    %s5 = scalar_lea.vmem %s0, %s4
    %v6 = vld [vmem:[%s5] sm:%s3]
    %s7 = scalar_lea.vmem [#allocation0], 56
    %8 = vst [vmem:[%s7] sm:%s3] %v6
    %s9 = smul.addr 4, 6
    %s10 = scalar_lea.vmem %s0, %s9
    %v11 = vld [vmem:[%s10] sm:%s3]
    %s12 = scalar_lea.vmem [#allocation0], 48
    %13 = vst [vmem:[%s12] sm:%s3] %v11
    %s14 = smul.addr 4, 5
    %s15 = scalar_lea.vmem %s0, %s14
    %v16 = vld [vmem:[%s15] sm:%s3]
    %s17 = scalar_lea.vmem [#allocation0], 40
    %18 = vst [vmem:[%s17] sm:%s3] %v16
    %s19 = smul.addr 4, 4
    %s20 = scalar_lea.vmem %s0, %s19
    %v21 = vld [vmem:[%s20] sm:%s3]
    %s22 = scalar_lea.vmem [#allocation0], 32
    %23 = vst [vmem:[%s22] sm:%s3] %v21
    %s24 = smul.addr 4, 3
    %s25 = scalar_lea.vmem %s0, %s24
    %v26 = vld [vmem:[%s25] sm:%s3]
    %s27 = scalar_lea.vmem [#allocation0], 24
    %28 = vst [vmem:[%s27] sm:%s3] %v26
    %s29 = smul.addr 4, 2
    %s30 = scalar_lea.vmem %s0, %s29
    %v31 = vld [vmem:[%s30] sm:%s3]
    %s32 = scalar_lea.vmem [#allocation0], 16
    %33 = vst [vmem:[%s32] sm:%s3] %v31
    %s34 = scalar_lea.vmem %s0, 4
    %v35 = vld [vmem:[%s34] sm:%s3]
    %s36 = scalar_lea.vmem [#allocation0], 8
    %37 = vst [vmem:[%s36] sm:%s3] %v35
    %v38 = vld [vmem:[%s0] sm:%s3]
    %39 = vst [vmem:[#allocation0] sm:%s3] %v38
    %v40 = vld [vmem:[#allocation0] ss:$8 sm:$0xf]
    %v41 = vld [vmem:[#allocation0] ss:$8 sm:$0xf0]
    %vm42 = vcmask 1047556
    %v43 = vsel %vm42, %v41, %v40
    %vm44 = vcmask 64512
    %45 = vst.msk [vmem:[%s1] sm:$0xff] %vm44, %v43
    %s46 = scalar_lea.vmem [#allocation0], 3
    %v47 = vld [vmem:[%s46] ss:$8 sm:$0xf]
    %s48 = scalar_lea.vmem [#allocation0], 3
    %v49 = vld [vmem:[%s48] ss:$8 sm:$0xf0]
    %vm50 = vcmask 1047556
    %v51 = vsel %vm50, %v49, %v47
    %52 = vrot.lane.b32.xlu0 %v51, 24
    %v53 = vpop.permute.xlu0 %52
    %vm54 = vcmask 261312
    %55 = vst.msk [vmem:[%s1] sm:$0xff] %vm54, %v53
    %s56 = scalar_lea.vmem [#allocation0], 2
    %v57 = vld [vmem:[%s56] ss:$8 sm:$0xf]
    %s58 = scalar_lea.vmem [#allocation0], 2
    %v59 = vld [vmem:[%s58] ss:$8 sm:$0xf0]
    %vm60 = vcmask 1047556
    %v61 = vsel %vm60, %v59, %v57
    %62 = vrot.lane.b32.xlu0 %v61, 16
    %v63 = vpop.permute.xlu0 %62
    %vm64 = vcmask 195712
    %65 = vst.msk [vmem:[%s1] sm:$0xff] %vm64, %v63
    %s66 = scalar_lea.vmem [#allocation0], 1
    %v67 = vld [vmem:[%s66] ss:$8 sm:$0xf]
    %s68 = scalar_lea.vmem [#allocation0], 1
    %v69 = vld [vmem:[%s68] ss:$8 sm:$0xf0]
    %vm70 = vcmask 1047556
    %v71 = vsel %vm70, %v69, %v67
    %72 = vrot.lane.b32.xlu0 %v71, 8
    %v73 = vpop.permute.xlu0 %72
    %vm74 = vcmask 130112
    %75 = vst.msk [vmem:[%s1] sm:$0xff] %vm74, %v73

// kernel: phi_compressor_forward.1
$region0: #{phi_compressor_forward.1}
  #allocation0 [shape = 'u32[]', space=smem, size = 0x4, offset = 0x4, fixed_abs, tag = 'smem constant byte address 0x4 - core index']
  #allocation1 [shape = 'u32[144,128]{1,0:T(1,128)}', space=vmem, size = 0x12000, scoped, tag = 'internal scratch']
  %s0 = inlined_call_operand.vmem [shape: f32[2,10,32], index: 0, kind: input, shape index: {}]
  %s1 = inlined_call_operand.vmem [shape: f32[2,1,10], index: 1, kind: input, shape index: {}]
  %s2 = inlined_call_operand.vmem [shape: f32[2,8,32], index: 2, kind: input, shape index: {}]
  %s3 = inlined_call_operand.vmem [shape: f32[2,1,8], index: 3, kind: input, shape index: {}]
  %s4 = inlined_call_operand.vmem [shape: s32[2,8,1], index: 4, kind: input, shape index: {}]
  %s5 = inlined_call_operand.vmem [shape: f32[10,32], index: 5, kind: input, shape index: {}]
  %s6 = inlined_call_operand.vmem [shape: f32[10,32], index: 6, kind: input, shape index: {}]
  %s7 = inlined_call_operand.vmem [shape: f32[8,32], index: 7, kind: input, shape index: {}]
  %s8 = inlined_call_operand.vmem [shape: f32[8,32], index: 8, kind: input, shape index: {}]
  %s9 = inlined_call_operand.vmem [shape: bf16[32,32], index: 9, kind: input, shape index: {}]
  %s10 = inlined_call_operand.vmem [shape: f32[2,1,32], index: 10, kind: input, shape index: {}]
  %s11 = inlined_call_operand.vmem [shape: f32[2,1,32], index: 11, kind: input, shape index: {}]
  %s12 = inlined_call_operand.vmem [shape: bf16[2,32,96], index: 12, kind: input, shape index: {}]
  %s13 = inlined_call_operand.vmem [shape: bf16[2,32,32], index: 13, kind: input, shape index: {}]
  %s14 = inlined_call_operand.vmem [shape: bf16[2,32,128], index: 14, kind: input, shape index: {}]
  %s15 = inlined_call_operand.vmem [shape: bf16[2,64,32], index: 15, kind: input, shape index: {}]
  %s16 = inlined_call_operand.vmem [shape: f32[1,32], index: 16, kind: input, shape index: {}]
  %s17 = inlined_call_operand.vmem [shape: bf16[32,128], index: 17, kind: input, shape index: {}]
  %s18 = inlined_call_operand.hbm [shape: f32[2,8,128], index: 18, kind: output, shape index: {0}]
  %s19 = inlined_call_operand.vmem [shape: f32[2,1,128], index: 19, kind: output, shape index: {1}]
  %20 = xla_tuple %s18, %s19
  %s21 = sld [smem:[#allocation0]]
  $region113: #{phi_compressor_forward.1} parent=0
    _
  %s23 = ssub.s32 1, %s21
  %s24 = scalar_select 0, %s23, %s21
  $region1: #{phi_compressor_forward.1} parent=0
    #allocation2 [shape = 'u8[8192]{0}', space=vmem, size = 0x2000, scoped, tag = 'output window, operand 0']
    #allocation3 [shape = 's32[2]{0}', space=sflag, size = 0x8, scoped, tag = 'scoped memory for phi_compressor_forward.1']
    %25 = vsyncpa [#allocation3], 0
    %s26 = scalar_lea.sflag [#allocation3], 1
    %27 = vsyncpa %s26, 0
    loop: start=0, step=1, limit=4
    $region2: #{phi_compressor_forward.1} parent=1 // loop_pre_header
      _
    $region3: #{phi_compressor_forward.1} parent=1 // loop_header
      %s29 = sphi 0, %s33
      %p30 = scmp.ge.s32.totalorder %s29, 4
      %s39 = sphi 0, %s41
      %s42 = sphi 0, %s39
      %s43 = sphi 0, %s42
      %s59 = sphi 0, %s43
      %s65 = sphi 0, %s67
      %s68 = sphi 0, %s65
      %s69 = sphi 0, %s68
      %s85 = sphi 0, %s69
      %s91 = sphi 0, %s93
      %s94 = sphi 0, %s91
      %s95 = sphi 0, %s94
      %s111 = sphi 0, %s95
      %s117 = sphi 0, %s119
      %s120 = sphi 0, %s117
      %s121 = sphi 0, %s120
      %s137 = sphi 0, %s121
      %s143 = sphi 0, %s145
      %s146 = sphi 0, %s143
      %s147 = sphi 0, %s146
      %s163 = sphi 0, %s147
      %s167 = sphi 0, %s167
      %s169 = sphi 0, %s167
      %s170 = sphi 0, %s169
      %s184 = sphi 0, %s170
      %s188 = sphi 0, %s188
      %s190 = sphi 0, %s188
      %s191 = sphi 0, %s190
      %s205 = sphi 0, %s191
      %s209 = sphi 0, %s209
      %s211 = sphi 0, %s209
      %s212 = sphi 0, %s211
      %s226 = sphi 0, %s212
      %s230 = sphi 0, %s230
      %s232 = sphi 0, %s230
      %s233 = sphi 0, %s232
      %s247 = sphi 0, %s233
      %s251 = sphi 0, %s251
      %s253 = sphi 0, %s251
      %s254 = sphi 0, %s253
      %s268 = sphi 0, %s254
      %s272 = sphi 0, %s272
      %s274 = sphi 0, %s272
      %s275 = sphi 0, %s274
      %s289 = sphi 0, %s275
      %s293 = sphi 0, %s293
      %s295 = sphi 0, %s293
      %s296 = sphi 0, %s295
      %s310 = sphi 0, %s296
      %s314 = sphi 0, %s314
      %s316 = sphi 0, %s314
      %s317 = sphi 0, %s316
      %s331 = sphi 0, %s317
      %s335 = sphi 0, %s335
      %s337 = sphi 0, %s335
      %s338 = sphi 0, %s337
      %s352 = sphi 0, %s338
      %s356 = sphi 0, %s356
      %s358 = sphi 0, %s356
      %s359 = sphi 0, %s358
      %s373 = sphi 0, %s359
      %s377 = sphi 0, %s377
      %s379 = sphi 0, %s377
      %s380 = sphi 0, %s379
      %s394 = sphi 0, %s380
      %s398 = sphi 0, %s398
      %s400 = sphi 0, %s398
      %s401 = sphi 0, %s400
      %s415 = sphi 0, %s401
      %s419 = sphi 0, %s419
      %s421 = sphi 0, %s419
      %s422 = sphi 0, %s421
      %s436 = sphi 0, %s422
      %s442 = sphi 0, %s444
      %s445 = sphi 0, %s442
      %s446 = sphi 0, %s445
      %s462 = sphi 0, %s446
      %s468 = sphi 0, %s470
      %s471 = sphi 0, %s468
      %s472 = sphi 0, %s471
      %s488 = sphi 0, %s472
    $region4: #{phi_compressor_forward.1} parent=1 // loop_header_branch
      %32 = sbr.rel (%p30) target = $region8
    $region5: #{phi_compressor_forward.1} parent=1 // loop_body
      %s34 = ssub.s32 %s29, 1
      %s35 = ssub.s32 %s29, 2
      %s36 = sadd.s32 %s29, 1
      %s37 = ssub.s32 %s29, %s36
      %p38 = scmp.eq.s32.totalorder %s37, 0
      %s40 = sadd.s32 %s39, 1
      %s41 = scalar_select %p38, %s39, %s40
      %p44 = pneg %p38
      %p45 = scmp.eq.s32.totalorder %s29, 1
      %p46 = por %p44, %p45
      %p47 = scmp.ne.s32.totalorder %s39, %s42
      %p48 = scmp.eq.s32.totalorder %s29, 0
      %p49 = por %p47, %p48
      %p50 = scmp.ne.s32.totalorder %s39, %s42
      %p51 = scmp.eq.s32.totalorder %s34, 1
      %p52 = por %p50, %p51
      %p53 = scmp.ne.s32.totalorder %s42, %s43
      %p54 = scmp.eq.s32.totalorder %s34, 0
      %p55 = por %p53, %p54
      %p56 = scmp.ne.s32.totalorder %s42, %s43
      %p57 = scmp.eq.s32.totalorder %s35, 1
      %p58 = por %p56, %p57
      %p60 = scmp.ne.s32.totalorder %s43, %s59
      %p61 = scmp.eq.s32.totalorder %s35, 0
      %p62 = por %p60, %p61
      %s63 = ssub.s32 %s29, %s36
      %p64 = scmp.eq.s32.totalorder %s63, 0
      %s66 = sadd.s32 %s65, 1
      %s67 = scalar_select %p64, %s65, %s66
      %p70 = pneg %p64
      %p71 = scmp.eq.s32.totalorder %s29, 1
      %p72 = por %p70, %p71
      %p73 = scmp.ne.s32.totalorder %s65, %s68
      %p74 = scmp.eq.s32.totalorder %s29, 0
      %p75 = por %p73, %p74
      %p76 = scmp.ne.s32.totalorder %s65, %s68
      %p77 = scmp.eq.s32.totalorder %s34, 1
      %p78 = por %p76, %p77
      %p79 = scmp.ne.s32.totalorder %s68, %s69
      %p80 = scmp.eq.s32.totalorder %s34, 0
      %p81 = por %p79, %p80
      %p82 = scmp.ne.s32.totalorder %s68, %s69
      %p83 = scmp.eq.s32.totalorder %s35, 1
      %p84 = por %p82, %p83
      %p86 = scmp.ne.s32.totalorder %s69, %s85
      %p87 = scmp.eq.s32.totalorder %s35, 0
      %p88 = por %p86, %p87
      %s89 = ssub.s32 %s29, %s36
      %p90 = scmp.eq.s32.totalorder %s89, 0
      %s92 = sadd.s32 %s91, 1
      %s93 = scalar_select %p90, %s91, %s92
      %p96 = pneg %p90
      %p97 = scmp.eq.s32.totalorder %s29, 1
      %p98 = por %p96, %p97
      %p99 = scmp.ne.s32.totalorder %s91, %s94
      %p100 = scmp.eq.s32.totalorder %s29, 0
      %p101 = por %p99, %p100
      %p102 = scmp.ne.s32.totalorder %s91, %s94
      %p103 = scmp.eq.s32.totalorder %s34, 1
      %p104 = por %p102, %p103
      %p105 = scmp.ne.s32.totalorder %s94, %s95
      %p106 = scmp.eq.s32.totalorder %s34, 0
      %p107 = por %p105, %p106
      %p108 = scmp.ne.s32.totalorder %s94, %s95
      %p109 = scmp.eq.s32.totalorder %s35, 1
      %p110 = por %p108, %p109
      %p112 = scmp.ne.s32.totalorder %s95, %s111
      %p113 = scmp.eq.s32.totalorder %s35, 0
      %p114 = por %p112, %p113
      %s115 = ssub.s32 %s29, %s36
      %p116 = scmp.eq.s32.totalorder %s115, 0
      %s118 = sadd.s32 %s117, 1
      %s119 = scalar_select %p116, %s117, %s118
      %p122 = pneg %p116
      %p123 = scmp.eq.s32.totalorder %s29, 1
      %p124 = por %p122, %p123
      %p125 = scmp.ne.s32.totalorder %s117, %s120
      %p126 = scmp.eq.s32.totalorder %s29, 0
      %p127 = por %p125, %p126
      %p128 = scmp.ne.s32.totalorder %s117, %s120
      %p129 = scmp.eq.s32.totalorder %s34, 1
      %p130 = por %p128, %p129
      %p131 = scmp.ne.s32.totalorder %s120, %s121
      %p132 = scmp.eq.s32.totalorder %s34, 0
      %p133 = por %p131, %p132
      %p134 = scmp.ne.s32.totalorder %s120, %s121
      %p135 = scmp.eq.s32.totalorder %s35, 1
      %p136 = por %p134, %p135
      %p138 = scmp.ne.s32.totalorder %s121, %s137
      %p139 = scmp.eq.s32.totalorder %s35, 0
      %p140 = por %p138, %p139
      %s141 = ssub.s32 %s29, %s36
      %p142 = scmp.eq.s32.totalorder %s141, 0
      %s144 = sadd.s32 %s143, 1
      %s145 = scalar_select %p142, %s143, %s144
      %p148 = pneg %p142
      %p149 = scmp.eq.s32.totalorder %s29, 1
      %p150 = por %p148, %p149
      %p151 = scmp.ne.s32.totalorder %s143, %s146
      %p152 = scmp.eq.s32.totalorder %s29, 0
      %p153 = por %p151, %p152
      %p154 = scmp.ne.s32.totalorder %s143, %s146
      %p155 = scmp.eq.s32.totalorder %s34, 1
      %p156 = por %p154, %p155
      %p157 = scmp.ne.s32.totalorder %s146, %s147
      %p158 = scmp.eq.s32.totalorder %s34, 0
      %p159 = por %p157, %p158
      %p160 = scmp.ne.s32.totalorder %s146, %s147
      %p161 = scmp.eq.s32.totalorder %s35, 1
      %p162 = por %p160, %p161
      %p164 = scmp.ne.s32.totalorder %s147, %s163
      %p165 = scmp.eq.s32.totalorder %s35, 0
      %p166 = por %p164, %p165
      %s168 = sadd.s32 %s167, 1
      %p171 = scmp.eq.s32.totalorder %s29, 1
      %p172 = scmp.ne.s32.totalorder %s167, %s169
      %p173 = scmp.eq.s32.totalorder %s29, 0
      %p174 = por %p172, %p173
      %p175 = scmp.ne.s32.totalorder %s167, %s169
      %p176 = scmp.eq.s32.totalorder %s34, 1
      %p177 = por %p175, %p176
      %p178 = scmp.ne.s32.totalorder %s169, %s170
      %p179 = scmp.eq.s32.totalorder %s34, 0
      %p180 = por %p178, %p179
      %p181 = scmp.ne.s32.totalorder %s169, %s170
      %p182 = scmp.eq.s32.totalorder %s35, 1
      %p183 = por %p181, %p182
      %p185 = scmp.ne.s32.totalorder %s170, %s184
      %p186 = scmp.eq.s32.totalorder %s35, 0
      %p187 = por %p185, %p186
      %s189 = sadd.s32 %s188, 1
      %p192 = scmp.eq.s32.totalorder %s29, 1
      %p193 = scmp.ne.s32.totalorder %s188, %s190
      %p194 = scmp.eq.s32.totalorder %s29, 0
      %p195 = por %p193, %p194
      %p196 = scmp.ne.s32.totalorder %s188, %s190
      %p197 = scmp.eq.s32.totalorder %s34, 1
      %p198 = por %p196, %p197
      %p199 = scmp.ne.s32.totalorder %s190, %s191
      %p200 = scmp.eq.s32.totalorder %s34, 0
      %p201 = por %p199, %p200
      %p202 = scmp.ne.s32.totalorder %s190, %s191
      %p203 = scmp.eq.s32.totalorder %s35, 1
      %p204 = por %p202, %p203
      %p206 = scmp.ne.s32.totalorder %s191, %s205
      %p207 = scmp.eq.s32.totalorder %s35, 0
      %p208 = por %p206, %p207
      %s210 = sadd.s32 %s209, 1
      %p213 = scmp.eq.s32.totalorder %s29, 1
      %p214 = scmp.ne.s32.totalorder %s209, %s211
      %p215 = scmp.eq.s32.totalorder %s29, 0
      %p216 = por %p214, %p215
      %p217 = scmp.ne.s32.totalorder %s209, %s211
      %p218 = scmp.eq.s32.totalorder %s34, 1
      %p219 = por %p217, %p218
      %p220 = scmp.ne.s32.totalorder %s211, %s212
      %p221 = scmp.eq.s32.totalorder %s34, 0
      %p222 = por %p220, %p221
      %p223 = scmp.ne.s32.totalorder %s211, %s212
      %p224 = scmp.eq.s32.totalorder %s35, 1
      %p225 = por %p223, %p224
      %p227 = scmp.ne.s32.totalorder %s212, %s226
      %p228 = scmp.eq.s32.totalorder %s35, 0
      %p229 = por %p227, %p228
      %s231 = sadd.s32 %s230, 1
      %p234 = scmp.eq.s32.totalorder %s29, 1
      %p235 = scmp.ne.s32.totalorder %s230, %s232
      %p236 = scmp.eq.s32.totalorder %s29, 0
      %p237 = por %p235, %p236
      %p238 = scmp.ne.s32.totalorder %s230, %s232
      %p239 = scmp.eq.s32.totalorder %s34, 1
      %p240 = por %p238, %p239
      %p241 = scmp.ne.s32.totalorder %s232, %s233
      %p242 = scmp.eq.s32.totalorder %s34, 0
      %p243 = por %p241, %p242
      %p244 = scmp.ne.s32.totalorder %s232, %s233
      %p245 = scmp.eq.s32.totalorder %s35, 1
      %p246 = por %p244, %p245
      %p248 = scmp.ne.s32.totalorder %s233, %s247
      %p249 = scmp.eq.s32.totalorder %s35, 0
      %p250 = por %p248, %p249
      %s252 = sadd.s32 %s251, 1
      %p255 = scmp.eq.s32.totalorder %s29, 1
      %p256 = scmp.ne.s32.totalorder %s251, %s253
      %p257 = scmp.eq.s32.totalorder %s29, 0
      %p258 = por %p256, %p257
      %p259 = scmp.ne.s32.totalorder %s251, %s253
      %p260 = scmp.eq.s32.totalorder %s34, 1
      %p261 = por %p259, %p260
      %p262 = scmp.ne.s32.totalorder %s253, %s254
      %p263 = scmp.eq.s32.totalorder %s34, 0
      %p264 = por %p262, %p263
      %p265 = scmp.ne.s32.totalorder %s253, %s254
      %p266 = scmp.eq.s32.totalorder %s35, 1
      %p267 = por %p265, %p266
      %p269 = scmp.ne.s32.totalorder %s254, %s268
      %p270 = scmp.eq.s32.totalorder %s35, 0
      %p271 = por %p269, %p270
      %s273 = sadd.s32 %s272, 1
      %p276 = scmp.eq.s32.totalorder %s29, 1
      %p277 = scmp.ne.s32.totalorder %s272, %s274
      %p278 = scmp.eq.s32.totalorder %s29, 0
      %p279 = por %p277, %p278
      %p280 = scmp.ne.s32.totalorder %s272, %s274
      %p281 = scmp.eq.s32.totalorder %s34, 1
      %p282 = por %p280, %p281
      %p283 = scmp.ne.s32.totalorder %s274, %s275
      %p284 = scmp.eq.s32.totalorder %s34, 0
      %p285 = por %p283, %p284
      %p286 = scmp.ne.s32.totalorder %s274, %s275
      %p287 = scmp.eq.s32.totalorder %s35, 1
      %p288 = por %p286, %p287
      %p290 = scmp.ne.s32.totalorder %s275, %s289
      %p291 = scmp.eq.s32.totalorder %s35, 0
      %p292 = por %p290, %p291
      %s294 = sadd.s32 %s293, 1
      %p297 = scmp.eq.s32.totalorder %s29, 1
      %p298 = scmp.ne.s32.totalorder %s293, %s295
      %p299 = scmp.eq.s32.totalorder %s29, 0
      %p300 = por %p298, %p299
      %p301 = scmp.ne.s32.totalorder %s293, %s295
      %p302 = scmp.eq.s32.totalorder %s34, 1
      %p303 = por %p301, %p302
      %p304 = scmp.ne.s32.totalorder %s295, %s296
      %p305 = scmp.eq.s32.totalorder %s34, 0
      %p306 = por %p304, %p305
      %p307 = scmp.ne.s32.totalorder %s295, %s296
      %p308 = scmp.eq.s32.totalorder %s35, 1
      %p309 = por %p307, %p308
      %p311 = scmp.ne.s32.totalorder %s296, %s310
      %p312 = scmp.eq.s32.totalorder %s35, 0
      %p313 = por %p311, %p312
      %s315 = sadd.s32 %s314, 1
      %p318 = scmp.eq.s32.totalorder %s29, 1
      %p319 = scmp.ne.s32.totalorder %s314, %s316
      %p320 = scmp.eq.s32.totalorder %s29, 0
      %p321 = por %p319, %p320
      %p322 = scmp.ne.s32.totalorder %s314, %s316
      %p323 = scmp.eq.s32.totalorder %s34, 1
      %p324 = por %p322, %p323
      %p325 = scmp.ne.s32.totalorder %s316, %s317
      %p326 = scmp.eq.s32.totalorder %s34, 0
      %p327 = por %p325, %p326
      %p328 = scmp.ne.s32.totalorder %s316, %s317
      %p329 = scmp.eq.s32.totalorder %s35, 1
      %p330 = por %p328, %p329
      %p332 = scmp.ne.s32.totalorder %s317, %s331
      %p333 = scmp.eq.s32.totalorder %s35, 0
      %p334 = por %p332, %p333
      %s336 = sadd.s32 %s335, 1
      %p339 = scmp.eq.s32.totalorder %s29, 1
      %p340 = scmp.ne.s32.totalorder %s335, %s337
      %p341 = scmp.eq.s32.totalorder %s29, 0
      %p342 = por %p340, %p341
      %p343 = scmp.ne.s32.totalorder %s335, %s337
      %p344 = scmp.eq.s32.totalorder %s34, 1
      %p345 = por %p343, %p344
      %p346 = scmp.ne.s32.totalorder %s337, %s338
      %p347 = scmp.eq.s32.totalorder %s34, 0
      %p348 = por %p346, %p347
      %p349 = scmp.ne.s32.totalorder %s337, %s338
      %p350 = scmp.eq.s32.totalorder %s35, 1
      %p351 = por %p349, %p350
      %p353 = scmp.ne.s32.totalorder %s338, %s352
      %p354 = scmp.eq.s32.totalorder %s35, 0
      %p355 = por %p353, %p354
      %s357 = sadd.s32 %s356, 1
      %p360 = scmp.eq.s32.totalorder %s29, 1
      %p361 = scmp.ne.s32.totalorder %s356, %s358
      %p362 = scmp.eq.s32.totalorder %s29, 0
      %p363 = por %p361, %p362
      %p364 = scmp.ne.s32.totalorder %s356, %s358
      %p365 = scmp.eq.s32.totalorder %s34, 1
      %p366 = por %p364, %p365
      %p367 = scmp.ne.s32.totalorder %s358, %s359
      %p368 = scmp.eq.s32.totalorder %s34, 0
      %p369 = por %p367, %p368
      %p370 = scmp.ne.s32.totalorder %s358, %s359
      %p371 = scmp.eq.s32.totalorder %s35, 1
      %p372 = por %p370, %p371
      %p374 = scmp.ne.s32.totalorder %s359, %s373
      %p375 = scmp.eq.s32.totalorder %s35, 0
      %p376 = por %p374, %p375
      %s378 = sadd.s32 %s377, 1
      %p381 = scmp.eq.s32.totalorder %s29, 1
      %p382 = scmp.ne.s32.totalorder %s377, %s379
      %p383 = scmp.eq.s32.totalorder %s29, 0
      %p384 = por %p382, %p383
      %p385 = scmp.ne.s32.totalorder %s377, %s379
      %p386 = scmp.eq.s32.totalorder %s34, 1
      %p387 = por %p385, %p386
      %p388 = scmp.ne.s32.totalorder %s379, %s380
      %p389 = scmp.eq.s32.totalorder %s34, 0
      %p390 = por %p388, %p389
      %p391 = scmp.ne.s32.totalorder %s379, %s380
      %p392 = scmp.eq.s32.totalorder %s35, 1
      %p393 = por %p391, %p392
      %p395 = scmp.ne.s32.totalorder %s380, %s394
      %p396 = scmp.eq.s32.totalorder %s35, 0
      %p397 = por %p395, %p396
      %s399 = sadd.s32 %s398, 1
      %p402 = scmp.eq.s32.totalorder %s29, 1
      %p403 = scmp.ne.s32.totalorder %s398, %s400
      %p404 = scmp.eq.s32.totalorder %s29, 0
      %p405 = por %p403, %p404
      %p406 = scmp.ne.s32.totalorder %s398, %s400
      %p407 = scmp.eq.s32.totalorder %s34, 1
      %p408 = por %p406, %p407
      %p409 = scmp.ne.s32.totalorder %s400, %s401
      %p410 = scmp.eq.s32.totalorder %s34, 0
      %p411 = por %p409, %p410
      %p412 = scmp.ne.s32.totalorder %s400, %s401
      %p413 = scmp.eq.s32.totalorder %s35, 1
      %p414 = por %p412, %p413
      %p416 = scmp.ne.s32.totalorder %s401, %s415
      %p417 = scmp.eq.s32.totalorder %s35, 0
      %p418 = por %p416, %p417
      %s420 = sadd.s32 %s419, 1
      %p423 = scmp.eq.s32.totalorder %s29, 1
      %p424 = scmp.ne.s32.totalorder %s419, %s421
      %p425 = scmp.eq.s32.totalorder %s29, 0
      %p426 = por %p424, %p425
      %p427 = scmp.ne.s32.totalorder %s419, %s421
      %p428 = scmp.eq.s32.totalorder %s34, 1
      %p429 = por %p427, %p428
      %p430 = scmp.ne.s32.totalorder %s421, %s422
      %p431 = scmp.eq.s32.totalorder %s34, 0
      %p432 = por %p430, %p431
      %p433 = scmp.ne.s32.totalorder %s421, %s422
      %p434 = scmp.eq.s32.totalorder %s35, 1
      %p435 = por %p433, %p434
      %p437 = scmp.ne.s32.totalorder %s422, %s436
      %p438 = scmp.eq.s32.totalorder %s35, 0
      %p439 = por %p437, %p438
      %s440 = ssub.s32 %s29, %s36
      %p441 = scmp.eq.s32.totalorder %s440, 0
      %s443 = sadd.s32 %s442, 1
      %s444 = scalar_select %p441, %s442, %s443
      %p447 = pneg %p441
      %p448 = scmp.eq.s32.totalorder %s29, 1
      %p449 = por %p447, %p448
      %p450 = scmp.ne.s32.totalorder %s442, %s445
      %p451 = scmp.eq.s32.totalorder %s29, 0
      %p452 = por %p450, %p451
      %p453 = scmp.ne.s32.totalorder %s442, %s445
      %p454 = scmp.eq.s32.totalorder %s34, 1
      %p455 = por %p453, %p454
      %p456 = scmp.ne.s32.totalorder %s445, %s446
      %p457 = scmp.eq.s32.totalorder %s34, 0
      %p458 = por %p456, %p457
      %p459 = scmp.ne.s32.totalorder %s445, %s446
      %p460 = scmp.eq.s32.totalorder %s35, 1
      %p461 = por %p459, %p460
      %p463 = scmp.ne.s32.totalorder %s446, %s462
      %p464 = scmp.eq.s32.totalorder %s35, 0
      %p465 = por %p463, %p464
      %s466 = ssub.s32 %s29, %s36
      %p467 = scmp.eq.s32.totalorder %s466, 0
      %s469 = sadd.s32 %s468, 1
      %s470 = scalar_select %p467, %s468, %s469
      %p473 = pneg %p467
      %p474 = scmp.eq.s32.totalorder %s29, 1
      %p475 = por %p473, %p474
      %p476 = scmp.ne.s32.totalorder %s468, %s471
      %p477 = scmp.eq.s32.totalorder %s29, 0
      %p478 = por %p476, %p477
      %p479 = scmp.ne.s32.totalorder %s468, %s471
      %p480 = scmp.eq.s32.totalorder %s34, 1
      %p481 = por %p479, %p480
      %p482 = scmp.ne.s32.totalorder %s471, %s472
      %p483 = scmp.eq.s32.totalorder %s34, 0
      %p484 = por %p482, %p483
      %p485 = scmp.ne.s32.totalorder %s471, %s472
      %p486 = scmp.eq.s32.totalorder %s35, 1
      %p487 = por %p485, %p486
      %p489 = scmp.ne.s32.totalorder %s472, %s488
      %p490 = scmp.eq.s32.totalorder %s35, 0
      %p491 = por %p489, %p490
      %p492 = scmp.le.s32.totalorder 1, %s29
      %p493 = scmp.lt.s32.totalorder %s29, 3
      %p494 = pnand %p492, %p493
      %p495 = pneg %p494
      // Predicated region
      $region9: #{phi_compressor_forward.1} parent=5 // pred_check
        _
      $region10: #{phi_compressor_forward.1} parent=5 // pred_check_branch
        %497 = sbr.rel (%p494) target = $region12
      $region11: #{phi_compressor_forward.1} parent=5 // pred_region
        %s498 = ssub.s32 %s29, 1
        // Predicated region
        $region13: #{phi_compressor_forward.1} parent=11 // pred_check
          %p499 = pneg %p180
        $region14: #{phi_compressor_forward.1} parent=11 // pred_check_branch
          %501 = sbr.rel (%p499) target = $region16
        $region15: #{phi_compressor_forward.1} parent=11 // pred_region
          _
        $region16: #{phi_compressor_forward.1} parent=11 // pred_fallthru
          _
        // Predicated region
        $region17: #{phi_compressor_forward.1} parent=11 // pred_check
          %p502 = pneg %p201
        $region18: #{phi_compressor_forward.1} parent=11 // pred_check_branch
          %504 = sbr.rel (%p502) target = $region20
        $region19: #{phi_compressor_forward.1} parent=11 // pred_region
          _
        $region20: #{phi_compressor_forward.1} parent=11 // pred_fallthru
          _
        // Predicated region
        $region21: #{phi_compressor_forward.1} parent=11 // pred_check
          %p505 = pneg %p222
        $region22: #{phi_compressor_forward.1} parent=11 // pred_check_branch
          %507 = sbr.rel (%p505) target = $region24
        $region23: #{phi_compressor_forward.1} parent=11 // pred_region
          _
        $region24: #{phi_compressor_forward.1} parent=11 // pred_fallthru
          _
        // Predicated region
        $region25: #{phi_compressor_forward.1} parent=11 // pred_check
          %p508 = pneg %p243
        $region26: #{phi_compressor_forward.1} parent=11 // pred_check_branch
          %510 = sbr.rel (%p508) target = $region28
        $region27: #{phi_compressor_forward.1} parent=11 // pred_region
          _
        $region28: #{phi_compressor_forward.1} parent=11 // pred_fallthru
          _
        // Predicated region
        $region29: #{phi_compressor_forward.1} parent=11 // pred_check
          %p511 = pneg %p264
        $region30: #{phi_compressor_forward.1} parent=11 // pred_check_branch
          %513 = sbr.rel (%p511) target = $region32
        $region31: #{phi_compressor_forward.1} parent=11 // pred_region
          _
        $region32: #{phi_compressor_forward.1} parent=11 // pred_fallthru
          _
        // Predicated region
        $region33: #{phi_compressor_forward.1} parent=11 // pred_check
          %p514 = pneg %p285
        $region34: #{phi_compressor_forward.1} parent=11 // pred_check_branch
          %516 = sbr.rel (%p514) target = $region36
        $region35: #{phi_compressor_forward.1} parent=11 // pred_region
          _
        $region36: #{phi_compressor_forward.1} parent=11 // pred_fallthru
          _
        // Predicated region
        $region37: #{phi_compressor_forward.1} parent=11 // pred_check
          %p517 = pneg %p306
        $region38: #{phi_compressor_forward.1} parent=11 // pred_check_branch
          %519 = sbr.rel (%p517) target = $region40
        $region39: #{phi_compressor_forward.1} parent=11 // pred_region
          _
        $region40: #{phi_compressor_forward.1} parent=11 // pred_fallthru
          _
        // Predicated region
        $region41: #{phi_compressor_forward.1} parent=11 // pred_check
          %p520 = pneg %p327
        $region42: #{phi_compressor_forward.1} parent=11 // pred_check_branch
          %522 = sbr.rel (%p520) target = $region44
        $region43: #{phi_compressor_forward.1} parent=11 // pred_region
          _
        $region44: #{phi_compressor_forward.1} parent=11 // pred_fallthru
          _
        // Predicated region
        $region45: #{phi_compressor_forward.1} parent=11 // pred_check
          %p523 = pneg %p348
        $region46: #{phi_compressor_forward.1} parent=11 // pred_check_branch
          %525 = sbr.rel (%p523) target = $region48
        $region47: #{phi_compressor_forward.1} parent=11 // pred_region
          _
        $region48: #{phi_compressor_forward.1} parent=11 // pred_fallthru
          _
        // Predicated region
        $region49: #{phi_compressor_forward.1} parent=11 // pred_check
          %p526 = pneg %p369
        $region50: #{phi_compressor_forward.1} parent=11 // pred_check_branch
          %528 = sbr.rel (%p526) target = $region52
        $region51: #{phi_compressor_forward.1} parent=11 // pred_region
          _
        $region52: #{phi_compressor_forward.1} parent=11 // pred_fallthru
          _
        // Predicated region
        $region53: #{phi_compressor_forward.1} parent=11 // pred_check
          %p529 = pneg %p390
        $region54: #{phi_compressor_forward.1} parent=11 // pred_check_branch
          %531 = sbr.rel (%p529) target = $region56
        $region55: #{phi_compressor_forward.1} parent=11 // pred_region
          _
        $region56: #{phi_compressor_forward.1} parent=11 // pred_fallthru
          _
        // Predicated region
        $region57: #{phi_compressor_forward.1} parent=11 // pred_check
          %p532 = pneg %p411
        $region58: #{phi_compressor_forward.1} parent=11 // pred_check_branch
          %534 = sbr.rel (%p532) target = $region60
        $region59: #{phi_compressor_forward.1} parent=11 // pred_region
          _
        $region60: #{phi_compressor_forward.1} parent=11 // pred_fallthru
          _
        // Predicated region
        $region61: #{phi_compressor_forward.1} parent=11 // pred_check
          %p535 = pneg %p432
        $region62: #{phi_compressor_forward.1} parent=11 // pred_check_branch
          %537 = sbr.rel (%p535) target = $region64
        $region63: #{phi_compressor_forward.1} parent=11 // pred_region
          _
        $region64: #{phi_compressor_forward.1} parent=11 // pred_fallthru
          _
      $region12: #{phi_compressor_forward.1} parent=5 // pred_fallthru
        _
      %p538 = scmp.lt.s32.totalorder %s29, 2
      // Predicated region
      $region65: #{phi_compressor_forward.1} parent=5 // pred_check
        %p539 = pneg %p538
      $region66: #{phi_compressor_forward.1} parent=5 // pred_check_branch
        %541 = sbr.rel (%p539) target = $region68
      $region67: #{phi_compressor_forward.1} parent=5 // pred_region
        // Predicated region
        $region69: #{phi_compressor_forward.1} parent=67 // pred_check
          %p542 = pneg %p49
        $region70: #{phi_compressor_forward.1} parent=67 // pred_check_branch
          %544 = sbr.rel (%p542) target = $region72
        $region71: #{phi_compressor_forward.1} parent=67 // pred_region
          %p545 = scmp.lt.s32.totalorder %s29, 1
          %s546 = scalar_select %p545, %s29, 1
          %s547 = smul.addr %s546, 2
          %s548 = smul.addr %s547, 8
          %s549 = scalar_lea.vmem %s0, %s548
        $region72: #{phi_compressor_forward.1} parent=67 // pred_fallthru
          _
        // Predicated region
        $region73: #{phi_compressor_forward.1} parent=67 // pred_check
          %p550 = pneg %p75
        $region74: #{phi_compressor_forward.1} parent=67 // pred_check_branch
          %552 = sbr.rel (%p550) target = $region76
        $region75: #{phi_compressor_forward.1} parent=67 // pred_region
          %p553 = scmp.lt.s32.totalorder %s29, 1
          %s554 = scalar_select %p553, %s29, 1
          %s555 = scalar_lea.vmem %s1, %s554
        $region76: #{phi_compressor_forward.1} parent=67 // pred_fallthru
          _
        // Predicated region
        $region77: #{phi_compressor_forward.1} parent=67 // pred_check
          %p556 = pneg %p101
        $region78: #{phi_compressor_forward.1} parent=67 // pred_check_branch
          %558 = sbr.rel (%p556) target = $region80
        $region79: #{phi_compressor_forward.1} parent=67 // pred_region
          %p559 = scmp.lt.s32.totalorder %s29, 1
          %s560 = scalar_select %p559, %s29, 1
          %s561 = smul.addr %s560, 8
          %s562 = scalar_lea.vmem %s2, %s561
        $region80: #{phi_compressor_forward.1} parent=67 // pred_fallthru
          _
        // Predicated region
        $region81: #{phi_compressor_forward.1} parent=67 // pred_check
          %p563 = pneg %p127
        $region82: #{phi_compressor_forward.1} parent=67 // pred_check_branch
          %565 = sbr.rel (%p563) target = $region84
        $region83: #{phi_compressor_forward.1} parent=67 // pred_region
          %p566 = scmp.lt.s32.totalorder %s29, 1
          %s567 = scalar_select %p566, %s29, 1
          %s568 = scalar_lea.vmem %s3, %s567
        $region84: #{phi_compressor_forward.1} parent=67 // pred_fallthru
          _
        // Predicated region
        $region85: #{phi_compressor_forward.1} parent=67 // pred_check
          %p569 = pneg %p153
        $region86: #{phi_compressor_forward.1} parent=67 // pred_check_branch
          %571 = sbr.rel (%p569) target = $region88
        $region87: #{phi_compressor_forward.1} parent=67 // pred_region
          %p572 = scmp.lt.s32.totalorder %s29, 1
          %s573 = scalar_select %p572, %s29, 1
          %s574 = smul.addr %s573, 8
          %s575 = scalar_lea.vmem %s4, %s574
        $region88: #{phi_compressor_forward.1} parent=67 // pred_fallthru
          _
      $region68: #{phi_compressor_forward.1} parent=5 // pred_fallthru
        _
      %p576 = scmp.le.s32.totalorder 1, %s29
      %p577 = scmp.lt.s32.totalorder %s29, 3
      %p578 = pnand %p576, %p577
      %p579 = pneg %p578
      // Predicated region
      $region89: #{phi_compressor_forward.1} parent=5 // pred_check
        _
      $region90: #{phi_compressor_forward.1} parent=5 // pred_check_branch
        %581 = sbr.rel (%p578) target = $region92
      $region91: #{phi_compressor_forward.1} parent=5 // pred_region
        %s582 = ssub.s32 %s29, 1
        %p583 = scmp.lt.s32.totalorder %s34, 1
        %s584 = scalar_select %p583, %s34, 1
        %s585 = smul.addr %s584, 2
        %s586 = smul.addr %s585, 8
        %s587 = scalar_lea.vmem %s0, %s586
        %p588 = pneg %p55
        %p589 = pneg %p52
        %p590 = scmp.lt.s32.totalorder %s34, 1
        %s591 = scalar_select %p590, %s34, 1
        %s592 = scalar_lea.vmem %s1, %s591
        %p593 = pneg %p81
        %p594 = pneg %p78
        %p595 = scmp.lt.s32.totalorder %s34, 1
        %s596 = scalar_select %p595, %s34, 1
        %s597 = smul.addr %s596, 8
        %s598 = scalar_lea.vmem %s2, %s597
        %p599 = pneg %p107
        %p600 = pneg %p104
        %p601 = scmp.lt.s32.totalorder %s34, 1
        %s602 = scalar_select %p601, %s34, 1
        %s603 = scalar_lea.vmem %s3, %s602
        %p604 = pneg %p133
        %p605 = pneg %p130
        %p606 = scmp.lt.s32.totalorder %s34, 1
        %s607 = scalar_select %p606, %s34, 1
        %s608 = smul.addr %s607, 8
        %s609 = scalar_lea.vmem %s4, %s608
        %p610 = pneg %p159
        %p611 = pneg %p156
        %p612 = pneg %p180
        %p613 = pneg %p177
        %p614 = pneg %p201
        %p615 = pneg %p198
        %p616 = pneg %p222
        %p617 = pneg %p219
        %p618 = pneg %p243
        %p619 = pneg %p240
        %p620 = pneg %p264
        %p621 = pneg %p261
        %p622 = pneg %p285
        %p623 = pneg %p282
        %p624 = pneg %p306
        %p625 = pneg %p303
        %p626 = pneg %p327
        %p627 = pneg %p324
        %p628 = pneg %p348
        %p629 = pneg %p345
        %p630 = pneg %p369
        %p631 = pneg %p366
        %p632 = pneg %p390
        %p633 = pneg %p387
        %p634 = pneg %p411
        %p635 = pneg %p408
        %p636 = pneg %p432
        %p637 = pneg %p429
        %p638 = pneg %p458
        %p639 = pneg %p455
        %s640 = sand.u32 %s445, 1
        %s641 = scalar_lea.sflag [#allocation3], %s640
        %s642 = sand.u32 %s445, 1
        %s643 = smul.addr %s642, 8
        %s644 = scalar_lea.vmem [#allocation2], %s643
        %p645 = pneg %p484
        %p646 = pneg %p481
        %p647 = scmp.lt.s32.totalorder %s34, 1
        %s648 = scalar_select %p647, %s34, 1
        %s649 = scalar_lea.vmem %s19, %s648
        %p650 = scmp.lt.s32.totalorder %s34, 1
        %s651 = scalar_select %p650, %s34, 1
        %s652 = smul.addr %s651, 2
        %s653 = smul.addr %s652, 8
        %s654 = scalar_lea.vmem %s0, %s653
        %p655 = scmp.lt.s32.totalorder %s34, 1
        %s656 = scalar_select %p655, %s34, 1
        %s657 = scalar_lea.vmem %s1, %s656
        %p658 = scmp.lt.s32.totalorder %s34, 1
        %s659 = scalar_select %p658, %s34, 1
        %s660 = smul.addr %s659, 8
        %s661 = scalar_lea.vmem %s2, %s660
        %p662 = scmp.lt.s32.totalorder %s34, 1
        %s663 = scalar_select %p662, %s34, 1
        %s664 = scalar_lea.vmem %s3, %s663
        %p665 = scmp.lt.s32.totalorder %s34, 1
        %s666 = scalar_select %p665, %s34, 1
        %s667 = smul.addr %s666, 8
        %s668 = scalar_lea.vmem %s4, %s667
        %p669 = scmp.lt.s32.totalorder %s34, 1
        %s670 = scalar_select %p669, %s34, 1
        %s671 = scalar_lea.vmem %s19, %s670
        %v673 = vld [vmem:[%s9] sm:$0xf]
        %v674 = vld [vmem:[%s9 + $0x4] sm:$0xf]
        %v675 = vld [vmem:[%s9 + $0x8] sm:$0xf]
        %v676 = vld [vmem:[%s9 + $0xc] sm:$0xf]
        %v677 = vld [vmem:[%s5] sm:$0xff]
        %v678 = vld [vmem:[%s5 + $0x8] sm:$0x3]
        %v679 = vld [vmem:[%s6] sm:$0xff]
        %v680 = vld [vmem:[%s6 + $0x8] sm:$0x3]
        %v681 = vld [vmem:[%s7] sm:$0xff]
        %v682 = vld [vmem:[%s8] sm:$0xff]
        %v683 = vlaneseq
        %v684 = vshrl.u32 %v683, 7
        %v685 = vadd.s32 %v684, 8
        %v686 = vlaneseq
        %v687 = vand.u32 %v686, 127
        %vm688 = vcmp.le.s32.totalorder %v687, %v684
        %vm689 = vcmp.le.s32.totalorder %v687, %v685
        %v690 = vld [vmem:[%s657] sm:$0x1]
        %vm691 = vcmp.gt.f32.partialorder %v690, 0.0
        %v692 = vsel %vm691, 1, 0
        %v693 = vlaneseq
        %v694 = vshrl.u32 %v693, 7
        %v695 = vsub.s32 0, %v694
        %v696 = vrot.slane %v692, %v695
        %vm697 = vcmp.eq.s32.totalorder %v696, 1
        %vm698 = vmand %vm688, %vm697
        %vm699 = vmand %vm689, %vm697
        %v700 = vsel %vm698, 0.0, -1e+09
        %v701 = vsel %vm699, 0.0, -1e+09
        %704 = vrot.lane.b32.xlu0 %v700, 10
        %v705 = vpop.permute.xlu0 %704
        %706 = vrot.lane.b32.xlu0 %v701, 10
        %v707 = vpop.permute.xlu0 %706
        %710 = vrot.lane.b32.xlu0 %v700, 20
        %v711 = vpop.permute.xlu0 %710
        %712 = vrot.lane.b32.xlu0 %v701, 20
        %v713 = vpop.permute.xlu0 %712
        %716 = vrot.lane.b32.xlu0 %v700, 30
        %v717 = vpop.permute.xlu0 %716
        %718 = vrot.lane.b32.xlu0 %v701, 30
        %v719 = vpop.permute.xlu0 %718
        %vm722 = vcmask 80896
        %v723 = vsel %vm722, %v700, %v705
        %v724 = vsel %vm722, %v701, %v707
        %vm725 = vcmask 162816
        %v726 = vsel %vm725, %v723, %v711
        %v727 = vsel %vm725, %v724, %v713
        %vm728 = vcmask 244736
        %v729 = vsel %vm728, %v726, %v717
        %v730 = vsel %vm728, %v727, %v719
        %v731 = vld [vmem:[%s654] sm:$0xff]
        %v732 = vld [vmem:[%s654 + $0x8] sm:$0x3]
        %v733 = vld [vmem:[%s10] sm:$0x1]
        %v734 = vmul.f32 %v731, %v731
        %v735 = vmul.f32 %v732, %v732
        %vm736 = vcmask 261120
        %v737 = vsel %vm736, %v734, 0.0
        %738 = vadd.xlane.f32.xlu0 %v737
        %v739 = vpop.xlane.xlu0 %738
        %vm740 = vcmask 254976
        %v741 = vsel %vm740, %v735, 0.0
        %742 = vadd.xlane.f32.xlu0 %v741
        %v743 = vpop.xlane.xlu0 %742
        %v744 = vrcp.pop 32.0
        %v745 = vmul.f32 %v739, %v744
        %v746 = vmul.f32 %v743, %v744
        %v747 = vadd.f32 %v745, 1e-05
        %v748 = vadd.f32 %v746, 1e-05
        %v749 = vrsqrt.pop %v747
        %v750 = vrsqrt.pop %v748
        %v751 = vmul.f32 %v731, %v749
        %v752 = vmul.f32 %v732, %v750
        %v754 = vlaneseq
        %v755 = vshrl.u32 %v754, 7
        %v756 = vsub.s32 0, %v755
        %v757 = vrot.slane %v733, %v756
        %v759 = vmul.f32 %v751, %v757
        %v760 = vmul.f32 %v752, %v757
        %v761 = vpack.c.bf16 %v760, %v759
        %v762 = vld [vmem:[%s12] sm:$0xf]
        %v763 = vld [vmem:[%s12 + $0x4] sm:$0xf]
        %v764 = vld [vmem:[%s12 + $0x8] sm:$0xf]
        %v765 = vld [vmem:[%s12 + $0xc] sm:$0xf]
        %v770 = vunpack.c.l.b16 %v762
        %v771 = vunpack.c.l.b16 %v763
        %v772 = vunpack.c.l.b16 %v764
        %v773 = vunpack.c.l.b16 %v765
        %v774 = vpack.c.b16 %v771, %v770
        %v775 = vpack.c.b16 %v773, %v772
        %v779 = vsel %vm736, %v761, 0
        %781 = vmatprep.subr.bf16.mxu0 0
        %782 = vmatpush1.bf16.msra.mxu0 %v774
        %783 = vmatprep.subr.bf16.mxu0 0
        %784 = vmatpush1.bf16.msra.mxu0 %v775
        %785 = vmatprep.subr.bf16.mxu0 0
        %786 = vmatpush1.bf16.msra.mxu0 0
        %787 = vmatprep.subr.bf16.mxu0 0
        %788 = vmatpush1.bf16.msra.mxu0 0
        %789 = vmatprep.subr.bf16.mxu0 0
        %790 = vmatpush1.bf16.msra.mxu0 0
        %791 = vmatprep.subr.bf16.mxu0 0
        %792 = vmatpush1.bf16.msra.mxu0 0
        %793 = vmatprep.subr.bf16.mxu0 0
        %794 = vmatpush1.bf16.msra.mxu0 0
        %795 = vmatprep.subr.bf16.mxu0 0
        %796 = vmatpush1.bf16.msra.mxu0 0
        %797 = vmatprep.subr.bf16.mxu0 0
        %798 = vmatpush1.bf16.msra.mxu0 0
        %799 = vmatprep.subr.bf16.mxu0 0
        %800 = vmatpush1.bf16.msra.mxu0 0
        %801 = vmatprep.subr.bf16.mxu0 0
        %802 = vmatpush1.bf16.msra.mxu0 0
        %803 = vmatprep.subr.bf16.mxu0 0
        %804 = vmatpush1.bf16.msra.mxu0 0
        %805 = vmatprep.subr.bf16.mxu0 0
        %806 = vmatpush1.bf16.msra.mxu0 0
        %807 = vmatprep.subr.bf16.mxu0 0
        %808 = vmatpush1.bf16.msra.mxu0 0
        %809 = vmatprep.subr.bf16.mxu0 0
        %810 = vmatpush1.bf16.msra.mxu0 0
        %811 = vmatprep.subr.bf16.mxu0 0
        %812 = vmatpush1.bf16.msra.mxu0 0
        %813 = vmatprep.mubr.bf16.mxu0 0
        %814 = vmatmul.mubr.bf16.gmra.mrb[0].mxu0 %v779
        %v815 = vpop.f32.mrb[0].mxu0
        %v816 = vadd.f32 0.0, %v815
        %v817 = vpop.f32.mrb[0].mxu0
        %v818 = vpop.f32.mrb[0].mxu0
        %v819 = vadd.f32 0.0, %v818
        %v820 = vpop.f32.mrb[0].mxu0
        %821 = vdwg.mxu0
        %v822 = vpack.c.bf16 %v819, %v816
        %v827 = vunpack.c.l.b16 %v673
        %v828 = vunpack.c.l.b16 %v674
        %v829 = vunpack.c.l.b16 %v675
        %v830 = vunpack.c.l.b16 %v676
        %v831 = vpack.c.b16 %v828, %v827
        %v832 = vpack.c.b16 %v830, %v829
        %v836 = vsel %vm736, %v822, 0
        %838 = vmatprep.subr.bf16.mxu0 0
        %839 = vmatpush1.bf16.msra.mxu0 %v831
        %840 = vmatprep.subr.bf16.mxu0 0
        %841 = vmatpush1.bf16.msra.mxu0 %v832
        %842 = vmatprep.subr.bf16.mxu0 0
        %843 = vmatpush1.bf16.msra.mxu0 0
        %844 = vmatprep.subr.bf16.mxu0 0
        %845 = vmatpush1.bf16.msra.mxu0 0
        %846 = vmatprep.subr.bf16.mxu0 0
        %847 = vmatpush1.bf16.msra.mxu0 0
        %848 = vmatprep.subr.bf16.mxu0 0
        %849 = vmatpush1.bf16.msra.mxu0 0
        %850 = vmatprep.subr.bf16.mxu0 0
        %851 = vmatpush1.bf16.msra.mxu0 0
        %852 = vmatprep.subr.bf16.mxu0 0
        %853 = vmatpush1.bf16.msra.mxu0 0
        %854 = vmatprep.subr.bf16.mxu0 0
        %855 = vmatpush1.bf16.msra.mxu0 0
        %856 = vmatprep.subr.bf16.mxu0 0
        %857 = vmatpush1.bf16.msra.mxu0 0
        %858 = vmatprep.subr.bf16.mxu0 0
        %859 = vmatpush1.bf16.msra.mxu0 0
        %860 = vmatprep.subr.bf16.mxu0 0
        %861 = vmatpush1.bf16.msra.mxu0 0
        %862 = vmatprep.subr.bf16.mxu0 0
        %863 = vmatpush1.bf16.msra.mxu0 0
        %864 = vmatprep.subr.bf16.mxu0 0
        %865 = vmatpush1.bf16.msra.mxu0 0
        %866 = vmatprep.subr.bf16.mxu0 0
        %867 = vmatpush1.bf16.msra.mxu0 0
        %868 = vmatprep.subr.bf16.mxu0 0
        %869 = vmatpush1.bf16.msra.mxu0 0
        %870 = vmatprep.mubr.bf16.mxu0 0
        %871 = vmatmul.mubr.bf16.gmra.mrb[0].mxu0 %v836
        %v872 = vpop.f32.mrb[0].mxu0
        %v873 = vadd.f32 0.0, %v872
        %v874 = vpop.f32.mrb[0].mxu0
        %v875 = vpop.f32.mrb[0].mxu0
        %v876 = vadd.f32 0.0, %v875
        %v877 = vpop.f32.mrb[0].mxu0
        %878 = vdwg.mxu0
        %v879 = vmul.f32 %v816, %v677
        %v880 = vmul.f32 %v819, %v678
        %v881 = vmul.f32 %v873, %v679
        %v882 = vmul.f32 %v876, %v680
        %v883 = vadd.f32 %v879, %v881
        %v884 = vadd.f32 %v880, %v882
        %886 = vrot.lane.b32.xlu0 %v822, 96
        %v887 = vpop.permute.xlu0 %886
        %v889 = vsel %vm736, %v887, 0
        %891 = vmatprep.subr.bf16.mxu0 0
        %892 = vmatpush1.bf16.msra.mxu0 %v831
        %893 = vmatprep.subr.bf16.mxu0 0
        %894 = vmatpush1.bf16.msra.mxu0 %v832
        %895 = vmatprep.subr.bf16.mxu0 0
        %896 = vmatpush1.bf16.msra.mxu0 0
        %897 = vmatprep.subr.bf16.mxu0 0
        %898 = vmatpush1.bf16.msra.mxu0 0
        %899 = vmatprep.subr.bf16.mxu0 0
        %900 = vmatpush1.bf16.msra.mxu0 0
        %901 = vmatprep.subr.bf16.mxu0 0
        %902 = vmatpush1.bf16.msra.mxu0 0
        %903 = vmatprep.subr.bf16.mxu0 0
        %904 = vmatpush1.bf16.msra.mxu0 0
        %905 = vmatprep.subr.bf16.mxu0 0
        %906 = vmatpush1.bf16.msra.mxu0 0
        %907 = vmatprep.subr.bf16.mxu0 0
        %908 = vmatpush1.bf16.msra.mxu0 0
        %909 = vmatprep.subr.bf16.mxu0 0
        %910 = vmatpush1.bf16.msra.mxu0 0
        %911 = vmatprep.subr.bf16.mxu0 0
        %912 = vmatpush1.bf16.msra.mxu0 0
        %913 = vmatprep.subr.bf16.mxu0 0
        %914 = vmatpush1.bf16.msra.mxu0 0
        %915 = vmatprep.subr.bf16.mxu0 0
        %916 = vmatpush1.bf16.msra.mxu0 0
        %917 = vmatprep.subr.bf16.mxu0 0
        %918 = vmatpush1.bf16.msra.mxu0 0
        %919 = vmatprep.subr.bf16.mxu0 0
        %920 = vmatpush1.bf16.msra.mxu0 0
        %921 = vmatprep.subr.bf16.mxu0 0
        %922 = vmatpush1.bf16.msra.mxu0 0
        %923 = vmatprep.mubr.bf16.mxu0 0
        %924 = vmatmul.mubr.bf16.gmra.mrb[0].mxu0 %v889
        %v925 = vpop.f32.mrb[0].mxu0
        %v926 = vadd.f32 0.0, %v925
        %v927 = vpop.f32.mrb[0].mxu0
        %v928 = vpop.f32.mrb[0].mxu0
        %v929 = vadd.f32 0.0, %v928
        %v930 = vpop.f32.mrb[0].mxu0
        %931 = vdwg.mxu0
        %934 = vrot.lane.b32.xlu0 %v677, 32
        %v935 = vpop.permute.xlu0 %934
        %936 = vrot.lane.b32.xlu0 %v678, 32
        %v937 = vpop.permute.xlu0 %936
        %v940 = vmul.f32 %v816, %v935
        %v941 = vmul.f32 %v819, %v937
        %v942 = vmul.f32 %v926, %v679
        %v943 = vmul.f32 %v929, %v680
        %946 = vrot.lane.b32.xlu0 %v942, 32
        %v947 = vpop.permute.xlu0 %946
        %948 = vrot.lane.b32.xlu0 %v943, 32
        %v949 = vpop.permute.xlu0 %948
        %v952 = vadd.f32 %v940, %v947
        %v953 = vadd.f32 %v941, %v949
        %vm954 = vcmp.ge.s32.totalorder %v687, 0
        %vm955 = vcmp.lt.s32.totalorder %v687, 8
        %vm956 = vmand %vm954, %vm955
        %v957 = vsel %vm956, 1.0, 0.0
        %vm958 = vcmp.ge.s32.totalorder %v687, 8
        %vm959 = vcmp.lt.s32.totalorder %v687, 16
        %vm960 = vmand %vm958, %vm959
        %v961 = vsel %vm960, 1.0, 0.0
        %vm962 = vcmp.ge.s32.totalorder %v687, 16
        %vm963 = vcmp.lt.s32.totalorder %v687, 24
        %vm964 = vmand %vm962, %vm963
        %v965 = vsel %vm964, 1.0, 0.0
        %vm966 = vcmp.ge.s32.totalorder %v687, 24
        %vm967 = vcmp.lt.s32.totalorder %v687, 32
        %vm968 = vmand %vm966, %vm967
        %v969 = vsel %vm968, 1.0, 0.0
        %vm972 = vcmask 1041408
        %v973 = vsel %vm972, %v957, %v961
        %vm974 = vcmask 1043456
        %v975 = vsel %vm974, %v961, %v965
        %vm976 = vcmask 1045504
        %v977 = vsel %vm976, %v965, %v969
        %v980 = vrot.slane %v952, 6
        %v981 = vrot.slane %v953, 6
        %v982 = vsel %vm972, %v980, %v981
        %v985 = vrot.slane %v952, 4
        %v986 = vrot.slane %v953, 4
        %v987 = vsel %vm974, %v985, %v986
        %v990 = vrot.slane %v952, 2
        %v991 = vrot.slane %v953, 2
        %v992 = vsel %vm976, %v990, %v991
        %v995 = vsel %vm972, %v953, %v980
        %v996 = vsel %vm974, %v982, %v985
        %v997 = vsel %vm976, %v987, %v990
        %1001 = vrot.lane.b32.xlu0 %v957, 32
        %v1002 = vpop.permute.xlu0 %1001
        %1003 = vrot.lane.b32.xlu0 %v973, 32
        %v1004 = vpop.permute.xlu0 %1003
        %1005 = vrot.lane.b32.xlu0 %v975, 32
        %v1006 = vpop.permute.xlu0 %1005
        %1007 = vrot.lane.b32.xlu0 %v977, 32
        %v1008 = vpop.permute.xlu0 %1007
        %1009 = vrot.lane.b32.xlu0 %v969, 32
        %v1010 = vpop.permute.xlu0 %1009
        %v1016 = vmul.f32 %v952, %v1002
        %v1017 = vmul.f32 %v995, %v1004
        %v1018 = vmul.f32 %v996, %v1006
        %v1019 = vmul.f32 %v997, %v1008
        %v1020 = vmul.f32 %v992, %v1010
        %v1021 = vpack.c.bf16 %v1017, %v1016
        %v1022 = vpack.c.bf16 %v1019, %v1018
        %v1023 = vpack.c.bf16 %v1020, %v1020
        %v1026 = vrot.slane %v816, 6
        %v1027 = vrot.slane %v819, 6
        %v1028 = vsel %vm972, %v1026, %v1027
        %v1031 = vrot.slane %v816, 4
        %v1032 = vrot.slane %v819, 4
        %v1033 = vsel %vm974, %v1031, %v1032
        %v1036 = vrot.slane %v816, 2
        %v1037 = vrot.slane %v819, 2
        %v1038 = vsel %vm976, %v1036, %v1037
        %v1041 = vsel %vm972, %v819, %v1026
        %v1042 = vsel %vm974, %v1028, %v1031
        %v1043 = vsel %vm976, %v1033, %v1036
        %1044 = vrot.lane.b32.xlu0 %v957, 64
        %v1045 = vpop.permute.xlu0 %1044
        %1046 = vrot.lane.b32.xlu0 %v973, 64
        %v1047 = vpop.permute.xlu0 %1046
        %1048 = vrot.lane.b32.xlu0 %v975, 64
        %v1049 = vpop.permute.xlu0 %1048
        %1050 = vrot.lane.b32.xlu0 %v977, 64
        %v1051 = vpop.permute.xlu0 %1050
        %1052 = vrot.lane.b32.xlu0 %v969, 64
        %v1053 = vpop.permute.xlu0 %1052
        %v1059 = vmul.f32 %v816, %v1045
        %v1060 = vmul.f32 %v1041, %v1047
        %v1061 = vmul.f32 %v1042, %v1049
        %v1062 = vmul.f32 %v1043, %v1051
        %v1063 = vmul.f32 %v1038, %v1053
        %v1064 = vpack.c.bf16 %v1060, %v1059
        %v1065 = vpack.c.bf16 %v1062, %v1061
        %v1066 = vpack.c.bf16 %v1063, %v1063
        %v1067 = vpack.c.bf16 %v884, %v883
        %1071 = vrot.lane.b32.xlu0 %v1021, 96
        %v1072 = vpop.permute.xlu0 %1071
        %1073 = vrot.lane.b32.xlu0 %v1022, 96
        %v1074 = vpop.permute.xlu0 %1073
        %1075 = vrot.lane.b32.xlu0 %v1023, 96
        %v1076 = vpop.permute.xlu0 %1075
        %v1078 = vsel %vm736, %v1067, 0
        %v1081 = vsel %vm736, %v1072, 0
        %v1084 = vsel %vm736, %v1074, 0
        %v1087 = vsel %vm736, %v1076, 0
        %1089 = vmatprep.subr.bf16.mxu0 0
        %1090 = vmatpush1.bf16.xpose.msra.mxu0 %v1081
        %1091 = vmatprep.subr.bf16.mxu0 0
        %1092 = vmatpush1.bf16.xpose.msra.mxu0 %v1084
        %1093 = vmatprep.subr.bf16.mxu0 0
        %1094 = vmatpush1.bf16.xpose.msra.mxu0 %v1087
        %1095 = vmatprep.subr.bf16.mxu0 0
        %1096 = vmatpush1.bf16.xpose.msra.mxu0 0
        %1097 = vmatprep.subr.bf16.mxu0 0
        %1098 = vmatpush1.bf16.xpose.msra.mxu0 0
        %1099 = vmatprep.subr.bf16.mxu0 0
        %1100 = vmatpush1.bf16.xpose.msra.mxu0 0
        %1101 = vmatprep.subr.bf16.mxu0 0
        %1102 = vmatpush1.bf16.xpose.msra.mxu0 0
        %1103 = vmatprep.subr.bf16.mxu0 0
        %1104 = vmatpush1.bf16.xpose.msra.mxu0 0
        %1105 = vmatprep.subr.bf16.mxu0 0
        %1106 = vmatpush1.bf16.xpose.msra.mxu0 0
        %1107 = vmatprep.subr.bf16.mxu0 0
        %1108 = vmatpush1.bf16.xpose.msra.mxu0 0
        %1109 = vmatprep.subr.bf16.mxu0 0
        %1110 = vmatpush1.bf16.xpose.msra.mxu0 0
        %1111 = vmatprep.subr.bf16.mxu0 0
        %1112 = vmatpush1.bf16.xpose.msra.mxu0 0
        %1113 = vmatprep.subr.bf16.mxu0 0
        %1114 = vmatpush1.bf16.xpose.msra.mxu0 0
        %1115 = vmatprep.subr.bf16.mxu0 0
        %1116 = vmatpush1.bf16.xpose.msra.mxu0 0
        %1117 = vmatprep.subr.bf16.mxu0 0
        %1118 = vmatpush1.bf16.xpose.msra.mxu0 0
        %1119 = vmatprep.subr.bf16.mxu0 0
        %1120 = vmatpush1.bf16.xpose.msra.mxu0 0
        %1121 = vmatprep.mubr.bf16.mxu0 0
        %1122 = vmatmul.mubr.bf16.gmra.mrb[0].mxu0 %v1078
        %v1123 = vpop.f32.mrb[0].mxu0
        %v1124 = vadd.f32 0.0, %v1123
        %v1125 = vpop.f32.mrb[0].mxu0
        %v1126 = vpop.f32.mrb[0].mxu0
        %v1127 = vadd.f32 0.0, %v1126
        %v1128 = vpop.f32.mrb[0].mxu0
        %1129 = vdwg.mxu0
        %v1130 = vmul.f32 %v1124, 0.35355338
        %v1131 = vmul.f32 %v1127, 0.35355338
        %v1132 = vadd.f32 %v1130, %v729
        %v1133 = vadd.f32 %v1131, %v730
        %vm1134 = vcmask 326656
        %v1135 = vsel %vm1134, %v1132, -inf
        %1136 = vmax.xlane.f32.xlu0 %v1135
        %v1137 = vpop.xlane.xlu0 %1136
        %vm1138 = vcmask 320512
        %v1139 = vsel %vm1138, %v1133, -inf
        %1140 = vmax.xlane.f32.xlu0 %v1139
        %v1141 = vpop.xlane.xlu0 %1140
        %v1142 = vsub.f32 %v1132, %v1137
        %v1143 = vsub.f32 %v1133, %v1141
        %v1144 = vmul.f32 %v1142, 1.442695
        %v1145 = vpow.pop %v1144
        %v1146 = vmul.f32 %v1143, 1.442695
        %v1147 = vpow.pop %v1146
        %v1148 = vpack.c.bf16 %v1147, %v1145
        %1152 = vrot.lane.b32.xlu0 %v1064, 64
        %v1153 = vpop.permute.xlu0 %1152
        %1154 = vrot.lane.b32.xlu0 %v1065, 64
        %v1155 = vpop.permute.xlu0 %1154
        %1156 = vrot.lane.b32.xlu0 %v1066, 64
        %v1157 = vpop.permute.xlu0 %1156
        %v1161 = vsel %vm1134, %v1148, 0
        %v1164 = vsel %vm974, %v1157, 0
        %1166 = vmatprep.subr.bf16.mxu0 0
        %1167 = vmatpush1.bf16.msra.mxu0 %v1153
        %1168 = vmatprep.subr.bf16.mxu0 0
        %1169 = vmatpush1.bf16.msra.mxu0 %v1155
        %1170 = vmatprep.subr.bf16.mxu0 0
        %1171 = vmatpush1.bf16.msra.mxu0 %v1164
        %1172 = vmatprep.subr.bf16.mxu0 0
        %1173 = vmatpush1.bf16.msra.mxu0 0
        %1174 = vmatprep.subr.bf16.mxu0 0
        %1175 = vmatpush1.bf16.msra.mxu0 0
        %1176 = vmatprep.subr.bf16.mxu0 0
        %1177 = vmatpush1.bf16.msra.mxu0 0
        %1178 = vmatprep.subr.bf16.mxu0 0
        %1179 = vmatpush1.bf16.msra.mxu0 0
        %1180 = vmatprep.subr.bf16.mxu0 0
        %1181 = vmatpush1.bf16.msra.mxu0 0
        %1182 = vmatprep.subr.bf16.mxu0 0
        %1183 = vmatpush1.bf16.msra.mxu0 0
        %1184 = vmatprep.subr.bf16.mxu0 0
        %1185 = vmatpush1.bf16.msra.mxu0 0
        %1186 = vmatprep.subr.bf16.mxu0 0
        %1187 = vmatpush1.bf16.msra.mxu0 0
        %1188 = vmatprep.subr.bf16.mxu0 0
        %1189 = vmatpush1.bf16.msra.mxu0 0
        %1190 = vmatprep.subr.bf16.mxu0 0
        %1191 = vmatpush1.bf16.msra.mxu0 0
        %1192 = vmatprep.subr.bf16.mxu0 0
        %1193 = vmatpush1.bf16.msra.mxu0 0
        %1194 = vmatprep.subr.bf16.mxu0 0
        %1195 = vmatpush1.bf16.msra.mxu0 0
        %1196 = vmatprep.subr.bf16.mxu0 0
        %1197 = vmatpush1.bf16.msra.mxu0 0
        %1198 = vmatprep.mubr.bf16.mxu0 0
        %1199 = vmatmul.mubr.bf16.gmra.mrb[0].mxu0 %v1161
        %v1200 = vpop.f32.mrb[0].mxu0
        %v1201 = vadd.f32 0.0, %v1200
        %v1202 = vpop.f32.mrb[0].mxu0
        %v1203 = vpop.f32.mrb[0].mxu0
        %v1204 = vadd.f32 0.0, %v1203
        %v1205 = vpop.f32.mrb[0].mxu0
        %1206 = vdwg.mxu0
        %v1207 = vpack.c.bf16 %v973, %v957
        %v1208 = vpack.c.bf16 %v977, %v975
        %v1209 = vpack.c.bf16 %v969, %v969
        %v1211 = vsel %vm974, %v1209, 0
        %1213 = vmatprep.subr.bf16.mxu0 0
        %1214 = vmatpush1.bf16.msra.mxu0 %v1207
        %1215 = vmatprep.subr.bf16.mxu0 0
        %1216 = vmatpush1.bf16.msra.mxu0 %v1208
        %1217 = vmatprep.subr.bf16.mxu0 0
        %1218 = vmatpush1.bf16.msra.mxu0 %v1211
        %1219 = vmatprep.subr.bf16.mxu0 0
        %1220 = vmatpush1.bf16.msra.mxu0 0
        %1221 = vmatprep.subr.bf16.mxu0 0
        %1222 = vmatpush1.bf16.msra.mxu0 0
        %1223 = vmatprep.subr.bf16.mxu0 0
        %1224 = vmatpush1.bf16.msra.mxu0 0
        %1225 = vmatprep.subr.bf16.mxu0 0
        %1226 = vmatpush1.bf16.msra.mxu0 0
        %1227 = vmatprep.subr.bf16.mxu0 0
        %1228 = vmatpush1.bf16.msra.mxu0 0
        %1229 = vmatprep.subr.bf16.mxu0 0
        %1230 = vmatpush1.bf16.msra.mxu0 0
        %1231 = vmatprep.subr.bf16.mxu0 0
        %1232 = vmatpush1.bf16.msra.mxu0 0
        %1233 = vmatprep.subr.bf16.mxu0 0
        %1234 = vmatpush1.bf16.msra.mxu0 0
        %1235 = vmatprep.subr.bf16.mxu0 0
        %1236 = vmatpush1.bf16.msra.mxu0 0
        %1237 = vmatprep.subr.bf16.mxu0 0
        %1238 = vmatpush1.bf16.msra.mxu0 0
        %1239 = vmatprep.subr.bf16.mxu0 0
        %1240 = vmatpush1.bf16.msra.mxu0 0
        %1241 = vmatprep.subr.bf16.mxu0 0
        %1242 = vmatpush1.bf16.msra.mxu0 0
        %1243 = vmatprep.subr.bf16.mxu0 0
        %1244 = vmatpush1.bf16.msra.mxu0 0
        %1245 = vmatprep.mubr.bf16.mxu0 0
        %1246 = vmatmul.mubr.bf16.gmra.mrb[0].mxu0 %v1161
        %v1247 = vpop.f32.mrb[0].mxu0
        %v1248 = vadd.f32 0.0, %v1247
        %v1249 = vpop.f32.mrb[0].mxu0
        %v1250 = vpop.f32.mrb[0].mxu0
        %v1251 = vadd.f32 0.0, %v1250
        %v1252 = vpop.f32.mrb[0].mxu0
        %1253 = vdwg.mxu0
        %v1254 = vrcp.pop %v1248
        %v1255 = vrcp.pop %v1251
        %v1256 = vmul.f32 %v1201, %v1254
        %v1257 = vmul.f32 %v1204, %v1255
        %v1258 = vpack.c.bf16 %v1257, %v1256
        %v1259 = vld [vmem:[%s13] sm:$0xf]
        %v1260 = vld [vmem:[%s13 + $0x4] sm:$0xf]
        %v1261 = vld [vmem:[%s13 + $0x8] sm:$0xf]
        %v1262 = vld [vmem:[%s13 + $0xc] sm:$0xf]
        %v1267 = vunpack.c.l.b16 %v1259
        %v1268 = vunpack.c.l.b16 %v1260
        %v1269 = vunpack.c.l.b16 %v1261
        %v1270 = vunpack.c.l.b16 %v1262
        %v1271 = vpack.c.b16 %v1268, %v1267
        %v1272 = vpack.c.b16 %v1270, %v1269
        %v1276 = vsel %vm736, %v1258, 0
        %1278 = vmatprep.subr.bf16.mxu0 0
        %1279 = vmatpush1.bf16.msra.mxu0 %v1271
        %1280 = vmatprep.subr.bf16.mxu0 0
        %1281 = vmatpush1.bf16.msra.mxu0 %v1272
        %1282 = vmatprep.subr.bf16.mxu0 0
        %1283 = vmatpush1.bf16.msra.mxu0 0
        %1284 = vmatprep.subr.bf16.mxu0 0
        %1285 = vmatpush1.bf16.msra.mxu0 0
        %1286 = vmatprep.subr.bf16.mxu0 0
        %1287 = vmatpush1.bf16.msra.mxu0 0
        %1288 = vmatprep.subr.bf16.mxu0 0
        %1289 = vmatpush1.bf16.msra.mxu0 0
        %1290 = vmatprep.subr.bf16.mxu0 0
        %1291 = vmatpush1.bf16.msra.mxu0 0
        %1292 = vmatprep.subr.bf16.mxu0 0
        %1293 = vmatpush1.bf16.msra.mxu0 0
        %1294 = vmatprep.subr.bf16.mxu0 0
        %1295 = vmatpush1.bf16.msra.mxu0 0
        %1296 = vmatprep.subr.bf16.mxu0 0
        %1297 = vmatpush1.bf16.msra.mxu0 0
        %1298 = vmatprep.subr.bf16.mxu0 0
        %1299 = vmatpush1.bf16.msra.mxu0 0
        %1300 = vmatprep.subr.bf16.mxu0 0
        %1301 = vmatpush1.bf16.msra.mxu0 0
        %1302 = vmatprep.subr.bf16.mxu0 0
        %1303 = vmatpush1.bf16.msra.mxu0 0
        %1304 = vmatprep.subr.bf16.mxu0 0
        %1305 = vmatpush1.bf16.msra.mxu0 0
        %1306 = vmatprep.subr.bf16.mxu0 0
        %1307 = vmatpush1.bf16.msra.mxu0 0
        %1308 = vmatprep.subr.bf16.mxu0 0
        %1309 = vmatpush1.bf16.msra.mxu0 0
        %1310 = vmatprep.mubr.bf16.mxu0 0
        %1311 = vmatmul.mubr.bf16.gmra.mrb[0].mxu0 %v1276
        %v1312 = vpop.f32.mrb[0].mxu0
        %v1313 = vadd.f32 0.0, %v1312
        %v1314 = vpop.f32.mrb[0].mxu0
        %v1315 = vpop.f32.mrb[0].mxu0
        %v1316 = vadd.f32 0.0, %v1315
        %v1317 = vpop.f32.mrb[0].mxu0
        %1318 = vdwg.mxu0
        %v1319 = vadd.f32 %v731, %v1313
        %v1320 = vadd.f32 %v732, %v1316
        %v1321 = vld [vmem:[%s11] sm:$0x1]
        %v1322 = vmul.f32 %v1319, %v1319
        %v1323 = vmul.f32 %v1320, %v1320
        %v1324 = vsel %vm736, %v1322, 0.0
        %1325 = vadd.xlane.f32.xlu0 %v1324
        %v1326 = vpop.xlane.xlu0 %1325
        %v1327 = vsel %vm740, %v1323, 0.0
        %1328 = vadd.xlane.f32.xlu0 %v1327
        %v1329 = vpop.xlane.xlu0 %1328
        %v1330 = vmul.f32 %v1326, %v744
        %v1331 = vmul.f32 %v1329, %v744
        %v1332 = vadd.f32 %v1330, 1e-05
        %v1333 = vadd.f32 %v1331, 1e-05
        %v1334 = vrsqrt.pop %v1332
        %v1335 = vrsqrt.pop %v1333
        %v1336 = vmul.f32 %v1319, %v1334
        %v1337 = vmul.f32 %v1320, %v1335
        %v1339 = vlaneseq
        %v1340 = vshrl.u32 %v1339, 7
        %v1341 = vsub.s32 0, %v1340
        %v1342 = vrot.slane %v1321, %v1341
        %v1344 = vmul.f32 %v1336, %v1342
        %v1345 = vmul.f32 %v1337, %v1342
        %v1346 = vpack.c.bf16 %v1345, %v1344
        %v1347 = vld [vmem:[%s14] sm:$0xf]
        %v1348 = vld [vmem:[%s14 + $0x4] sm:$0xf]
        %v1349 = vld [vmem:[%s14 + $0x8] sm:$0xf]
        %v1350 = vld [vmem:[%s14 + $0xc] sm:$0xf]
        %v1355 = vunpack.c.l.b16 %v1347
        %v1356 = vunpack.c.l.b16 %v1348
        %v1357 = vunpack.c.l.b16 %v1349
        %v1358 = vunpack.c.l.b16 %v1350
        %v1359 = vpack.c.b16 %v1356, %v1355
        %v1360 = vpack.c.b16 %v1358, %v1357
        %v1364 = vsel %vm736, %v1346, 0
        %1366 = vmatprep.subr.bf16.mxu0 0
        %1367 = vmatpush1.bf16.msra.mxu0 %v1359
        %1368 = vmatprep.subr.bf16.mxu0 0
        %1369 = vmatpush1.bf16.msra.mxu0 %v1360
        %1370 = vmatprep.subr.bf16.mxu0 0
        %1371 = vmatpush1.bf16.msra.mxu0 0
        %1372 = vmatprep.subr.bf16.mxu0 0
        %1373 = vmatpush1.bf16.msra.mxu0 0
        %1374 = vmatprep.subr.bf16.mxu0 0
        %1375 = vmatpush1.bf16.msra.mxu0 0
        %1376 = vmatprep.subr.bf16.mxu0 0
        %1377 = vmatpush1.bf16.msra.mxu0 0
        %1378 = vmatprep.subr.bf16.mxu0 0
        %1379 = vmatpush1.bf16.msra.mxu0 0
        %1380 = vmatprep.subr.bf16.mxu0 0
        %1381 = vmatpush1.bf16.msra.mxu0 0
        %1382 = vmatprep.subr.bf16.mxu0 0
        %1383 = vmatpush1.bf16.msra.mxu0 0
        %1384 = vmatprep.subr.bf16.mxu0 0
        %1385 = vmatpush1.bf16.msra.mxu0 0
        %1386 = vmatprep.subr.bf16.mxu0 0
        %1387 = vmatpush1.bf16.msra.mxu0 0
        %1388 = vmatprep.subr.bf16.mxu0 0
        %1389 = vmatpush1.bf16.msra.mxu0 0
        %1390 = vmatprep.subr.bf16.mxu0 0
        %1391 = vmatpush1.bf16.msra.mxu0 0
        %1392 = vmatprep.subr.bf16.mxu0 0
        %1393 = vmatpush1.bf16.msra.mxu0 0
        %1394 = vmatprep.subr.bf16.mxu0 0
        %1395 = vmatpush1.bf16.msra.mxu0 0
        %1396 = vmatprep.subr.bf16.mxu0 0
        %1397 = vmatpush1.bf16.msra.mxu0 0
        %1398 = vmatprep.mubr.bf16.mxu0 0
        %1399 = vmatmul.mubr.bf16.gmra.mrb[0].mxu0 %v1364
        %v1400 = vpop.f32.mrb[0].mxu0
        %v1401 = vadd.f32 0.0, %v1400
        %v1402 = vpop.f32.mrb[0].mxu0
        %v1403 = vpop.f32.mrb[0].mxu0
        %v1404 = vadd.f32 0.0, %v1403
        %v1405 = vpop.f32.mrb[0].mxu0
        %1406 = vdwg.mxu0
        %v1407 = vsub.f32 0.0, %v1401
        %v1408 = vsub.f32 0.0, %v1404
        %v1409 = vmul.f32 %v1407, 1.442695
        %v1410 = vpow.pop %v1409
        %v1411 = vmul.f32 %v1408, 1.442695
        %v1412 = vpow.pop %v1411
        %v1413 = vadd.f32 %v1410, 1.0
        %v1414 = vadd.f32 %v1412, 1.0
        %v1415 = vrcp.pop %v1413
        %v1416 = vmul.f32 1.0, %v1415
        %v1417 = vrcp.pop %v1414
        %v1418 = vmul.f32 1.0, %v1417
        %v1419 = vmul.f32 %v1401, %v1416
        %v1420 = vmul.f32 %v1404, %v1418
        %1423 = vrot.lane.b32.xlu0 %v1401, 64
        %v1424 = vpop.permute.xlu0 %1423
        %1425 = vrot.lane.b32.xlu0 %v1404, 64
        %v1426 = vpop.permute.xlu0 %1425
        %v1429 = vmul.f32 %v1419, %v1424
        %v1430 = vmul.f32 %v1420, %v1426
        %v1431 = vpack.c.bf16 %v1430, %v1429
        %v1432 = vld [vmem:[%s15] sm:$0xf]
        %v1433 = vld [vmem:[%s15 + $0x4] sm:$0xf]
        %v1434 = vld [vmem:[%s15 + $0x8] sm:$0xf]
        %v1435 = vld [vmem:[%s15 + $0xc] sm:$0xf]
        %v1436 = vld [vmem:[%s15 + $0x10] sm:$0xf]
        %v1437 = vld [vmem:[%s15 + $0x14] sm:$0xf]
        %v1438 = vld [vmem:[%s15 + $0x18] sm:$0xf]
        %v1439 = vld [vmem:[%s15 + $0x1c] sm:$0xf]
        %v1448 = vunpack.c.l.b16 %v1432
        %v1449 = vunpack.c.l.b16 %v1433
        %v1450 = vunpack.c.l.b16 %v1434
        %v1451 = vunpack.c.l.b16 %v1435
        %v1452 = vunpack.c.l.b16 %v1436
        %v1453 = vunpack.c.l.b16 %v1437
        %v1454 = vunpack.c.l.b16 %v1438
        %v1455 = vunpack.c.l.b16 %v1439
        %v1456 = vpack.c.b16 %v1449, %v1448
        %v1457 = vpack.c.b16 %v1451, %v1450
        %v1458 = vpack.c.b16 %v1453, %v1452
        %v1459 = vpack.c.b16 %v1455, %v1454
        %vm1464 = vcmask 523264
        %v1466 = vsel %vm1464, %v1431, 0
        %1468 = vmatprep.subr.bf16.mxu0 0
        %1469 = vmatpush1.bf16.msra.mxu0 %v1456
        %1470 = vmatprep.subr.bf16.mxu0 0
        %1471 = vmatpush1.bf16.msra.mxu0 %v1457
        %1472 = vmatprep.subr.bf16.mxu0 0
        %1473 = vmatpush1.bf16.msra.mxu0 %v1458
        %1474 = vmatprep.subr.bf16.mxu0 0
        %1475 = vmatpush1.bf16.msra.mxu0 %v1459
        %1476 = vmatprep.subr.bf16.mxu0 0
        %1477 = vmatpush1.bf16.msra.mxu0 0
        %1478 = vmatprep.subr.bf16.mxu0 0
        %1479 = vmatpush1.bf16.msra.mxu0 0
        %1480 = vmatprep.subr.bf16.mxu0 0
        %1481 = vmatpush1.bf16.msra.mxu0 0
        %1482 = vmatprep.subr.bf16.mxu0 0
        %1483 = vmatpush1.bf16.msra.mxu0 0
        %1484 = vmatprep.subr.bf16.mxu0 0
        %1485 = vmatpush1.bf16.msra.mxu0 0
        %1486 = vmatprep.subr.bf16.mxu0 0
        %1487 = vmatpush1.bf16.msra.mxu0 0
        %1488 = vmatprep.subr.bf16.mxu0 0
        %1489 = vmatpush1.bf16.msra.mxu0 0
        %1490 = vmatprep.subr.bf16.mxu0 0
        %1491 = vmatpush1.bf16.msra.mxu0 0
        %1492 = vmatprep.subr.bf16.mxu0 0
        %1493 = vmatpush1.bf16.msra.mxu0 0
        %1494 = vmatprep.subr.bf16.mxu0 0
        %1495 = vmatpush1.bf16.msra.mxu0 0
        %1496 = vmatprep.subr.bf16.mxu0 0
        %1497 = vmatpush1.bf16.msra.mxu0 0
        %1498 = vmatprep.subr.bf16.mxu0 0
        %1499 = vmatpush1.bf16.msra.mxu0 0
        %1500 = vmatprep.mubr.bf16.mxu0 0
        %1501 = vmatmul.mubr.bf16.gmra.mrb[0].mxu0 %v1466
        %v1502 = vpop.f32.mrb[0].mxu0
        %v1503 = vadd.f32 0.0, %v1502
        %v1504 = vpop.f32.mrb[0].mxu0
        %v1505 = vpop.f32.mrb[0].mxu0
        %v1506 = vadd.f32 0.0, %v1505
        %v1507 = vpop.f32.mrb[0].mxu0
        %1508 = vdwg.mxu0
        %v1509 = vadd.f32 %v1319, %v1503
        %v1510 = vadd.f32 %v1320, %v1506
        %s1511 = scalar_lea.vmem %s10, 1
        %v1512 = vld [vmem:[%s1511] sm:$0x1]
        %v1513 = vmul.f32 %v1509, %v1509
        %v1514 = vmul.f32 %v1510, %v1510
        %v1515 = vsel %vm736, %v1513, 0.0
        %1516 = vadd.xlane.f32.xlu0 %v1515
        %v1517 = vpop.xlane.xlu0 %1516
        %v1518 = vsel %vm740, %v1514, 0.0
        %1519 = vadd.xlane.f32.xlu0 %v1518
        %v1520 = vpop.xlane.xlu0 %1519
        %v1521 = vmul.f32 %v1517, %v744
        %v1522 = vmul.f32 %v1520, %v744
        %v1523 = vadd.f32 %v1521, 1e-05
        %v1524 = vadd.f32 %v1522, 1e-05
        %v1525 = vrsqrt.pop %v1523
        %v1526 = vrsqrt.pop %v1524
        %v1527 = vmul.f32 %v1509, %v1525
        %v1528 = vmul.f32 %v1510, %v1526
        %v1530 = vlaneseq
        %v1531 = vshrl.u32 %v1530, 7
        %v1532 = vsub.s32 0, %v1531
        %v1533 = vrot.slane %v1512, %v1532
        %v1535 = vmul.f32 %v1527, %v1533
        %v1536 = vmul.f32 %v1528, %v1533
        %v1537 = vpack.c.bf16 %v1536, %v1535
        %s1538 = scalar_lea.vmem %s12, 16
        %v1539 = vld [vmem:[%s1538] sm:$0xf]
        %v1540 = vld [vmem:[%s1538 + $0x4] sm:$0xf]
        %v1541 = vld [vmem:[%s1538 + $0x8] sm:$0xf]
        %v1542 = vld [vmem:[%s1538 + $0xc] sm:$0xf]
        %v1547 = vunpack.c.l.b16 %v1539
        %v1548 = vunpack.c.l.b16 %v1540
        %v1549 = vunpack.c.l.b16 %v1541
        %v1550 = vunpack.c.l.b16 %v1542
        %v1551 = vpack.c.b16 %v1548, %v1547
        %v1552 = vpack.c.b16 %v1550, %v1549
        %v1556 = vsel %vm736, %v1537, 0
        %1558 = vmatprep.subr.bf16.mxu0 0
        %1559 = vmatpush1.bf16.msra.mxu0 %v1551
        %1560 = vmatprep.subr.bf16.mxu0 0
        %1561 = vmatpush1.bf16.msra.mxu0 %v1552
        %1562 = vmatprep.subr.bf16.mxu0 0
        %1563 = vmatpush1.bf16.msra.mxu0 0
        %1564 = vmatprep.subr.bf16.mxu0 0
        %1565 = vmatpush1.bf16.msra.mxu0 0
        %1566 = vmatprep.subr.bf16.mxu0 0
        %1567 = vmatpush1.bf16.msra.mxu0 0
        %1568 = vmatprep.subr.bf16.mxu0 0
        %1569 = vmatpush1.bf16.msra.mxu0 0
        %1570 = vmatprep.subr.bf16.mxu0 0
        %1571 = vmatpush1.bf16.msra.mxu0 0
        %1572 = vmatprep.subr.bf16.mxu0 0
        %1573 = vmatpush1.bf16.msra.mxu0 0
        %1574 = vmatprep.subr.bf16.mxu0 0
        %1575 = vmatpush1.bf16.msra.mxu0 0
        %1576 = vmatprep.subr.bf16.mxu0 0
        %1577 = vmatpush1.bf16.msra.mxu0 0
        %1578 = vmatprep.subr.bf16.mxu0 0
        %1579 = vmatpush1.bf16.msra.mxu0 0
        %1580 = vmatprep.subr.bf16.mxu0 0
        %1581 = vmatpush1.bf16.msra.mxu0 0
        %1582 = vmatprep.subr.bf16.mxu0 0
        %1583 = vmatpush1.bf16.msra.mxu0 0
        %1584 = vmatprep.subr.bf16.mxu0 0
        %1585 = vmatpush1.bf16.msra.mxu0 0
        %1586 = vmatprep.subr.bf16.mxu0 0
        %1587 = vmatpush1.bf16.msra.mxu0 0
        %1588 = vmatprep.subr.bf16.mxu0 0
        %1589 = vmatpush1.bf16.msra.mxu0 0
        %1590 = vmatprep.mubr.bf16.mxu0 0
        %1591 = vmatmul.mubr.bf16.gmra.mrb[0].mxu0 %v1556
        %v1592 = vpop.f32.mrb[0].mxu0
        %v1593 = vadd.f32 0.0, %v1592
        %v1594 = vpop.f32.mrb[0].mxu0
        %v1595 = vpop.f32.mrb[0].mxu0
        %v1596 = vadd.f32 0.0, %v1595
        %v1597 = vpop.f32.mrb[0].mxu0
        %1598 = vdwg.mxu0
        %v1599 = vpack.c.bf16 %v1596, %v1593
        %1601 = vrot.lane.b32.xlu0 %v1599, 96
        %v1602 = vpop.permute.xlu0 %1601
        %v1604 = vsel %vm736, %v1602, 0
        %1606 = vmatprep.subr.bf16.mxu0 0
        %1607 = vmatpush1.bf16.msra.mxu0 %v831
        %1608 = vmatprep.subr.bf16.mxu0 0
        %1609 = vmatpush1.bf16.msra.mxu0 %v832
        %1610 = vmatprep.subr.bf16.mxu0 0
        %1611 = vmatpush1.bf16.msra.mxu0 0
        %1612 = vmatprep.subr.bf16.mxu0 0
        %1613 = vmatpush1.bf16.msra.mxu0 0
        %1614 = vmatprep.subr.bf16.mxu0 0
        %1615 = vmatpush1.bf16.msra.mxu0 0
        %1616 = vmatprep.subr.bf16.mxu0 0
        %1617 = vmatpush1.bf16.msra.mxu0 0
        %1618 = vmatprep.subr.bf16.mxu0 0
        %1619 = vmatpush1.bf16.msra.mxu0 0
        %1620 = vmatprep.subr.bf16.mxu0 0
        %1621 = vmatpush1.bf16.msra.mxu0 0
        %1622 = vmatprep.subr.bf16.mxu0 0
        %1623 = vmatpush1.bf16.msra.mxu0 0
        %1624 = vmatprep.subr.bf16.mxu0 0
        %1625 = vmatpush1.bf16.msra.mxu0 0
        %1626 = vmatprep.subr.bf16.mxu0 0
        %1627 = vmatpush1.bf16.msra.mxu0 0
        %1628 = vmatprep.subr.bf16.mxu0 0
        %1629 = vmatpush1.bf16.msra.mxu0 0
        %1630 = vmatprep.subr.bf16.mxu0 0
        %1631 = vmatpush1.bf16.msra.mxu0 0
        %1632 = vmatprep.subr.bf16.mxu0 0
        %1633 = vmatpush1.bf16.msra.mxu0 0
        %1634 = vmatprep.subr.bf16.mxu0 0
        %1635 = vmatpush1.bf16.msra.mxu0 0
        %1636 = vmatprep.subr.bf16.mxu0 0
        %1637 = vmatpush1.bf16.msra.mxu0 0
        %1638 = vmatprep.mubr.bf16.mxu0 0
        %1639 = vmatmul.mubr.bf16.gmra.mrb[0].mxu0 %v1604
        %v1640 = vpop.f32.mrb[0].mxu0
        %v1641 = vadd.f32 0.0, %v1640
        %v1642 = vpop.f32.mrb[0].mxu0
        %v1643 = vpop.f32.mrb[0].mxu0
        %v1644 = vadd.f32 0.0, %v1643
        %v1645 = vpop.f32.mrb[0].mxu0
        %1646 = vdwg.mxu0
        %v1647 = vmul.f32 %v1593, %v935
        %v1648 = vmul.f32 %v1596, %v937
        %v1649 = vmul.f32 %v1641, %v679
        %v1650 = vmul.f32 %v1644, %v680
        %1653 = vrot.lane.b32.xlu0 %v1649, 32
        %v1654 = vpop.permute.xlu0 %1653
        %1655 = vrot.lane.b32.xlu0 %v1650, 32
        %v1656 = vpop.permute.xlu0 %1655
        %v1659 = vadd.f32 %v1647, %v1654
        %v1660 = vadd.f32 %v1648, %v1656
        %vm1661 = vcmp.ge.s32.totalorder %v687, 4
        %vm1662 = vmand %vm1661, %vm955
        %v1663 = vsel %vm1662, 0.0, -1e+09
        %v1664 = vld [vmem:[%s664] sm:$0x1]
        %vm1665 = vcmp.gt.f32.partialorder %v1664, 0.0
        %v1666 = vsel %vm1665, 1, 0
        %v1667 = vlaneseq
        %v1668 = vshrl.u32 %v1667, 7
        %v1669 = vsub.s32 0, %v1668
        %v1670 = vrot.slane %v1666, %v1669
        %vm1671 = vcmp.eq.s32.totalorder %v1670, 1
        %vm1672 = vmand %vm688, %vm1671
        %v1673 = vsel %vm1672, 0.0, -1e+09
        %1675 = vrot.lane.b32.xlu0 %v1673, 10
        %v1676 = vpop.permute.xlu0 %1675
        %v1678 = vsel %vm722, %v1663, %v1676
        %1680 = vrot.lane.b32.xlu0 %v1678, 18
        %v1681 = vpop.permute.xlu0 %1680
        %1683 = vrot.lane.b32.xlu0 %v1678, 36
        %v1684 = vpop.permute.xlu0 %1683
        %1686 = vrot.lane.b32.xlu0 %v1678, 54
        %v1687 = vpop.permute.xlu0 %1686
        %vm1689 = vcmask 146432
        %v1690 = vsel %vm1689, %v1678, %v1681
        %vm1691 = vcmask 293888
        %v1692 = vsel %vm1691, %v1690, %v1684
        %vm1693 = vcmask 441344
        %v1694 = vsel %vm1693, %v1692, %v1687
        %v1695 = vld [vmem:[%s661] sm:$0xff]
        %v1696 = vmul.f32 %v1695, %v1695
        %v1697 = vsel %vm736, %v1696, 0.0
        %1698 = vadd.xlane.f32.xlu0 %v1697
        %v1699 = vpop.xlane.xlu0 %1698
        %v1700 = vmul.f32 %v1699, %v744
        %v1701 = vadd.f32 %v1700, 1e-05
        %v1702 = vrsqrt.pop %v1701
        %v1703 = vmul.f32 %v1695, %v1702
        %v1704 = vmul.f32 %v1703, %v757
        %v1705 = vpack.c.bf16 %v1704, %v1704
        %v1707 = vsel %vm736, %v1705, 0
        %1709 = vmatprep.subr.bf16.mxu0 0
        %1710 = vmatpush1.bf16.msra.mxu0 %v774
        %1711 = vmatprep.subr.bf16.mxu0 0
        %1712 = vmatpush1.bf16.msra.mxu0 %v775
        %1713 = vmatprep.subr.bf16.mxu0 0
        %1714 = vmatpush1.bf16.msra.mxu0 0
        %1715 = vmatprep.subr.bf16.mxu0 0
        %1716 = vmatpush1.bf16.msra.mxu0 0
        %1717 = vmatprep.subr.bf16.mxu0 0
        %1718 = vmatpush1.bf16.msra.mxu0 0
        %1719 = vmatprep.subr.bf16.mxu0 0
        %1720 = vmatpush1.bf16.msra.mxu0 0
        %1721 = vmatprep.subr.bf16.mxu0 0
        %1722 = vmatpush1.bf16.msra.mxu0 0
        %1723 = vmatprep.subr.bf16.mxu0 0
        %1724 = vmatpush1.bf16.msra.mxu0 0
        %1725 = vmatprep.subr.bf16.mxu0 0
        %1726 = vmatpush1.bf16.msra.mxu0 0
        %1727 = vmatprep.subr.bf16.mxu0 0
        %1728 = vmatpush1.bf16.msra.mxu0 0
        %1729 = vmatprep.subr.bf16.mxu0 0
        %1730 = vmatpush1.bf16.msra.mxu0 0
        %1731 = vmatprep.subr.bf16.mxu0 0
        %1732 = vmatpush1.bf16.msra.mxu0 0
        %1733 = vmatprep.subr.bf16.mxu0 0
        %1734 = vmatpush1.bf16.msra.mxu0 0
        %1735 = vmatprep.subr.bf16.mxu0 0
        %1736 = vmatpush1.bf16.msra.mxu0 0
        %1737 = vmatprep.subr.bf16.mxu0 0
        %1738 = vmatpush1.bf16.msra.mxu0 0
        %1739 = vmatprep.subr.bf16.mxu0 0
        %1740 = vmatpush1.bf16.msra.mxu0 0
        %1741 = vmatprep.mubr.bf16.mxu0 0
        %1742 = vmatmul.mubr.bf16.gmra.mrb[0].mxu0 %v1707
        %v1743 = vpop.f32.mrb[0].mxu0
        %v1744 = vadd.f32 0.0, %v1743
        %v1745 = vpop.f32.mrb[0].mxu0
        %v1746 = vpop.f32.mrb[0].mxu0
        %v1747 = vpop.f32.mrb[0].mxu0
        %1748 = vdwg.mxu0
        %v1749 = vpack.c.bf16 %v1744, %v1744
        %v1751 = vsel %vm736, %v1749, 0
        %1753 = vmatprep.subr.bf16.mxu0 0
        %1754 = vmatpush1.bf16.msra.mxu0 %v831
        %1755 = vmatprep.subr.bf16.mxu0 0
        %1756 = vmatpush1.bf16.msra.mxu0 %v832
        %1757 = vmatprep.subr.bf16.mxu0 0
        %1758 = vmatpush1.bf16.msra.mxu0 0
        %1759 = vmatprep.subr.bf16.mxu0 0
        %1760 = vmatpush1.bf16.msra.mxu0 0
        %1761 = vmatprep.subr.bf16.mxu0 0
        %1762 = vmatpush1.bf16.msra.mxu0 0
        %1763 = vmatprep.subr.bf16.mxu0 0
        %1764 = vmatpush1.bf16.msra.mxu0 0
        %1765 = vmatprep.subr.bf16.mxu0 0
        %1766 = vmatpush1.bf16.msra.mxu0 0
        %1767 = vmatprep.subr.bf16.mxu0 0
        %1768 = vmatpush1.bf16.msra.mxu0 0
        %1769 = vmatprep.subr.bf16.mxu0 0
        %1770 = vmatpush1.bf16.msra.mxu0 0
        %1771 = vmatprep.subr.bf16.mxu0 0
        %1772 = vmatpush1.bf16.msra.mxu0 0
        %1773 = vmatprep.subr.bf16.mxu0 0
        %1774 = vmatpush1.bf16.msra.mxu0 0
        %1775 = vmatprep.subr.bf16.mxu0 0
        %1776 = vmatpush1.bf16.msra.mxu0 0
        %1777 = vmatprep.subr.bf16.mxu0 0
        %1778 = vmatpush1.bf16.msra.mxu0 0
        %1779 = vmatprep.subr.bf16.mxu0 0
        %1780 = vmatpush1.bf16.msra.mxu0 0
        %1781 = vmatprep.subr.bf16.mxu0 0
        %1782 = vmatpush1.bf16.msra.mxu0 0
        %1783 = vmatprep.subr.bf16.mxu0 0
        %1784 = vmatpush1.bf16.msra.mxu0 0
        %1785 = vmatprep.mubr.bf16.mxu0 0
        %1786 = vmatmul.mubr.bf16.gmra.mrb[0].mxu0 %v1751
        %v1787 = vpop.f32.mrb[0].mxu0
        %v1788 = vadd.f32 0.0, %v1787
        %v1789 = vpop.f32.mrb[0].mxu0
        %v1790 = vpop.f32.mrb[0].mxu0
        %v1791 = vpop.f32.mrb[0].mxu0
        %1792 = vdwg.mxu0
        %v1793 = vmul.f32 %v1744, %v681
        %v1794 = vmul.f32 %v1788, %v682
        %v1795 = vadd.f32 %v1793, %v1794
        %1797 = vrot.lane.b32.xlu0 %v1749, 96
        %v1798 = vpop.permute.xlu0 %1797
        %v1800 = vsel %vm736, %v1798, 0
        %1802 = vmatprep.subr.bf16.mxu0 0
        %1803 = vmatpush1.bf16.msra.mxu0 %v831
        %1804 = vmatprep.subr.bf16.mxu0 0
        %1805 = vmatpush1.bf16.msra.mxu0 %v832
        %1806 = vmatprep.subr.bf16.mxu0 0
        %1807 = vmatpush1.bf16.msra.mxu0 0
        %1808 = vmatprep.subr.bf16.mxu0 0
        %1809 = vmatpush1.bf16.msra.mxu0 0
        %1810 = vmatprep.subr.bf16.mxu0 0
        %1811 = vmatpush1.bf16.msra.mxu0 0
        %1812 = vmatprep.subr.bf16.mxu0 0
        %1813 = vmatpush1.bf16.msra.mxu0 0
        %1814 = vmatprep.subr.bf16.mxu0 0
        %1815 = vmatpush1.bf16.msra.mxu0 0
        %1816 = vmatprep.subr.bf16.mxu0 0
        %1817 = vmatpush1.bf16.msra.mxu0 0
        %1818 = vmatprep.subr.bf16.mxu0 0
        %1819 = vmatpush1.bf16.msra.mxu0 0
        %1820 = vmatprep.subr.bf16.mxu0 0
        %1821 = vmatpush1.bf16.msra.mxu0 0
        %1822 = vmatprep.subr.bf16.mxu0 0
        %1823 = vmatpush1.bf16.msra.mxu0 0
        %1824 = vmatprep.subr.bf16.mxu0 0
        %1825 = vmatpush1.bf16.msra.mxu0 0
        %1826 = vmatprep.subr.bf16.mxu0 0
        %1827 = vmatpush1.bf16.msra.mxu0 0
        %1828 = vmatprep.subr.bf16.mxu0 0
        %1829 = vmatpush1.bf16.msra.mxu0 0
        %1830 = vmatprep.subr.bf16.mxu0 0
        %1831 = vmatpush1.bf16.msra.mxu0 0
        %1832 = vmatprep.subr.bf16.mxu0 0
        %1833 = vmatpush1.bf16.msra.mxu0 0
        %1834 = vmatprep.mubr.bf16.mxu0 0
        %1835 = vmatmul.mubr.bf16.gmra.mrb[0].mxu0 %v1800
        %v1836 = vpop.f32.mrb[0].mxu0
        %v1837 = vadd.f32 0.0, %v1836
        %v1838 = vpop.f32.mrb[0].mxu0
        %v1839 = vpop.f32.mrb[0].mxu0
        %v1840 = vpop.f32.mrb[0].mxu0
        %1841 = vdwg.mxu0
        %1843 = vrot.lane.b32.xlu0 %v681, 32
        %v1844 = vpop.permute.xlu0 %1843
        %v1846 = vmul.f32 %v1744, %v1844
        %v1847 = vmul.f32 %v1837, %v682
        %1849 = vrot.lane.b32.xlu0 %v1847, 32
        %v1850 = vpop.permute.xlu0 %1849
        %v1852 = vadd.f32 %v1846, %v1850
        %v1854 = vrot.slane %v1852, 6
        %v1856 = vsel %vm972, %v953, %v1854
        %v1858 = vrot.slane %v1744, 6
        %v1860 = vsel %vm972, %v819, %v1858
        %v1864 = vrot.slane %v1856, 6
        %v1865 = vsel %vm972, %v980, %v1864
        %v1866 = vrot.slane %v1854, 6
        %v1867 = vsel %vm972, %v1864, %v1866
        %v1870 = vrot.slane %v1856, 4
        %v1871 = vsel %vm974, %v985, %v1870
        %v1872 = vrot.slane %v1854, 4
        %v1873 = vsel %vm974, %v1870, %v1872
        %v1876 = vrot.slane %v1856, 2
        %v1877 = vsel %vm976, %v990, %v1876
        %v1878 = vrot.slane %v1854, 2
        %v1879 = vsel %vm976, %v1876, %v1878
        %v1882 = vsel %vm972, %v1854, %v980
        %v1883 = vsel %vm974, %v1867, %v985
        %v1884 = vsel %vm976, %v1873, %v990
        %1885 = vrot.lane.b32.xlu0 %v961, 32
        %v1886 = vpop.permute.xlu0 %1885
        %1887 = vrot.lane.b32.xlu0 %v965, 32
        %v1888 = vpop.permute.xlu0 %1887
        %v1891 = vmul.f32 %v1856, %v1002
        %v1892 = vmul.f32 %v1882, %v1004
        %v1893 = vmul.f32 %v1865, %v1886
        %v1894 = vmul.f32 %v1883, %v1006
        %v1895 = vmul.f32 %v1871, %v1888
        %v1896 = vmul.f32 %v1884, %v1008
        %v1897 = vmul.f32 %v1877, %v1010
        %v1898 = vmul.f32 %v1879, %v1010
        %v1899 = vpack.c.bf16 %v1891, %v1016
        %v1900 = vpack.c.bf16 %v1893, %v1892
        %v1901 = vpack.c.bf16 %v1895, %v1894
        %v1902 = vpack.c.bf16 %v1897, %v1896
        %v1903 = vpack.c.bf16 %v1898, %v1898
        %v1905 = vrot.slane %v1860, 6
        %v1906 = vsel %vm972, %v1026, %v1905
        %v1907 = vrot.slane %v1858, 6
        %v1908 = vsel %vm972, %v1905, %v1907
        %v1911 = vrot.slane %v1860, 4
        %v1912 = vsel %vm974, %v1031, %v1911
        %v1913 = vrot.slane %v1858, 4
        %v1914 = vsel %vm974, %v1911, %v1913
        %v1917 = vrot.slane %v1860, 2
        %v1918 = vsel %vm976, %v1036, %v1917
        %v1919 = vrot.slane %v1858, 2
        %v1920 = vsel %vm976, %v1917, %v1919
        %v1923 = vsel %vm972, %v1858, %v1026
        %v1924 = vsel %vm974, %v1908, %v1031
        %v1925 = vsel %vm976, %v1914, %v1036
        %1926 = vrot.lane.b32.xlu0 %v961, 64
        %v1927 = vpop.permute.xlu0 %1926
        %1928 = vrot.lane.b32.xlu0 %v965, 64
        %v1929 = vpop.permute.xlu0 %1928
        %v1932 = vmul.f32 %v1860, %v1045
        %v1933 = vmul.f32 %v1923, %v1047
        %v1934 = vmul.f32 %v1906, %v1927
        %v1935 = vmul.f32 %v1924, %v1049
        %v1936 = vmul.f32 %v1912, %v1929
        %v1937 = vmul.f32 %v1925, %v1051
        %v1938 = vmul.f32 %v1918, %v1053
        %v1939 = vmul.f32 %v1920, %v1053
        %v1940 = vpack.c.bf16 %v1932, %v1059
        %v1941 = vpack.c.bf16 %v1934, %v1933
        %v1942 = vpack.c.bf16 %v1936, %v1935
        %v1943 = vpack.c.bf16 %v1938, %v1937
        %v1944 = vpack.c.bf16 %v1939, %v1939
        %v1945 = vpack.c.bf16 %v1795, %v1795
        %1951 = vrot.lane.b32.xlu0 %v1899, 96
        %v1952 = vpop.permute.xlu0 %1951
        %1953 = vrot.lane.b32.xlu0 %v1900, 96
        %v1954 = vpop.permute.xlu0 %1953
        %1955 = vrot.lane.b32.xlu0 %v1901, 96
        %v1956 = vpop.permute.xlu0 %1955
        %1957 = vrot.lane.b32.xlu0 %v1902, 96
        %v1958 = vpop.permute.xlu0 %1957
        %1959 = vrot.lane.b32.xlu0 %v1903, 96
        %v1960 = vpop.permute.xlu0 %1959
        %v1962 = vsel %vm736, %v1945, 0
        %v1965 = vsel %vm736, %v1952, 0
        %v1968 = vsel %vm736, %v1954, 0
        %v1971 = vsel %vm736, %v1956, 0
        %v1974 = vsel %vm736, %v1958, 0
        %v1977 = vsel %vm736, %v1960, 0
        %1979 = vmatprep.subr.bf16.mxu0 0
        %1980 = vmatpush1.bf16.xpose.msra.mxu0 %v1965
        %1981 = vmatprep.subr.bf16.mxu0 0
        %1982 = vmatpush1.bf16.xpose.msra.mxu0 %v1968
        %1983 = vmatprep.subr.bf16.mxu0 0
        %1984 = vmatpush1.bf16.xpose.msra.mxu0 %v1971
        %1985 = vmatprep.subr.bf16.mxu0 0
        %1986 = vmatpush1.bf16.xpose.msra.mxu0 %v1974
        %1987 = vmatprep.subr.bf16.mxu0 0
        %1988 = vmatpush1.bf16.xpose.msra.mxu0 %v1977
        %1989 = vmatprep.subr.bf16.mxu0 0
        %1990 = vmatpush1.bf16.xpose.msra.mxu0 0
        %1991 = vmatprep.subr.bf16.mxu0 0
        %1992 = vmatpush1.bf16.xpose.msra.mxu0 0
        %1993 = vmatprep.subr.bf16.mxu0 0
        %1994 = vmatpush1.bf16.xpose.msra.mxu0 0
        %1995 = vmatprep.subr.bf16.mxu0 0
        %1996 = vmatpush1.bf16.xpose.msra.mxu0 0
        %1997 = vmatprep.subr.bf16.mxu0 0
        %1998 = vmatpush1.bf16.xpose.msra.mxu0 0
        %1999 = vmatprep.subr.bf16.mxu0 0
        %2000 = vmatpush1.bf16.xpose.msra.mxu0 0
        %2001 = vmatprep.subr.bf16.mxu0 0
        %2002 = vmatpush1.bf16.xpose.msra.mxu0 0
        %2003 = vmatprep.subr.bf16.mxu0 0
        %2004 = vmatpush1.bf16.xpose.msra.mxu0 0
        %2005 = vmatprep.subr.bf16.mxu0 0
        %2006 = vmatpush1.bf16.xpose.msra.mxu0 0
        %2007 = vmatprep.subr.bf16.mxu0 0
        %2008 = vmatpush1.bf16.xpose.msra.mxu0 0
        %2009 = vmatprep.subr.bf16.mxu0 0
        %2010 = vmatpush1.bf16.xpose.msra.mxu0 0
        %2011 = vmatprep.mubr.bf16.mxu0 0
        %2012 = vmatmul.mubr.bf16.gmra.mrb[0].mxu0 %v1962
        %v2013 = vpop.f32.mrb[0].mxu0
        %v2014 = vadd.f32 0.0, %v2013
        %v2015 = vpop.f32.mrb[0].mxu0
        %v2016 = vpop.f32.mrb[0].mxu0
        %v2017 = vpop.f32.mrb[0].mxu0
        %2018 = vdwg.mxu0
        %v2019 = vmul.f32 %v2014, 0.35355338
        %v2020 = vadd.f32 %v2019, %v1694
        %vm2021 = vcmask 588800
        %v2022 = vsel %vm2021, %v2020, -inf
        %2023 = vmax.xlane.f32.xlu0 %v2022
        %v2024 = vpop.xlane.xlu0 %2023
        %v2025 = vsub.f32 %v2020, %v2024
        %v2026 = vmul.f32 %v2025, 1.442695
        %v2027 = vpow.pop %v2026
        %v2028 = vpack.c.bf16 %v2027, %v2027
        %2034 = vrot.lane.b32.xlu0 %v1940, 64
        %v2035 = vpop.permute.xlu0 %2034
        %2036 = vrot.lane.b32.xlu0 %v1941, 64
        %v2037 = vpop.permute.xlu0 %2036
        %2038 = vrot.lane.b32.xlu0 %v1942, 64
        %v2039 = vpop.permute.xlu0 %2038
        %2040 = vrot.lane.b32.xlu0 %v1943, 64
        %v2041 = vpop.permute.xlu0 %2040
        %2042 = vrot.lane.b32.xlu0 %v1944, 64
        %v2043 = vpop.permute.xlu0 %2042
        %v2049 = vsel %vm2021, %v2028, 0
        %v2052 = vsel %vm974, %v2043, 0
        %2054 = vmatprep.subr.bf16.mxu0 0
        %2055 = vmatpush1.bf16.msra.mxu0 %v2035
        %2056 = vmatprep.subr.bf16.mxu0 0
        %2057 = vmatpush1.bf16.msra.mxu0 %v2037
        %2058 = vmatprep.subr.bf16.mxu0 0
        %2059 = vmatpush1.bf16.msra.mxu0 %v2039
        %2060 = vmatprep.subr.bf16.mxu0 0
        %2061 = vmatpush1.bf16.msra.mxu0 %v2041
        %2062 = vmatprep.subr.bf16.mxu0 0
        %2063 = vmatpush1.bf16.msra.mxu0 %v2052
        %2064 = vmatprep.subr.bf16.mxu0 0
        %2065 = vmatpush1.bf16.msra.mxu0 0
        %2066 = vmatprep.subr.bf16.mxu0 0
        %2067 = vmatpush1.bf16.msra.mxu0 0
        %2068 = vmatprep.subr.bf16.mxu0 0
        %2069 = vmatpush1.bf16.msra.mxu0 0
        %2070 = vmatprep.subr.bf16.mxu0 0
        %2071 = vmatpush1.bf16.msra.mxu0 0
        %2072 = vmatprep.subr.bf16.mxu0 0
        %2073 = vmatpush1.bf16.msra.mxu0 0
        %2074 = vmatprep.subr.bf16.mxu0 0
        %2075 = vmatpush1.bf16.msra.mxu0 0
        %2076 = vmatprep.subr.bf16.mxu0 0
        %2077 = vmatpush1.bf16.msra.mxu0 0
        %2078 = vmatprep.subr.bf16.mxu0 0
        %2079 = vmatpush1.bf16.msra.mxu0 0
        %2080 = vmatprep.subr.bf16.mxu0 0
        %2081 = vmatpush1.bf16.msra.mxu0 0
        %2082 = vmatprep.subr.bf16.mxu0 0
        %2083 = vmatpush1.bf16.msra.mxu0 0
        %2084 = vmatprep.subr.bf16.mxu0 0
        %2085 = vmatpush1.bf16.msra.mxu0 0
        %2086 = vmatprep.mubr.bf16.mxu0 0
        %2087 = vmatmul.mubr.bf16.gmra.mrb[0].mxu0 %v2049
        %v2088 = vpop.f32.mrb[0].mxu0
        %v2089 = vadd.f32 0.0, %v2088
        %v2090 = vpop.f32.mrb[0].mxu0
        %v2091 = vpop.f32.mrb[0].mxu0
        %v2092 = vpop.f32.mrb[0].mxu0
        %2093 = vdwg.mxu0
        %v2094 = vpack.c.bf16 %v957, %v957
        %v2095 = vpack.c.bf16 %v961, %v973
        %v2096 = vpack.c.bf16 %v965, %v975
        %v2097 = vpack.c.bf16 %v969, %v977
        %2098 = vmatprep.subr.bf16.mxu0 0
        %2099 = vmatpush1.bf16.msra.mxu0 %v2094
        %2100 = vmatprep.subr.bf16.mxu0 0
        %2101 = vmatpush1.bf16.msra.mxu0 %v2095
        %2102 = vmatprep.subr.bf16.mxu0 0
        %2103 = vmatpush1.bf16.msra.mxu0 %v2096
        %2104 = vmatprep.subr.bf16.mxu0 0
        %2105 = vmatpush1.bf16.msra.mxu0 %v2097
        %2106 = vmatprep.subr.bf16.mxu0 0
        %2107 = vmatpush1.bf16.msra.mxu0 %v1211
        %2108 = vmatprep.subr.bf16.mxu0 0
        %2109 = vmatpush1.bf16.msra.mxu0 0
        %2110 = vmatprep.subr.bf16.mxu0 0
        %2111 = vmatpush1.bf16.msra.mxu0 0
        %2112 = vmatprep.subr.bf16.mxu0 0
        %2113 = vmatpush1.bf16.msra.mxu0 0
        %2114 = vmatprep.subr.bf16.mxu0 0
        %2115 = vmatpush1.bf16.msra.mxu0 0
        %2116 = vmatprep.subr.bf16.mxu0 0
        %2117 = vmatpush1.bf16.msra.mxu0 0
        %2118 = vmatprep.subr.bf16.mxu0 0
        %2119 = vmatpush1.bf16.msra.mxu0 0
        %2120 = vmatprep.subr.bf16.mxu0 0
        %2121 = vmatpush1.bf16.msra.mxu0 0
        %2122 = vmatprep.subr.bf16.mxu0 0
        %2123 = vmatpush1.bf16.msra.mxu0 0
        %2124 = vmatprep.subr.bf16.mxu0 0
        %2125 = vmatpush1.bf16.msra.mxu0 0
        %2126 = vmatprep.subr.bf16.mxu0 0
        %2127 = vmatpush1.bf16.msra.mxu0 0
        %2128 = vmatprep.subr.bf16.mxu0 0
        %2129 = vmatpush1.bf16.msra.mxu0 0
        %2130 = vmatprep.mubr.bf16.mxu0 0
        %2131 = vmatmul.mubr.bf16.gmra.mrb[0].mxu0 %v2049
        %v2132 = vpop.f32.mrb[0].mxu0
        %v2133 = vadd.f32 0.0, %v2132
        %v2134 = vpop.f32.mrb[0].mxu0
        %v2135 = vpop.f32.mrb[0].mxu0
        %v2136 = vpop.f32.mrb[0].mxu0
        %2137 = vdwg.mxu0
        %v2138 = vrcp.pop %v2133
        %v2139 = vmul.f32 %v2089, %v2138
        %v2140 = vpack.c.bf16 %v2139, %v2139
        %v2142 = vsel %vm736, %v2140, 0
        %2144 = vmatprep.subr.bf16.mxu0 0
        %2145 = vmatpush1.bf16.msra.mxu0 %v1271
        %2146 = vmatprep.subr.bf16.mxu0 0
        %2147 = vmatpush1.bf16.msra.mxu0 %v1272
        %2148 = vmatprep.subr.bf16.mxu0 0
        %2149 = vmatpush1.bf16.msra.mxu0 0
        %2150 = vmatprep.subr.bf16.mxu0 0
        %2151 = vmatpush1.bf16.msra.mxu0 0
        %2152 = vmatprep.subr.bf16.mxu0 0
        %2153 = vmatpush1.bf16.msra.mxu0 0
        %2154 = vmatprep.subr.bf16.mxu0 0
        %2155 = vmatpush1.bf16.msra.mxu0 0
        %2156 = vmatprep.subr.bf16.mxu0 0
        %2157 = vmatpush1.bf16.msra.mxu0 0
        %2158 = vmatprep.subr.bf16.mxu0 0
        %2159 = vmatpush1.bf16.msra.mxu0 0
        %2160 = vmatprep.subr.bf16.mxu0 0
        %2161 = vmatpush1.bf16.msra.mxu0 0
        %2162 = vmatprep.subr.bf16.mxu0 0
        %2163 = vmatpush1.bf16.msra.mxu0 0
        %2164 = vmatprep.subr.bf16.mxu0 0
        %2165 = vmatpush1.bf16.msra.mxu0 0
        %2166 = vmatprep.subr.bf16.mxu0 0
        %2167 = vmatpush1.bf16.msra.mxu0 0
        %2168 = vmatprep.subr.bf16.mxu0 0
        %2169 = vmatpush1.bf16.msra.mxu0 0
        %2170 = vmatprep.subr.bf16.mxu0 0
        %2171 = vmatpush1.bf16.msra.mxu0 0
        %2172 = vmatprep.subr.bf16.mxu0 0
        %2173 = vmatpush1.bf16.msra.mxu0 0
        %2174 = vmatprep.subr.bf16.mxu0 0
        %2175 = vmatpush1.bf16.msra.mxu0 0
        %2176 = vmatprep.mubr.bf16.mxu0 0
        %2177 = vmatmul.mubr.bf16.gmra.mrb[0].mxu0 %v2142
        %v2178 = vpop.f32.mrb[0].mxu0
        %v2179 = vadd.f32 0.0, %v2178
        %v2180 = vpop.f32.mrb[0].mxu0
        %v2181 = vpop.f32.mrb[0].mxu0
        %v2182 = vpop.f32.mrb[0].mxu0
        %2183 = vdwg.mxu0
        %v2184 = vadd.f32 %v1695, %v2179
        %v2185 = vmul.f32 %v2184, %v2184
        %v2186 = vsel %vm736, %v2185, 0.0
        %2187 = vadd.xlane.f32.xlu0 %v2186
        %v2188 = vpop.xlane.xlu0 %2187
        %v2189 = vmul.f32 %v2188, %v744
        %v2190 = vadd.f32 %v2189, 1e-05
        %v2191 = vrsqrt.pop %v2190
        %v2192 = vmul.f32 %v2184, %v2191
        %v2193 = vmul.f32 %v2192, %v1342
        %v2194 = vpack.c.bf16 %v2193, %v2193
        %v2196 = vsel %vm736, %v2194, 0
        %2198 = vmatprep.subr.bf16.mxu0 0
        %2199 = vmatpush1.bf16.msra.mxu0 %v1359
        %2200 = vmatprep.subr.bf16.mxu0 0
        %2201 = vmatpush1.bf16.msra.mxu0 %v1360
        %2202 = vmatprep.subr.bf16.mxu0 0
        %2203 = vmatpush1.bf16.msra.mxu0 0
        %2204 = vmatprep.subr.bf16.mxu0 0
        %2205 = vmatpush1.bf16.msra.mxu0 0
        %2206 = vmatprep.subr.bf16.mxu0 0
        %2207 = vmatpush1.bf16.msra.mxu0 0
        %2208 = vmatprep.subr.bf16.mxu0 0
        %2209 = vmatpush1.bf16.msra.mxu0 0
        %2210 = vmatprep.subr.bf16.mxu0 0
        %2211 = vmatpush1.bf16.msra.mxu0 0
        %2212 = vmatprep.subr.bf16.mxu0 0
        %2213 = vmatpush1.bf16.msra.mxu0 0
        %2214 = vmatprep.subr.bf16.mxu0 0
        %2215 = vmatpush1.bf16.msra.mxu0 0
        %2216 = vmatprep.subr.bf16.mxu0 0
        %2217 = vmatpush1.bf16.msra.mxu0 0
        %2218 = vmatprep.subr.bf16.mxu0 0
        %2219 = vmatpush1.bf16.msra.mxu0 0
        %2220 = vmatprep.subr.bf16.mxu0 0
        %2221 = vmatpush1.bf16.msra.mxu0 0
        %2222 = vmatprep.subr.bf16.mxu0 0
        %2223 = vmatpush1.bf16.msra.mxu0 0
        %2224 = vmatprep.subr.bf16.mxu0 0
        %2225 = vmatpush1.bf16.msra.mxu0 0
        %2226 = vmatprep.subr.bf16.mxu0 0
        %2227 = vmatpush1.bf16.msra.mxu0 0
        %2228 = vmatprep.subr.bf16.mxu0 0
        %2229 = vmatpush1.bf16.msra.mxu0 0
        %2230 = vmatprep.mubr.bf16.mxu0 0
        %2231 = vmatmul.mubr.bf16.gmra.mrb[0].mxu0 %v2196
        %v2232 = vpop.f32.mrb[0].mxu0
        %v2233 = vadd.f32 0.0, %v2232
        %v2234 = vpop.f32.mrb[0].mxu0
        %v2235 = vpop.f32.mrb[0].mxu0
        %v2236 = vpop.f32.mrb[0].mxu0
        %2237 = vdwg.mxu0
        %v2238 = vsub.f32 0.0, %v2233
        %v2239 = vmul.f32 %v2238, 1.442695
        %v2240 = vpow.pop %v2239
        %v2241 = vadd.f32 %v2240, 1.0
        %v2242 = vrcp.pop %v2241
        %v2243 = vmul.f32 1.0, %v2242
        %v2244 = vmul.f32 %v2233, %v2243
        %2246 = vrot.lane.b32.xlu0 %v2233, 64
        %v2247 = vpop.permute.xlu0 %2246
        %v2249 = vmul.f32 %v2244, %v2247
        %v2250 = vpack.c.bf16 %v2249, %v2249
        %v2252 = vsel %vm1464, %v2250, 0
        %2254 = vmatprep.subr.bf16.mxu0 0
        %2255 = vmatpush1.bf16.msra.mxu0 %v1456
        %2256 = vmatprep.subr.bf16.mxu0 0
        %2257 = vmatpush1.bf16.msra.mxu0 %v1457
        %2258 = vmatprep.subr.bf16.mxu0 0
        %2259 = vmatpush1.bf16.msra.mxu0 %v1458
        %2260 = vmatprep.subr.bf16.mxu0 0
        %2261 = vmatpush1.bf16.msra.mxu0 %v1459
        %2262 = vmatprep.subr.bf16.mxu0 0
        %2263 = vmatpush1.bf16.msra.mxu0 0
        %2264 = vmatprep.subr.bf16.mxu0 0
        %2265 = vmatpush1.bf16.msra.mxu0 0
        %2266 = vmatprep.subr.bf16.mxu0 0
        %2267 = vmatpush1.bf16.msra.mxu0 0
        %2268 = vmatprep.subr.bf16.mxu0 0
        %2269 = vmatpush1.bf16.msra.mxu0 0
        %2270 = vmatprep.subr.bf16.mxu0 0
        %2271 = vmatpush1.bf16.msra.mxu0 0
        %2272 = vmatprep.subr.bf16.mxu0 0
        %2273 = vmatpush1.bf16.msra.mxu0 0
        %2274 = vmatprep.subr.bf16.mxu0 0
        %2275 = vmatpush1.bf16.msra.mxu0 0
        %2276 = vmatprep.subr.bf16.mxu0 0
        %2277 = vmatpush1.bf16.msra.mxu0 0
        %2278 = vmatprep.subr.bf16.mxu0 0
        %2279 = vmatpush1.bf16.msra.mxu0 0
        %2280 = vmatprep.subr.bf16.mxu0 0
        %2281 = vmatpush1.bf16.msra.mxu0 0
        %2282 = vmatprep.subr.bf16.mxu0 0
        %2283 = vmatpush1.bf16.msra.mxu0 0
        %2284 = vmatprep.subr.bf16.mxu0 0
        %2285 = vmatpush1.bf16.msra.mxu0 0
        %2286 = vmatprep.mubr.bf16.mxu0 0
        %2287 = vmatmul.mubr.bf16.gmra.mrb[0].mxu0 %v2252
        %v2288 = vpop.f32.mrb[0].mxu0
        %v2289 = vadd.f32 0.0, %v2288
        %v2290 = vpop.f32.mrb[0].mxu0
        %v2291 = vpop.f32.mrb[0].mxu0
        %v2292 = vpop.f32.mrb[0].mxu0
        %2293 = vdwg.mxu0
        %v2294 = vadd.f32 %v2184, %v2289
        %v2295 = vmul.f32 %v2294, %v2294
        %v2296 = vsel %vm736, %v2295, 0.0
        %2297 = vadd.xlane.f32.xlu0 %v2296
        %v2298 = vpop.xlane.xlu0 %2297
        %v2299 = vmul.f32 %v2298, %v744
        %v2300 = vadd.f32 %v2299, 1e-05
        %v2301 = vrsqrt.pop %v2300
        %v2302 = vmul.f32 %v2294, %v2301
        %v2303 = vmul.f32 %v2302, %v1533
        %v2304 = vpack.c.bf16 %v2303, %v2303
        %v2306 = vsel %vm736, %v2304, 0
        %2308 = vmatprep.subr.bf16.mxu0 0
        %2309 = vmatpush1.bf16.msra.mxu0 %v1551
        %2310 = vmatprep.subr.bf16.mxu0 0
        %2311 = vmatpush1.bf16.msra.mxu0 %v1552
        %2312 = vmatprep.subr.bf16.mxu0 0
        %2313 = vmatpush1.bf16.msra.mxu0 0
        %2314 = vmatprep.subr.bf16.mxu0 0
        %2315 = vmatpush1.bf16.msra.mxu0 0
        %2316 = vmatprep.subr.bf16.mxu0 0
        %2317 = vmatpush1.bf16.msra.mxu0 0
        %2318 = vmatprep.subr.bf16.mxu0 0
        %2319 = vmatpush1.bf16.msra.mxu0 0
        %2320 = vmatprep.subr.bf16.mxu0 0
        %2321 = vmatpush1.bf16.msra.mxu0 0
        %2322 = vmatprep.subr.bf16.mxu0 0
        %2323 = vmatpush1.bf16.msra.mxu0 0
        %2324 = vmatprep.subr.bf16.mxu0 0
        %2325 = vmatpush1.bf16.msra.mxu0 0
        %2326 = vmatprep.subr.bf16.mxu0 0
        %2327 = vmatpush1.bf16.msra.mxu0 0
        %2328 = vmatprep.subr.bf16.mxu0 0
        %2329 = vmatpush1.bf16.msra.mxu0 0
        %2330 = vmatprep.subr.bf16.mxu0 0
        %2331 = vmatpush1.bf16.msra.mxu0 0
        %2332 = vmatprep.subr.bf16.mxu0 0
        %2333 = vmatpush1.bf16.msra.mxu0 0
        %2334 = vmatprep.subr.bf16.mxu0 0
        %2335 = vmatpush1.bf16.msra.mxu0 0
        %2336 = vmatprep.subr.bf16.mxu0 0
        %2337 = vmatpush1.bf16.msra.mxu0 0
        %2338 = vmatprep.subr.bf16.mxu0 0
        %2339 = vmatpush1.bf16.msra.mxu0 0
        %2340 = vmatprep.mubr.bf16.mxu0 0
        %2341 = vmatmul.mubr.bf16.gmra.mrb[0].mxu0 %v2306
        %v2342 = vpop.f32.mrb[0].mxu0
        %v2343 = vadd.f32 0.0, %v2342
        %v2344 = vpop.f32.mrb[0].mxu0
        %v2345 = vpop.f32.mrb[0].mxu0
        %v2346 = vpop.f32.mrb[0].mxu0
        %2347 = vdwg.mxu0
        %v2348 = vpack.c.bf16 %v2343, %v2343
        %v2350 = vsel %vm736, %v2348, 0
        %2352 = vmatprep.subr.bf16.mxu0 0
        %2353 = vmatpush1.bf16.msra.mxu0 %v831
        %2354 = vmatprep.subr.bf16.mxu0 0
        %2355 = vmatpush1.bf16.msra.mxu0 %v832
        %2356 = vmatprep.subr.bf16.mxu0 0
        %2357 = vmatpush1.bf16.msra.mxu0 0
        %2358 = vmatprep.subr.bf16.mxu0 0
        %2359 = vmatpush1.bf16.msra.mxu0 0
        %2360 = vmatprep.subr.bf16.mxu0 0
        %2361 = vmatpush1.bf16.msra.mxu0 0
        %2362 = vmatprep.subr.bf16.mxu0 0
        %2363 = vmatpush1.bf16.msra.mxu0 0
        %2364 = vmatprep.subr.bf16.mxu0 0
        %2365 = vmatpush1.bf16.msra.mxu0 0
        %2366 = vmatprep.subr.bf16.mxu0 0
        %2367 = vmatpush1.bf16.msra.mxu0 0
        %2368 = vmatprep.subr.bf16.mxu0 0
        %2369 = vmatpush1.bf16.msra.mxu0 0
        %2370 = vmatprep.subr.bf16.mxu0 0
        %2371 = vmatpush1.bf16.msra.mxu0 0
        %2372 = vmatprep.subr.bf16.mxu0 0
        %2373 = vmatpush1.bf16.msra.mxu0 0
        %2374 = vmatprep.subr.bf16.mxu0 0
        %2375 = vmatpush1.bf16.msra.mxu0 0
        %2376 = vmatprep.subr.bf16.mxu0 0
        %2377 = vmatpush1.bf16.msra.mxu0 0
        %2378 = vmatprep.subr.bf16.mxu0 0
        %2379 = vmatpush1.bf16.msra.mxu0 0
        %2380 = vmatprep.subr.bf16.mxu0 0
        %2381 = vmatpush1.bf16.msra.mxu0 0
        %2382 = vmatprep.subr.bf16.mxu0 0
        %2383 = vmatpush1.bf16.msra.mxu0 0
        %2384 = vmatprep.mubr.bf16.mxu0 0
        %2385 = vmatmul.mubr.bf16.gmra.mrb[0].mxu0 %v2350
        %v2386 = vpop.f32.mrb[0].mxu0
        %v2387 = vadd.f32 0.0, %v2386
        %v2388 = vpop.f32.mrb[0].mxu0
        %v2389 = vpop.f32.mrb[0].mxu0
        %v2390 = vpop.f32.mrb[0].mxu0
        %2391 = vdwg.mxu0
        %v2392 = vmul.f32 %v2343, %v681
        %v2393 = vmul.f32 %v2387, %v682
        %v2394 = vadd.f32 %v2392, %v2393
        %2396 = vrot.lane.b32.xlu0 %v2348, 96
        %v2397 = vpop.permute.xlu0 %2396
        %v2399 = vsel %vm736, %v2397, 0
        %2401 = vmatprep.subr.bf16.mxu0 0
        %2402 = vmatpush1.bf16.msra.mxu0 %v831
        %2403 = vmatprep.subr.bf16.mxu0 0
        %2404 = vmatpush1.bf16.msra.mxu0 %v832
        %2405 = vmatprep.subr.bf16.mxu0 0
        %2406 = vmatpush1.bf16.msra.mxu0 0
        %2407 = vmatprep.subr.bf16.mxu0 0
        %2408 = vmatpush1.bf16.msra.mxu0 0
        %2409 = vmatprep.subr.bf16.mxu0 0
        %2410 = vmatpush1.bf16.msra.mxu0 0
        %2411 = vmatprep.subr.bf16.mxu0 0
        %2412 = vmatpush1.bf16.msra.mxu0 0
        %2413 = vmatprep.subr.bf16.mxu0 0
        %2414 = vmatpush1.bf16.msra.mxu0 0
        %2415 = vmatprep.subr.bf16.mxu0 0
        %2416 = vmatpush1.bf16.msra.mxu0 0
        %2417 = vmatprep.subr.bf16.mxu0 0
        %2418 = vmatpush1.bf16.msra.mxu0 0
        %2419 = vmatprep.subr.bf16.mxu0 0
        %2420 = vmatpush1.bf16.msra.mxu0 0
        %2421 = vmatprep.subr.bf16.mxu0 0
        %2422 = vmatpush1.bf16.msra.mxu0 0
        %2423 = vmatprep.subr.bf16.mxu0 0
        %2424 = vmatpush1.bf16.msra.mxu0 0
        %2425 = vmatprep.subr.bf16.mxu0 0
        %2426 = vmatpush1.bf16.msra.mxu0 0
        %2427 = vmatprep.subr.bf16.mxu0 0
        %2428 = vmatpush1.bf16.msra.mxu0 0
        %2429 = vmatprep.subr.bf16.mxu0 0
        %2430 = vmatpush1.bf16.msra.mxu0 0
        %2431 = vmatprep.subr.bf16.mxu0 0
        %2432 = vmatpush1.bf16.msra.mxu0 0
        %2433 = vmatprep.mubr.bf16.mxu0 0
        %2434 = vmatmul.mubr.bf16.gmra.mrb[0].mxu0 %v2399
        %v2435 = vpop.f32.mrb[0].mxu0
        %v2436 = vadd.f32 0.0, %v2435
        %v2437 = vpop.f32.mrb[0].mxu0
        %v2438 = vpop.f32.mrb[0].mxu0
        %v2439 = vpop.f32.mrb[0].mxu0
        %2440 = vdwg.mxu0
        %v2441 = vmul.f32 %v2343, %v1844
        %v2442 = vmul.f32 %v2436, %v682
        %2444 = vrot.lane.b32.xlu0 %v2442, 32
        %v2445 = vpop.permute.xlu0 %2444
        %v2447 = vadd.f32 %v2441, %v2445
        %v2449 = vrot.slane %v2447, 6
        %v2451 = vsel %vm972, %v1660, %v2449
        %v2453 = vrot.slane %v2343, 6
        %v2455 = vsel %vm972, %v1596, %v2453
        %v2458 = vrot.slane %v1659, 6
        %v2459 = vrot.slane %v2451, 6
        %v2460 = vsel %vm972, %v2458, %v2459
        %v2461 = vrot.slane %v2449, 6
        %v2462 = vsel %vm972, %v2459, %v2461
        %v2466 = vrot.slane %v1659, 4
        %v2467 = vrot.slane %v2451, 4
        %v2468 = vsel %vm974, %v2466, %v2467
        %v2469 = vrot.slane %v2449, 4
        %v2470 = vsel %vm974, %v2467, %v2469
        %v2474 = vrot.slane %v1659, 2
        %v2475 = vrot.slane %v2451, 2
        %v2476 = vsel %vm976, %v2474, %v2475
        %v2477 = vrot.slane %v2449, 2
        %v2478 = vsel %vm976, %v2475, %v2477
        %v2482 = vsel %vm972, %v2449, %v2458
        %v2483 = vsel %vm974, %v2462, %v2466
        %v2484 = vsel %vm976, %v2470, %v2474
        %v2485 = vmul.f32 %v1659, %v1002
        %v2486 = vmul.f32 %v2451, %v1002
        %v2487 = vmul.f32 %v2482, %v1004
        %v2488 = vmul.f32 %v2460, %v1886
        %v2489 = vmul.f32 %v2483, %v1006
        %v2490 = vmul.f32 %v2468, %v1888
        %v2491 = vmul.f32 %v2484, %v1008
        %v2492 = vmul.f32 %v2476, %v1010
        %v2493 = vmul.f32 %v2478, %v1010
        %v2494 = vpack.c.bf16 %v2486, %v2485
        %v2495 = vpack.c.bf16 %v2488, %v2487
        %v2496 = vpack.c.bf16 %v2490, %v2489
        %v2497 = vpack.c.bf16 %v2492, %v2491
        %v2498 = vpack.c.bf16 %v2493, %v2493
        %v2501 = vrot.slane %v1593, 6
        %v2502 = vrot.slane %v2455, 6
        %v2503 = vsel %vm972, %v2501, %v2502
        %v2504 = vrot.slane %v2453, 6
        %v2505 = vsel %vm972, %v2502, %v2504
        %v2509 = vrot.slane %v1593, 4
        %v2510 = vrot.slane %v2455, 4
        %v2511 = vsel %vm974, %v2509, %v2510
        %v2512 = vrot.slane %v2453, 4
        %v2513 = vsel %vm974, %v2510, %v2512
        %v2517 = vrot.slane %v1593, 2
        %v2518 = vrot.slane %v2455, 2
        %v2519 = vsel %vm976, %v2517, %v2518
        %v2520 = vrot.slane %v2453, 2
        %v2521 = vsel %vm976, %v2518, %v2520
        %v2525 = vsel %vm972, %v2453, %v2501
        %v2526 = vsel %vm974, %v2505, %v2509
        %v2527 = vsel %vm976, %v2513, %v2517
        %v2528 = vmul.f32 %v1593, %v1045
        %v2529 = vmul.f32 %v2455, %v1045
        %v2530 = vmul.f32 %v2525, %v1047
        %v2531 = vmul.f32 %v2503, %v1927
        %v2532 = vmul.f32 %v2526, %v1049
        %v2533 = vmul.f32 %v2511, %v1929
        %v2534 = vmul.f32 %v2527, %v1051
        %v2535 = vmul.f32 %v2519, %v1053
        %v2536 = vmul.f32 %v2521, %v1053
        %v2537 = vpack.c.bf16 %v2529, %v2528
        %v2538 = vpack.c.bf16 %v2531, %v2530
        %v2539 = vpack.c.bf16 %v2533, %v2532
        %v2540 = vpack.c.bf16 %v2535, %v2534
        %v2541 = vpack.c.bf16 %v2536, %v2536
        %v2542 = vpack.c.bf16 %v2394, %v2394
        %2548 = vrot.lane.b32.xlu0 %v2494, 96
        %v2549 = vpop.permute.xlu0 %2548
        %2550 = vrot.lane.b32.xlu0 %v2495, 96
        %v2551 = vpop.permute.xlu0 %2550
        %2552 = vrot.lane.b32.xlu0 %v2496, 96
        %v2553 = vpop.permute.xlu0 %2552
        %2554 = vrot.lane.b32.xlu0 %v2497, 96
        %v2555 = vpop.permute.xlu0 %2554
        %2556 = vrot.lane.b32.xlu0 %v2498, 96
        %v2557 = vpop.permute.xlu0 %2556
        %v2559 = vsel %vm736, %v2542, 0
        %v2562 = vsel %vm736, %v2549, 0
        %v2565 = vsel %vm736, %v2551, 0
        %v2568 = vsel %vm736, %v2553, 0
        %v2571 = vsel %vm736, %v2555, 0
        %v2574 = vsel %vm736, %v2557, 0
        %2576 = vmatprep.subr.bf16.mxu0 0
        %2577 = vmatpush1.bf16.xpose.msra.mxu0 %v2562
        %2578 = vmatprep.subr.bf16.mxu0 0
        %2579 = vmatpush1.bf16.xpose.msra.mxu0 %v2565
        %2580 = vmatprep.subr.bf16.mxu0 0
        %2581 = vmatpush1.bf16.xpose.msra.mxu0 %v2568
        %2582 = vmatprep.subr.bf16.mxu0 0
        %2583 = vmatpush1.bf16.xpose.msra.mxu0 %v2571
        %2584 = vmatprep.subr.bf16.mxu0 0
        %2585 = vmatpush1.bf16.xpose.msra.mxu0 %v2574
        %2586 = vmatprep.subr.bf16.mxu0 0
        %2587 = vmatpush1.bf16.xpose.msra.mxu0 0
        %2588 = vmatprep.subr.bf16.mxu0 0
        %2589 = vmatpush1.bf16.xpose.msra.mxu0 0
        %2590 = vmatprep.subr.bf16.mxu0 0
        %2591 = vmatpush1.bf16.xpose.msra.mxu0 0
        %2592 = vmatprep.subr.bf16.mxu0 0
        %2593 = vmatpush1.bf16.xpose.msra.mxu0 0
        %2594 = vmatprep.subr.bf16.mxu0 0
        %2595 = vmatpush1.bf16.xpose.msra.mxu0 0
        %2596 = vmatprep.subr.bf16.mxu0 0
        %2597 = vmatpush1.bf16.xpose.msra.mxu0 0
        %2598 = vmatprep.subr.bf16.mxu0 0
        %2599 = vmatpush1.bf16.xpose.msra.mxu0 0
        %2600 = vmatprep.subr.bf16.mxu0 0
        %2601 = vmatpush1.bf16.xpose.msra.mxu0 0
        %2602 = vmatprep.subr.bf16.mxu0 0
        %2603 = vmatpush1.bf16.xpose.msra.mxu0 0
        %2604 = vmatprep.subr.bf16.mxu0 0
        %2605 = vmatpush1.bf16.xpose.msra.mxu0 0
        %2606 = vmatprep.subr.bf16.mxu0 0
        %2607 = vmatpush1.bf16.xpose.msra.mxu0 0
        %2608 = vmatprep.mubr.bf16.mxu0 0
        %2609 = vmatmul.mubr.bf16.gmra.mrb[0].mxu0 %v2559
        %v2610 = vpop.f32.mrb[0].mxu0
        %v2611 = vadd.f32 0.0, %v2610
        %v2612 = vpop.f32.mrb[0].mxu0
        %v2613 = vpop.f32.mrb[0].mxu0
        %v2614 = vpop.f32.mrb[0].mxu0
        %2615 = vdwg.mxu0
        %v2616 = vmul.f32 %v2611, 0.35355338
        %v2617 = vadd.f32 %v2616, %v1694
        %v2618 = vsel %vm2021, %v2617, -inf
        %2619 = vmax.xlane.f32.xlu0 %v2618
        %v2620 = vpop.xlane.xlu0 %2619
        %v2621 = vsub.f32 %v2617, %v2620
        %v2622 = vmul.f32 %v2621, 1.442695
        %v2623 = vpow.pop %v2622
        %v2624 = vpack.c.bf16 %v2623, %v2623
        %2630 = vrot.lane.b32.xlu0 %v2537, 64
        %v2631 = vpop.permute.xlu0 %2630
        %2632 = vrot.lane.b32.xlu0 %v2538, 64
        %v2633 = vpop.permute.xlu0 %2632
        %2634 = vrot.lane.b32.xlu0 %v2539, 64
        %v2635 = vpop.permute.xlu0 %2634
        %2636 = vrot.lane.b32.xlu0 %v2540, 64
        %v2637 = vpop.permute.xlu0 %2636
        %2638 = vrot.lane.b32.xlu0 %v2541, 64
        %v2639 = vpop.permute.xlu0 %2638
        %v2645 = vsel %vm2021, %v2624, 0
        %v2648 = vsel %vm974, %v2639, 0
        %2650 = vmatprep.subr.bf16.mxu0 0
        %2651 = vmatpush1.bf16.msra.mxu0 %v2631
        %2652 = vmatprep.subr.bf16.mxu0 0
        %2653 = vmatpush1.bf16.msra.mxu0 %v2633
        %2654 = vmatprep.subr.bf16.mxu0 0
        %2655 = vmatpush1.bf16.msra.mxu0 %v2635
        %2656 = vmatprep.subr.bf16.mxu0 0
        %2657 = vmatpush1.bf16.msra.mxu0 %v2637
        %2658 = vmatprep.subr.bf16.mxu0 0
        %2659 = vmatpush1.bf16.msra.mxu0 %v2648
        %2660 = vmatprep.subr.bf16.mxu0 0
        %2661 = vmatpush1.bf16.msra.mxu0 0
        %2662 = vmatprep.subr.bf16.mxu0 0
        %2663 = vmatpush1.bf16.msra.mxu0 0
        %2664 = vmatprep.subr.bf16.mxu0 0
        %2665 = vmatpush1.bf16.msra.mxu0 0
        %2666 = vmatprep.subr.bf16.mxu0 0
        %2667 = vmatpush1.bf16.msra.mxu0 0
        %2668 = vmatprep.subr.bf16.mxu0 0
        %2669 = vmatpush1.bf16.msra.mxu0 0
        %2670 = vmatprep.subr.bf16.mxu0 0
        %2671 = vmatpush1.bf16.msra.mxu0 0
        %2672 = vmatprep.subr.bf16.mxu0 0
        %2673 = vmatpush1.bf16.msra.mxu0 0
        %2674 = vmatprep.subr.bf16.mxu0 0
        %2675 = vmatpush1.bf16.msra.mxu0 0
        %2676 = vmatprep.subr.bf16.mxu0 0
        %2677 = vmatpush1.bf16.msra.mxu0 0
        %2678 = vmatprep.subr.bf16.mxu0 0
        %2679 = vmatpush1.bf16.msra.mxu0 0
        %2680 = vmatprep.subr.bf16.mxu0 0
        %2681 = vmatpush1.bf16.msra.mxu0 0
        %2682 = vmatprep.mubr.bf16.mxu0 0
        %2683 = vmatmul.mubr.bf16.gmra.mrb[0].mxu0 %v2645
        %v2684 = vpop.f32.mrb[0].mxu0
        %v2685 = vadd.f32 0.0, %v2684
        %v2686 = vpop.f32.mrb[0].mxu0
        %v2687 = vpop.f32.mrb[0].mxu0
        %v2688 = vpop.f32.mrb[0].mxu0
        %2689 = vdwg.mxu0
        %2690 = vmatprep.subr.bf16.mxu0 0
        %2691 = vmatpush1.bf16.msra.mxu0 %v2094
        %2692 = vmatprep.subr.bf16.mxu0 0
        %2693 = vmatpush1.bf16.msra.mxu0 %v2095
        %2694 = vmatprep.subr.bf16.mxu0 0
        %2695 = vmatpush1.bf16.msra.mxu0 %v2096
        %2696 = vmatprep.subr.bf16.mxu0 0
        %2697 = vmatpush1.bf16.msra.mxu0 %v2097
        %2698 = vmatprep.subr.bf16.mxu0 0
        %2699 = vmatpush1.bf16.msra.mxu0 %v1211
        %2700 = vmatprep.subr.bf16.mxu0 0
        %2701 = vmatpush1.bf16.msra.mxu0 0
        %2702 = vmatprep.subr.bf16.mxu0 0
        %2703 = vmatpush1.bf16.msra.mxu0 0
        %2704 = vmatprep.subr.bf16.mxu0 0
        %2705 = vmatpush1.bf16.msra.mxu0 0
        %2706 = vmatprep.subr.bf16.mxu0 0
        %2707 = vmatpush1.bf16.msra.mxu0 0
        %2708 = vmatprep.subr.bf16.mxu0 0
        %2709 = vmatpush1.bf16.msra.mxu0 0
        %2710 = vmatprep.subr.bf16.mxu0 0
        %2711 = vmatpush1.bf16.msra.mxu0 0
        %2712 = vmatprep.subr.bf16.mxu0 0
        %2713 = vmatpush1.bf16.msra.mxu0 0
        %2714 = vmatprep.subr.bf16.mxu0 0
        %2715 = vmatpush1.bf16.msra.mxu0 0
        %2716 = vmatprep.subr.bf16.mxu0 0
        %2717 = vmatpush1.bf16.msra.mxu0 0
        %2718 = vmatprep.subr.bf16.mxu0 0
        %2719 = vmatpush1.bf16.msra.mxu0 0
        %2720 = vmatprep.subr.bf16.mxu0 0
        %2721 = vmatpush1.bf16.msra.mxu0 0
        %2722 = vmatprep.mubr.bf16.mxu0 0
        %2723 = vmatmul.mubr.bf16.gmra.mrb[0].mxu0 %v2645
        %v2724 = vpop.f32.mrb[0].mxu0
        %v2725 = vadd.f32 0.0, %v2724
        %v2726 = vpop.f32.mrb[0].mxu0
        %v2727 = vpop.f32.mrb[0].mxu0
        %v2728 = vpop.f32.mrb[0].mxu0
        %2729 = vdwg.mxu0
        %v2730 = vrcp.pop %v2725
        %v2731 = vmul.f32 %v2685, %v2730
        %v2732 = vpack.c.bf16 %v2731, %v2731
        %s2733 = scalar_lea.vmem %s13, 16
        %v2734 = vld [vmem:[%s2733] sm:$0xf]
        %v2735 = vld [vmem:[%s2733 + $0x4] sm:$0xf]
        %v2736 = vld [vmem:[%s2733 + $0x8] sm:$0xf]
        %v2737 = vld [vmem:[%s2733 + $0xc] sm:$0xf]
        %v2742 = vunpack.c.l.b16 %v2734
        %v2743 = vunpack.c.l.b16 %v2735
        %v2744 = vunpack.c.l.b16 %v2736
        %v2745 = vunpack.c.l.b16 %v2737
        %v2746 = vpack.c.b16 %v2743, %v2742
        %v2747 = vpack.c.b16 %v2745, %v2744
        %v2751 = vsel %vm736, %v2732, 0
        %2753 = vmatprep.subr.bf16.mxu0 0
        %2754 = vmatpush1.bf16.msra.mxu0 %v2746
        %2755 = vmatprep.subr.bf16.mxu0 0
        %2756 = vmatpush1.bf16.msra.mxu0 %v2747
        %2757 = vmatprep.subr.bf16.mxu0 0
        %2758 = vmatpush1.bf16.msra.mxu0 0
        %2759 = vmatprep.subr.bf16.mxu0 0
        %2760 = vmatpush1.bf16.msra.mxu0 0
        %2761 = vmatprep.subr.bf16.mxu0 0
        %2762 = vmatpush1.bf16.msra.mxu0 0
        %2763 = vmatprep.subr.bf16.mxu0 0
        %2764 = vmatpush1.bf16.msra.mxu0 0
        %2765 = vmatprep.subr.bf16.mxu0 0
        %2766 = vmatpush1.bf16.msra.mxu0 0
        %2767 = vmatprep.subr.bf16.mxu0 0
        %2768 = vmatpush1.bf16.msra.mxu0 0
        %2769 = vmatprep.subr.bf16.mxu0 0
        %2770 = vmatpush1.bf16.msra.mxu0 0
        %2771 = vmatprep.subr.bf16.mxu0 0
        %2772 = vmatpush1.bf16.msra.mxu0 0
        %2773 = vmatprep.subr.bf16.mxu0 0
        %2774 = vmatpush1.bf16.msra.mxu0 0
        %2775 = vmatprep.subr.bf16.mxu0 0
        %2776 = vmatpush1.bf16.msra.mxu0 0
        %2777 = vmatprep.subr.bf16.mxu0 0
        %2778 = vmatpush1.bf16.msra.mxu0 0
        %2779 = vmatprep.subr.bf16.mxu0 0
        %2780 = vmatpush1.bf16.msra.mxu0 0
        %2781 = vmatprep.subr.bf16.mxu0 0
        %2782 = vmatpush1.bf16.msra.mxu0 0
        %2783 = vmatprep.subr.bf16.mxu0 0
        %2784 = vmatpush1.bf16.msra.mxu0 0
        %2785 = vmatprep.mubr.bf16.mxu0 0
        %2786 = vmatmul.mubr.bf16.gmra.mrb[0].mxu0 %v2751
        %v2787 = vpop.f32.mrb[0].mxu0
        %v2788 = vadd.f32 0.0, %v2787
        %v2789 = vpop.f32.mrb[0].mxu0
        %v2790 = vpop.f32.mrb[0].mxu0
        %v2791 = vpop.f32.mrb[0].mxu0
        %2792 = vdwg.mxu0
        %v2793 = vadd.f32 %v2294, %v2788
        %s2794 = scalar_lea.vmem %s11, 1
        %v2795 = vld [vmem:[%s2794] sm:$0x1]
        %v2796 = vmul.f32 %v2793, %v2793
        %v2797 = vsel %vm736, %v2796, 0.0
        %2798 = vadd.xlane.f32.xlu0 %v2797
        %v2799 = vpop.xlane.xlu0 %2798
        %v2800 = vmul.f32 %v2799, %v744
        %v2801 = vadd.f32 %v2800, 1e-05
        %v2802 = vrsqrt.pop %v2801
        %v2803 = vmul.f32 %v2793, %v2802
        %v2805 = vlaneseq
        %v2806 = vshrl.u32 %v2805, 7
        %v2807 = vsub.s32 0, %v2806
        %v2808 = vrot.slane %v2795, %v2807
        %v2810 = vmul.f32 %v2803, %v2808
        %v2811 = vpack.c.bf16 %v2810, %v2810
        %s2812 = scalar_lea.vmem %s14, 16
        %v2813 = vld [vmem:[%s2812] sm:$0xf]
        %v2814 = vld [vmem:[%s2812 + $0x4] sm:$0xf]
        %v2815 = vld [vmem:[%s2812 + $0x8] sm:$0xf]
        %v2816 = vld [vmem:[%s2812 + $0xc] sm:$0xf]
        %v2821 = vunpack.c.l.b16 %v2813
        %v2822 = vunpack.c.l.b16 %v2814
        %v2823 = vunpack.c.l.b16 %v2815
        %v2824 = vunpack.c.l.b16 %v2816
        %v2825 = vpack.c.b16 %v2822, %v2821
        %v2826 = vpack.c.b16 %v2824, %v2823
        %v2830 = vsel %vm736, %v2811, 0
        %2832 = vmatprep.subr.bf16.mxu0 0
        %2833 = vmatpush1.bf16.msra.mxu0 %v2825
        %2834 = vmatprep.subr.bf16.mxu0 0
        %2835 = vmatpush1.bf16.msra.mxu0 %v2826
        %2836 = vmatprep.subr.bf16.mxu0 0
        %2837 = vmatpush1.bf16.msra.mxu0 0
        %2838 = vmatprep.subr.bf16.mxu0 0
        %2839 = vmatpush1.bf16.msra.mxu0 0
        %2840 = vmatprep.subr.bf16.mxu0 0
        %2841 = vmatpush1.bf16.msra.mxu0 0
        %2842 = vmatprep.subr.bf16.mxu0 0
        %2843 = vmatpush1.bf16.msra.mxu0 0
        %2844 = vmatprep.subr.bf16.mxu0 0
        %2845 = vmatpush1.bf16.msra.mxu0 0
        %2846 = vmatprep.subr.bf16.mxu0 0
        %2847 = vmatpush1.bf16.msra.mxu0 0
        %2848 = vmatprep.subr.bf16.mxu0 0
        %2849 = vmatpush1.bf16.msra.mxu0 0
        %2850 = vmatprep.subr.bf16.mxu0 0
        %2851 = vmatpush1.bf16.msra.mxu0 0
        %2852 = vmatprep.subr.bf16.mxu0 0
        %2853 = vmatpush1.bf16.msra.mxu0 0
        %2854 = vmatprep.subr.bf16.mxu0 0
        %2855 = vmatpush1.bf16.msra.mxu0 0
        %2856 = vmatprep.subr.bf16.mxu0 0
        %2857 = vmatpush1.bf16.msra.mxu0 0
        %2858 = vmatprep.subr.bf16.mxu0 0
        %2859 = vmatpush1.bf16.msra.mxu0 0
        %2860 = vmatprep.subr.bf16.mxu0 0
        %2861 = vmatpush1.bf16.msra.mxu0 0
        %2862 = vmatprep.subr.bf16.mxu0 0
        %2863 = vmatpush1.bf16.msra.mxu0 0
        %2864 = vmatprep.mubr.bf16.mxu0 0
        %2865 = vmatmul.mubr.bf16.gmra.mrb[0].mxu0 %v2830
        %v2866 = vpop.f32.mrb[0].mxu0
        %v2867 = vadd.f32 0.0, %v2866
        %v2868 = vpop.f32.mrb[0].mxu0
        %v2869 = vpop.f32.mrb[0].mxu0
        %v2870 = vpop.f32.mrb[0].mxu0
        %2871 = vdwg.mxu0
        %v2872 = vsub.f32 0.0, %v2867
        %v2873 = vmul.f32 %v2872, 1.442695
        %v2874 = vpow.pop %v2873
        %v2875 = vadd.f32 %v2874, 1.0
        %v2876 = vrcp.pop %v2875
        %v2877 = vmul.f32 1.0, %v2876
        %v2878 = vmul.f32 %v2867, %v2877
        %2880 = vrot.lane.b32.xlu0 %v2867, 64
        %v2881 = vpop.permute.xlu0 %2880
        %v2883 = vmul.f32 %v2878, %v2881
        %v2884 = vpack.c.bf16 %v2883, %v2883
        %s2885 = scalar_lea.vmem %s15, 32
        %v2886 = vld [vmem:[%s2885] sm:$0xf]
        %v2887 = vld [vmem:[%s2885 + $0x4] sm:$0xf]
        %v2888 = vld [vmem:[%s2885 + $0x8] sm:$0xf]
        %v2889 = vld [vmem:[%s2885 + $0xc] sm:$0xf]
        %v2890 = vld [vmem:[%s2885 + $0x10] sm:$0xf]
        %v2891 = vld [vmem:[%s2885 + $0x14] sm:$0xf]
        %v2892 = vld [vmem:[%s2885 + $0x18] sm:$0xf]
        %v2893 = vld [vmem:[%s2885 + $0x1c] sm:$0xf]
        %v2902 = vunpack.c.l.b16 %v2886
        %v2903 = vunpack.c.l.b16 %v2887
        %v2904 = vunpack.c.l.b16 %v2888
        %v2905 = vunpack.c.l.b16 %v2889
        %v2906 = vunpack.c.l.b16 %v2890
        %v2907 = vunpack.c.l.b16 %v2891
        %v2908 = vunpack.c.l.b16 %v2892
        %v2909 = vunpack.c.l.b16 %v2893
        %v2910 = vpack.c.b16 %v2903, %v2902
        %v2911 = vpack.c.b16 %v2905, %v2904
        %v2912 = vpack.c.b16 %v2907, %v2906
        %v2913 = vpack.c.b16 %v2909, %v2908
        %v2919 = vsel %vm1464, %v2884, 0
        %2921 = vmatprep.subr.bf16.mxu0 0
        %2922 = vmatpush1.bf16.msra.mxu0 %v2910
        %2923 = vmatprep.subr.bf16.mxu0 0
        %2924 = vmatpush1.bf16.msra.mxu0 %v2911
        %2925 = vmatprep.subr.bf16.mxu0 0
        %2926 = vmatpush1.bf16.msra.mxu0 %v2912
        %2927 = vmatprep.subr.bf16.mxu0 0
        %2928 = vmatpush1.bf16.msra.mxu0 %v2913
        %2929 = vmatprep.subr.bf16.mxu0 0
        %2930 = vmatpush1.bf16.msra.mxu0 0
        %2931 = vmatprep.subr.bf16.mxu0 0
        %2932 = vmatpush1.bf16.msra.mxu0 0
        %2933 = vmatprep.subr.bf16.mxu0 0
        %2934 = vmatpush1.bf16.msra.mxu0 0
        %2935 = vmatprep.subr.bf16.mxu0 0
        %2936 = vmatpush1.bf16.msra.mxu0 0
        %2937 = vmatprep.subr.bf16.mxu0 0
        %2938 = vmatpush1.bf16.msra.mxu0 0
        %2939 = vmatprep.subr.bf16.mxu0 0
        %2940 = vmatpush1.bf16.msra.mxu0 0
        %2941 = vmatprep.subr.bf16.mxu0 0
        %2942 = vmatpush1.bf16.msra.mxu0 0
        %2943 = vmatprep.subr.bf16.mxu0 0
        %2944 = vmatpush1.bf16.msra.mxu0 0
        %2945 = vmatprep.subr.bf16.mxu0 0
        %2946 = vmatpush1.bf16.msra.mxu0 0
        %2947 = vmatprep.subr.bf16.mxu0 0
        %2948 = vmatpush1.bf16.msra.mxu0 0
        %2949 = vmatprep.subr.bf16.mxu0 0
        %2950 = vmatpush1.bf16.msra.mxu0 0
        %2951 = vmatprep.subr.bf16.mxu0 0
        %2952 = vmatpush1.bf16.msra.mxu0 0
        %2953 = vmatprep.mubr.bf16.mxu0 0
        %2954 = vmatmul.mubr.bf16.gmra.mrb[0].mxu0 %v2919
        %v2955 = vpop.f32.mrb[0].mxu0
        %v2956 = vadd.f32 0.0, %v2955
        %v2957 = vpop.f32.mrb[0].mxu0
        %v2958 = vpop.f32.mrb[0].mxu0
        %v2959 = vpop.f32.mrb[0].mxu0
        %2960 = vdwg.mxu0
        %v2961 = vadd.f32 %v2793, %v2956
        %v2962 = vld [vmem:[%s16] sm:$0x1]
        %v2963 = vmul.f32 %v2961, %v2961
        %v2964 = vsel %vm736, %v2963, 0.0
        %2965 = vadd.xlane.f32.xlu0 %v2964
        %v2966 = vpop.xlane.xlu0 %2965
        %v2967 = vmul.f32 %v2966, %v744
        %v2968 = vadd.f32 %v2967, 1e-05
        %v2969 = vrsqrt.pop %v2968
        %v2970 = vmul.f32 %v2961, %v2969
        %v2972 = vlaneseq
        %v2973 = vshrl.u32 %v2972, 7
        %v2974 = vsub.s32 0, %v2973
        %v2975 = vrot.slane %v2962, %v2974
        %v2977 = vmul.f32 %v2970, %v2975
        %v2978 = vpack.c.bf16 %v2977, %v2977
        %v2979 = vld [vmem:[%s17] sm:$0xf]
        %v2980 = vld [vmem:[%s17 + $0x4] sm:$0xf]
        %v2981 = vld [vmem:[%s17 + $0x8] sm:$0xf]
        %v2982 = vld [vmem:[%s17 + $0xc] sm:$0xf]
        %v2987 = vunpack.c.l.b16 %v2979
        %v2988 = vunpack.c.l.b16 %v2980
        %v2989 = vunpack.c.l.b16 %v2981
        %v2990 = vunpack.c.l.b16 %v2982
        %v2991 = vpack.c.b16 %v2988, %v2987
        %v2992 = vpack.c.b16 %v2990, %v2989
        %v2996 = vsel %vm736, %v2978, 0
        %2998 = vmatprep.subr.bf16.mxu0 0
        %2999 = vmatpush1.bf16.msra.mxu0 %v2991
        %3000 = vmatprep.subr.bf16.mxu0 0
        %3001 = vmatpush1.bf16.msra.mxu0 %v2992
        %3002 = vmatprep.subr.bf16.mxu0 0
        %3003 = vmatpush1.bf16.msra.mxu0 0
        %3004 = vmatprep.subr.bf16.mxu0 0
        %3005 = vmatpush1.bf16.msra.mxu0 0
        %3006 = vmatprep.subr.bf16.mxu0 0
        %3007 = vmatpush1.bf16.msra.mxu0 0
        %3008 = vmatprep.subr.bf16.mxu0 0
        %3009 = vmatpush1.bf16.msra.mxu0 0
        %3010 = vmatprep.subr.bf16.mxu0 0
        %3011 = vmatpush1.bf16.msra.mxu0 0
        %3012 = vmatprep.subr.bf16.mxu0 0
        %3013 = vmatpush1.bf16.msra.mxu0 0
        %3014 = vmatprep.subr.bf16.mxu0 0
        %3015 = vmatpush1.bf16.msra.mxu0 0
        %3016 = vmatprep.subr.bf16.mxu0 0
        %3017 = vmatpush1.bf16.msra.mxu0 0
        %3018 = vmatprep.subr.bf16.mxu0 0
        %3019 = vmatpush1.bf16.msra.mxu0 0
        %3020 = vmatprep.subr.bf16.mxu0 0
        %3021 = vmatpush1.bf16.msra.mxu0 0
        %3022 = vmatprep.subr.bf16.mxu0 0
        %3023 = vmatpush1.bf16.msra.mxu0 0
        %3024 = vmatprep.subr.bf16.mxu0 0
        %3025 = vmatpush1.bf16.msra.mxu0 0
        %3026 = vmatprep.subr.bf16.mxu0 0
        %3027 = vmatpush1.bf16.msra.mxu0 0
        %3028 = vmatprep.subr.bf16.mxu0 0
        %3029 = vmatpush1.bf16.msra.mxu0 0
        %3030 = vmatprep.mubr.bf16.mxu0 0
        %3031 = vmatmul.mubr.bf16.gmra.mrb[0].mxu0 %v2996
        %v3032 = vpop.f32.mrb[0].mxu0
        %v3033 = vadd.f32 0.0, %v3032
        %v3034 = vpop.f32.mrb[0].mxu0
        %v3035 = vpop.f32.mrb[0].mxu0
        %v3036 = vpop.f32.mrb[0].mxu0
        %3037 = vdwg.mxu0
        %3038 = vst [vmem:[%s644] sm:$0xff] %v3033
        %vm3039 = vcmp.lt.s32.totalorder %v687, 64
        %v3040 = vsel %vm3039, %v3033, -1e+09
        %v3041 = vld [vmem:[%s668] sm:$0xff]
        %3042 = vmax.xlane.f32.xlu0 %v3040
        %v3043 = vpop.xlane.xlu0 %3042
        %v3044 = vsub.f32 %v3040, %v3043
        %v3045 = vmul.f32 %v3044, 1.442695
        %v3046 = vpow.pop %v3045
        %3047 = vadd.xlane.f32.xlu0 %v3046
        %v3048 = vpop.xlane.xlu0 %3047
        %v3049 = vlog2.pop %v3048
        %v3050 = vmul.f32 %v3049, 0.6931472
        %v3051 = vadd.f32 %v3050, %v3043
        %3052 = vset.pattern.permute.xlu0 0
        %3053 = vperm.xlu0 %3052, %v3041
        %v3054 = vpop.permute.xlu0 %3053
        %vm3055 = vcmp.eq.s32.totalorder %v687, %v3054
        %v3056 = vsel %vm3055, %v3040, 0.0
        %3057 = vadd.xlane.f32.xlu0 %v3056
        %v3058 = vpop.xlane.xlu0 %3057
        %vm3059 = vcmp.ne.s32.totalorder %v3041, 4294967196
        %v3060 = vsel %vm3059, 1, 0
        %v3061 = vcvt.s32.f32 %v3060
        %v3062 = vsub.f32 %v3051, %v3058
        %v3063 = vmul.f32 %v3062, %v3061
        %vm3064 = vcmask 7168
        %v3065 = vsel %vm3064, %v3063, 0.0
        %3066 = vadd.xlane.f32.xlu0 %v3065
        %v3067 = vpop.xlane.xlu0 %3066
        %v3068 = vrot.slane %v3067, 4
        %v3069 = vadd.f32 %v3067, %v3068
        %v3070 = vrot.slane %v3069, 2
        %v3071 = vadd.f32 %v3069, %v3070
        %v3072 = vrot.slane %v3071, 1
        %v3073 = vadd.f32 %v3071, %v3072
        %s3074 = vtos %v3073
        %v3075 = vsel %vm3064, %v3061, 0.0
        %3076 = vadd.xlane.f32.xlu0 %v3075
        %v3077 = vpop.xlane.xlu0 %3076
        %v3078 = vrot.slane %v3077, 4
        %v3079 = vadd.f32 %v3077, %v3078
        %v3080 = vrot.slane %v3079, 2
        %v3081 = vadd.f32 %v3079, %v3080
        %v3082 = vrot.slane %v3081, 1
        %v3083 = vadd.f32 %v3081, %v3082
        %s3084 = vtos %v3083
        %vm3085 = vcmp.eq.s32.totalorder %v687, 0
        %vm3086 = vcmp.eq.s32.totalorder %v687, 1
        %v3087 = vstv %s3084
        %v3088 = vsel %vm3086, %v3087, 0.0
        %v3089 = vstv %s3074
        %v3090 = vsel %vm3085, %v3089, %v3088
        %3091 = vst [vmem:[%s671] sm:$0x1] %v3090
        %s3092 = sand.u32 %s445, 1
        %s3093 = scalar_lea.sflag [#allocation3], %s3092
        %s3094 = sand.u32 %s445, 1
        %s3095 = smul.addr %s3094, 8
        %s3096 = scalar_lea.vmem [#allocation2], %s3095
        %p3097 = scmp.lt.s32.totalorder %s34, 1
        %s3098 = scalar_select %p3097, %s34, 1
        %s3099 = scalar_lea.vmem %s19, %s3098
        // Predicated region
        $region93: #{phi_compressor_forward.1} parent=91 // pred_check
          %p3100 = pneg %p455
        $region94: #{phi_compressor_forward.1} parent=91 // pred_check_branch
          %3102 = sbr.rel (%p3100) target = $region96
        $region95: #{phi_compressor_forward.1} parent=91 // pred_region
          %s3104 = ssub.s32 128, 128
          %3105 = vsyncadd %s3093, %s3104
          %s3106 = smul.addr %s34, 128
          %s3107 = scalar_lea.hbm %s18, %s3106
          %s3109 = sshll.u32 %s3096, 4
          %s3110 = int_to_ptr.vmem [resolvable:$true] %s3109
          %3112 = dma.vmem_to_hbm [thread:$0]  %s3110, 128, %s3107, %s3093
        $region96: #{phi_compressor_forward.1} parent=91 // pred_fallthru
          _
        // Predicated region
        $region97: #{phi_compressor_forward.1} parent=91 // pred_check
          %p3113 = pneg %p481
        $region98: #{phi_compressor_forward.1} parent=91 // pred_check_branch
          %3115 = sbr.rel (%p3113) target = $region100
        $region99: #{phi_compressor_forward.1} parent=91 // pred_region
          _
        $region100: #{phi_compressor_forward.1} parent=91 // pred_fallthru
          _
      $region92: #{phi_compressor_forward.1} parent=5 // pred_fallthru
        _
      %p3116 = scmp.le.s32.totalorder 2, %s29
      // Predicated region
      $region101: #{phi_compressor_forward.1} parent=5 // pred_check
        %p3117 = pneg %p3116
      $region102: #{phi_compressor_forward.1} parent=5 // pred_check_branch
        %3119 = sbr.rel (%p3117) target = $region104
      $region103: #{phi_compressor_forward.1} parent=5 // pred_region
        %s3120 = ssub.s32 %s29, 2
        // Predicated region
        $region105: #{phi_compressor_forward.1} parent=103 // pred_check
          %p3121 = pneg %p461
        $region106: #{phi_compressor_forward.1} parent=103 // pred_check_branch
          %3123 = sbr.rel (%p3121) target = $region108
        $region107: #{phi_compressor_forward.1} parent=103 // pred_region
          %s3124 = sand.u32 %s446, 1
          %s3125 = scalar_lea.sflag [#allocation3], %s3124
          %s3126 = sand.u32 %s446, 1
          %s3127 = smul.addr %s3126, 8
          %s3128 = scalar_lea.vmem [#allocation2], %s3127
          %3129 = dma.done %s3125, 128
        $region108: #{phi_compressor_forward.1} parent=103 // pred_fallthru
          _
        // Predicated region
        $region109: #{phi_compressor_forward.1} parent=103 // pred_check
          %p3130 = pneg %p487
        $region110: #{phi_compressor_forward.1} parent=103 // pred_check_branch
          %3132 = sbr.rel (%p3130) target = $region112
        $region111: #{phi_compressor_forward.1} parent=103 // pred_region
          %p3133 = scmp.lt.s32.totalorder %s35, 1
          %s3134 = scalar_select %p3133, %s35, 1
          %s3135 = scalar_lea.vmem %s19, %s3134
        $region112: #{phi_compressor_forward.1} parent=103 // pred_fallthru
          _
      $region104: #{phi_compressor_forward.1} parent=5 // pred_fallthru
        _
    $region6: #{phi_compressor_forward.1} parent=1 // loop_footer
      %s33 = sadd.s32 1, %s29
    $region7: #{phi_compressor_forward.1} parent=1 // loop_footer_branch
      %28 = sbr.rel target = $region3
    $region8: #{phi_compressor_forward.1} parent=1 // loop_exit
      _
    %3136 = vsyncpa [#allocation3], 1
    %s3137 = scalar_lea.sflag [#allocation3], 1
    %3138 = vsyncpa %s3137, 1

</llo_original>
